<compile_context>
chip_gen: v7x
topology: tpu7x:2x2x1
jax: 0.10.0
libtpu: 0.0.40
codegen_flags: <defaults>
</compile_context>

<pallas_src>
import jax
import jax.numpy as jnp
from jax.experimental import pallas as pl
from jax.experimental.pallas import tpu as pltpu

IN_LENGTH = 30      # sequence length implied by fc1 (200 * 4 = 800)
EMB_DIM = 64
VOCAB = 1000        # small synthetic vocabulary (module default is 100000)
TILE_B = 256        # batch tile; fits v5e's 16 MiB scoped VMEM with headroom
OUT_LANES = 128     # fc2 output padded to one full lane group


# ---------------------------------------------------------------------------
# in-kernel helpers (all shapes static; traced into the kernel body)
# ---------------------------------------------------------------------------
def _conv1d_taps(x, w_ref, b_ref, pad):
    """1-D conv as K accumulated per-tap MXU matmuls.
    x: (B, L, Cin) bf16, w_ref: (K, Cin, Cout) bf16, b_ref: (1, Cout) f32."""
    B, L, Cin = x.shape
    K, _, Cout = w_ref.shape
    Lout = L + 2 * pad - K + 1
    if pad > 0:
        z = jnp.zeros((B, pad, Cin), x.dtype)
        x = jnp.concatenate([z, x, z], axis=1)
    acc = jnp.zeros((B * Lout, Cout), jnp.float32) + b_ref[...]
    for t in range(K):                               # static unroll (K = 2 or 3)
        xt = x[:, t:t + Lout, :].reshape(B * Lout, Cin)
        acc = acc + jnp.dot(xt, w_ref[t], preferred_element_type=jnp.float32)
    return acc.reshape(B, Lout, Cout)


def _maxpool2(x, pad_front=False):
    """MaxPool1d(kernel=2, stride=2[, padding=1]) on (B, L, C), floor mode.
    Leading -inf pad window reduces to x[:, 0]; trailing partial window is
    dropped (floor mode)."""
    B, L, C = x.shape
    if pad_front:
        head = x[:, 0:1, :]                          # max(-inf, x0) == x0
        L2 = (L - 1) // 2
        body = x[:, 1:1 + 2 * L2, :].reshape(B, L2, 2, C)
        return jnp.concatenate([head, jnp.max(body, axis=2)], axis=1)
    L2 = L // 2
    return jnp.max(x[:, :2 * L2, :].reshape(B, L2, 2, C), axis=2)


# ---------------------------------------------------------------------------
# kernel
# ---------------------------------------------------------------------------
def _forward_kernel(emb_ref, w1_ref, b1_ref, w2_ref, b2_ref, w3_ref, b3_ref,
                    fc1w_ref, fc1b_ref, fc2w_ref, fc2b_ref, out_ref):
    x = emb_ref[...]                                             # (tb, 30, 64) bf16

    h = _conv1d_taps(x, w1_ref, b1_ref, pad=1)                   # (tb, 30, 50)
    h = _maxpool2(jnp.maximum(h, 0.0))                           # (tb, 15, 50)

    h = _conv1d_taps(h.astype(jnp.bfloat16), w2_ref, b2_ref, pad=1)   # (tb, 15, 100)
    h = _maxpool2(jnp.maximum(h, 0.0), pad_front=True)           # (tb, 8, 100)

    h = _conv1d_taps(h.astype(jnp.bfloat16), w3_ref, b3_ref, pad=1)   # (tb, 9, 200)
    h = _maxpool2(jnp.maximum(h, 0.0))                           # (tb, 4, 200)

    # fc1 (dropout = identity): flatten-free accumulation over the 4 pooled
    # positions; fc1 weight was re-packed to (4, 200, 200) to match PyTorch's
    # c-major flatten order.
    h = h.astype(jnp.bfloat16)
    z = jnp.zeros((h.shape[0], fc1b_ref.shape[1]), jnp.float32) + fc1b_ref[...]
    for l in range(4):
        z = z + jnp.dot(h[:, l, :], fc1w_ref[l],
                        preferred_element_type=jnp.float32)
    z = jnp.maximum(z, 0.0)

    # fc2, lane-padded to 128 output columns (real logit in column 0)
    o = jnp.dot(z.astype(jnp.bfloat16), fc2w_ref[...],
                preferred_element_type=jnp.float32) + fc2b_ref[...]
    out_ref[...] = o


# ---------------------------------------------------------------------------
# wrapper + parameter setup (JAX glue)
# ---------------------------------------------------------------------------
def _resident_spec(shape):
    """Full-array block with a constant index_map -> stays resident in VMEM."""
    rank = len(shape)
    return pl.BlockSpec(shape, lambda *_: (0,) * rank)


@jax.jit
def cnn_forward(token_ids, params):
    B = token_ids.shape[0]
    tb = min(TILE_B, B)
    n_tiles = -(-B // tb)
    Bp = n_tiles * tb

    # TODO(synk): move the embedding gather in-kernel (scalar-prefetched ids +
    # DMA row gather) to shrink the HBM input stream from ~3.8KB to 120B/sample.
    emb = params["embedding"][token_ids].astype(jnp.bfloat16)    # (B, 30, 64)
    if Bp != B:
        emb = jnp.pad(emb, ((0, Bp - B), (0, 0), (0, 0)))

    weights = (params["w1t"], params["b1"], params["w2t"], params["b2"],
               params["w3t"], params["b3"], params["fc1wl"], params["fc1b"],
               params["fc2wp"], params["fc2bp"])

    out = pl.pallas_call(
        _forward_kernel,
        out_shape=jax.ShapeDtypeStruct((Bp, OUT_LANES), jnp.float32),
        grid=(n_tiles,),
        in_specs=[pl.BlockSpec((tb, IN_LENGTH, EMB_DIM), lambda i: (i, 0, 0))]
                 + [_resident_spec(w.shape) for w in weights],
        out_specs=pl.BlockSpec((tb, OUT_LANES), lambda i: (i, 0)),
        compiler_params=pltpu.CompilerParams(
            dimension_semantics=("parallel",),
            vmem_limit_bytes=32 * 1024 * 1024),
    )(emb, *weights)
    return out[:B, 0]                                            # == x.view(size)


def init_params(key, vocab_size=VOCAB, embedding_dim=EMB_DIM):
    ks = jax.random.split(key, 11)

    def uni(k, shape, fan_in):               # deterministic PyTorch-style init
        bound = 1.0 / (fan_in ** 0.5)
        return jax.random.uniform(k, shape, jnp.float32, -bound, bound)

    emb = jax.random.normal(ks[0], (vocab_size, embedding_dim), jnp.float32)
    emb = emb.at[0].set(0.0)                                     # padding_idx=0

    w1 = uni(ks[1], (50, 64, 3), 64 * 3);    b1 = uni(ks[2], (50,), 64 * 3)
    w2 = uni(ks[3], (100, 50, 3), 50 * 3);   b2 = uni(ks[4], (100,), 50 * 3)
    w3 = uni(ks[5], (200, 100, 2), 100 * 2); b3 = uni(ks[6], (200,), 100 * 2)
    fc1w = uni(ks[7], (200, 800), 800);      fc1b = uni(ks[8], (200,), 800)
    fc2w = uni(ks[9], (1, 200), 200);        fc2b = uni(ks[10], (1,), 200)

    def conv_taps(w):                        # (Cout, Cin, K) -> (K, Cin, Cout)
        return jnp.transpose(w, (2, 1, 0)).astype(jnp.bfloat16)

    # PyTorch flattens the (C=200, L=4) activation c-major; re-pack fc1 into
    # per-position (L=4, Cin=200, Cout=200) blocks for the flatten-free sum.
    fc1wl = jnp.transpose(fc1w.reshape(200, 200, 4), (2, 1, 0)).astype(jnp.bfloat16)

    # fc2 padded to 128 output lanes (real logit in column 0).
    fc2wp = jnp.zeros((200, OUT_LANES), jnp.bfloat16).at[:, 0].set(
        fc2w[0].astype(jnp.bfloat16))
    fc2bp = jnp.zeros((1, OUT_LANES), jnp.float32).at[0, 0].set(fc2b[0])

    return dict(
        embedding=emb,
        w1t=conv_taps(w1), b1=b1.reshape(1, 50),
        w2t=conv_taps(w2), b2=b2.reshape(1, 100),
        w3t=conv_taps(w3), b3=b3.reshape(1, 200),
        fc1wl=fc1wl, fc1b=fc1b.reshape(1, 200),
        fc2wp=fc2wp, fc2bp=fc2bp,
    )


if __name__ == "__main__":
    key = jax.random.PRNGKey(0)
    pkey, xkey = jax.random.split(key)
    params = init_params(pkey)

    B = 2
    x = jax.random.randint(xkey, (B, IN_LENGTH), 1, VOCAB, dtype=jnp.int32)

    y = cnn_forward(x, params)
    jax.block_until_ready(y)
    assert y.shape == (B,) and y.dtype == jnp.float32
    print("KERNEL_OK")
</pallas_src>

<mosaic_0001>
module attributes {stable_mosaic.version = 11 : i64} {
  func.func @_forward_kernel(%arg0: i32, %arg1: memref<2x30x64xbf16, #tpu.memory_space<vmem>>, %arg2: memref<3x64x50xbf16, #tpu.memory_space<vmem>>, %arg3: memref<1x50xf32, #tpu.memory_space<vmem>>, %arg4: memref<3x50x100xbf16, #tpu.memory_space<vmem>>, %arg5: memref<1x100xf32, #tpu.memory_space<vmem>>, %arg6: memref<2x100x200xbf16, #tpu.memory_space<vmem>>, %arg7: memref<1x200xf32, #tpu.memory_space<vmem>>, %arg8: memref<4x200x200xbf16, #tpu.memory_space<vmem>>, %arg9: memref<1x200xf32, #tpu.memory_space<vmem>>, %arg10: memref<200x128xbf16, #tpu.memory_space<vmem>>, %arg11: memref<1x128xf32, #tpu.memory_space<vmem>>, %arg12: memref<2x128xf32, #tpu.memory_space<vmem>>) attributes {dimension_semantics = [#tpu.dimension_semantics<parallel>], iteration_bounds = array<i64: 1>, scalar_prefetch = 0 : i64, scratch_operands = 0 : i64, tpu.core_type = #tpu.core_type<tc>, window_params = [{transform_indices = @transform_0, window_bounds = array<i64: 2, 30, 64>}, {pipeline_mode = #tpu.pipeline_mode<synchronous>, transform_indices = @transform_1, window_bounds = array<i64: 3, 64, 50>}, {pipeline_mode = #tpu.pipeline_mode<synchronous>, transform_indices = @transform_2, window_bounds = array<i64: 1, 50>}, {pipeline_mode = #tpu.pipeline_mode<synchronous>, transform_indices = @transform_3, window_bounds = array<i64: 3, 50, 100>}, {pipeline_mode = #tpu.pipeline_mode<synchronous>, transform_indices = @transform_4, window_bounds = array<i64: 1, 100>}, {pipeline_mode = #tpu.pipeline_mode<synchronous>, transform_indices = @transform_5, window_bounds = array<i64: 2, 100, 200>}, {pipeline_mode = #tpu.pipeline_mode<synchronous>, transform_indices = @transform_6, window_bounds = array<i64: 1, 200>}, {pipeline_mode = #tpu.pipeline_mode<synchronous>, transform_indices = @transform_7, window_bounds = array<i64: 4, 200, 200>}, {pipeline_mode = #tpu.pipeline_mode<synchronous>, transform_indices = @transform_8, window_bounds = array<i64: 1, 200>}, {pipeline_mode = #tpu.pipeline_mode<synchronous>, transform_indices = @transform_9, window_bounds = array<i64: 200, 128>}, {pipeline_mode = #tpu.pipeline_mode<synchronous>, transform_indices = @transform_10, window_bounds = array<i64: 1, 128>}, {transform_indices = @transform_11, window_bounds = array<i64: 2, 128>}]} {
    %c0 = arith.constant 0 : index
    %c0_0 = arith.constant 0 : index
    %c0_1 = arith.constant 0 : index
    %0 = vector.load %arg1[%c0, %c0_0, %c0_1] : memref<2x30x64xbf16, #tpu.memory_space<vmem>>, vector<2x30x64xbf16>
    %cst = arith.constant 0.000000e+00 : bf16
    %1 = vector.broadcast %cst : bf16 to vector<2x1x64xbf16>
    %2 = tpu.concatenate %1, %0, %1 in 1 : vector<2x1x64xbf16>, vector<2x30x64xbf16>, vector<2x1x64xbf16> -> vector<2x32x64xbf16>
    %cst_2 = arith.constant 0.000000e+00 : f32
    %3 = vector.broadcast %cst_2 : f32 to vector<60x50xf32>
    %c0_3 = arith.constant 0 : index
    %c0_4 = arith.constant 0 : index
    %4 = vector.load %arg3[%c0_3, %c0_4] : memref<1x50xf32, #tpu.memory_space<vmem>>, vector<1x50xf32>
    %5 = vector.broadcast %4 : vector<1x50xf32> to vector<60x50xf32>
    %6 = arith.addf %3, %5 : vector<60x50xf32>
    %7 = vector.extract_strided_slice %2 {offsets = [0, 0, 0], sizes = [2, 30, 64], strides = [1, 1, 1]} : vector<2x32x64xbf16> to vector<2x30x64xbf16>
    %8 = vector.shape_cast %7 : vector<2x30x64xbf16> to vector<60x64xbf16>
    %c0_5 = arith.constant 0 : index
    %c0_6 = arith.constant 0 : index
    %c0_7 = arith.constant 0 : index
    %9 = vector.load %arg2[%c0_5, %c0_6, %c0_7] : memref<3x64x50xbf16, #tpu.memory_space<vmem>>, vector<1x64x50xbf16>
    %10 = vector.shape_cast %9 : vector<1x64x50xbf16> to vector<64x50xbf16>
    %cst_8 = arith.constant dense<0.000000e+00> : vector<60x50xf32>
    %11 = tpu.matmul %8, %10, %cst_8 {dimension_numbers = #tpu.dot_dimension_numbers<[1], [0], [0], [1], [0, 0, 1, 1], [], []>} : vector<60x64xbf16>, vector<64x50xbf16>, vector<60x50xf32> -> vector<60x50xf32>
    %12 = arith.addf %6, %11 : vector<60x50xf32>
    %13 = vector.extract_strided_slice %2 {offsets = [0, 1, 0], sizes = [2, 30, 64], strides = [1, 1, 1]} : vector<2x32x64xbf16> to vector<2x30x64xbf16>
    %14 = vector.shape_cast %13 : vector<2x30x64xbf16> to vector<60x64xbf16>
    %c1 = arith.constant 1 : index
    %c0_9 = arith.constant 0 : index
    %c0_10 = arith.constant 0 : index
    %15 = vector.load %arg2[%c1, %c0_9, %c0_10] : memref<3x64x50xbf16, #tpu.memory_space<vmem>>, vector<1x64x50xbf16>
    %16 = vector.shape_cast %15 : vector<1x64x50xbf16> to vector<64x50xbf16>
    %cst_11 = arith.constant dense<0.000000e+00> : vector<60x50xf32>
    %17 = tpu.matmul %14, %16, %cst_11 {dimension_numbers = #tpu.dot_dimension_numbers<[1], [0], [0], [1], [0, 0, 1, 1], [], []>} : vector<60x64xbf16>, vector<64x50xbf16>, vector<60x50xf32> -> vector<60x50xf32>
    %18 = arith.addf %12, %17 : vector<60x50xf32>
    %19 = vector.extract_strided_slice %2 {offsets = [0, 2, 0], sizes = [2, 30, 64], strides = [1, 1, 1]} : vector<2x32x64xbf16> to vector<2x30x64xbf16>
    %20 = vector.shape_cast %19 : vector<2x30x64xbf16> to vector<60x64xbf16>
    %c2 = arith.constant 2 : index
    %c0_12 = arith.constant 0 : index
    %c0_13 = arith.constant 0 : index
    %21 = vector.load %arg2[%c2, %c0_12, %c0_13] : memref<3x64x50xbf16, #tpu.memory_space<vmem>>, vector<1x64x50xbf16>
    %22 = vector.shape_cast %21 : vector<1x64x50xbf16> to vector<64x50xbf16>
    %cst_14 = arith.constant dense<0.000000e+00> : vector<60x50xf32>
    %23 = tpu.matmul %20, %22, %cst_14 {dimension_numbers = #tpu.dot_dimension_numbers<[1], [0], [0], [1], [0, 0, 1, 1], [], []>} : vector<60x64xbf16>, vector<64x50xbf16>, vector<60x50xf32> -> vector<60x50xf32>
    %24 = arith.addf %18, %23 : vector<60x50xf32>
    %25 = vector.shape_cast %24 : vector<60x50xf32> to vector<2x30x50xf32>
    %cst_15 = arith.constant 0.000000e+00 : f32
    %26 = vector.broadcast %cst_15 : f32 to vector<2x30x50xf32>
    %27 = arith.maximumf %25, %26 : vector<2x30x50xf32>
    %28 = vector.shape_cast %27 : vector<2x30x50xf32> to vector<2x15x2x50xf32>
    %cst_16 = arith.constant dense<0xFF800000> : vector<2x15x50xf32>
    %29 = vector.multi_reduction <maximumf>, %28, %cst_16 [2] : vector<2x15x2x50xf32> to vector<2x15x50xf32>
    %30 = arith.truncf %29 : vector<2x15x50xf32> to vector<2x15x50xbf16>
    %cst_17 = arith.constant 0.000000e+00 : bf16
    %31 = vector.broadcast %cst_17 : bf16 to vector<2x1x50xbf16>
    %32 = tpu.concatenate %31, %30, %31 in 1 : vector<2x1x50xbf16>, vector<2x15x50xbf16>, vector<2x1x50xbf16> -> vector<2x17x50xbf16>
    %cst_18 = arith.constant 0.000000e+00 : f32
    %33 = vector.broadcast %cst_18 : f32 to vector<30x100xf32>
    %c0_19 = arith.constant 0 : index
    %c0_20 = arith.constant 0 : index
    %34 = vector.load %arg5[%c0_19, %c0_20] : memref<1x100xf32, #tpu.memory_space<vmem>>, vector<1x100xf32>
    %35 = vector.broadcast %34 : vector<1x100xf32> to vector<30x100xf32>
    %36 = arith.addf %33, %35 : vector<30x100xf32>
    %37 = vector.extract_strided_slice %32 {offsets = [0, 0, 0], sizes = [2, 15, 50], strides = [1, 1, 1]} : vector<2x17x50xbf16> to vector<2x15x50xbf16>
    %38 = vector.shape_cast %37 : vector<2x15x50xbf16> to vector<30x50xbf16>
    %c0_21 = arith.constant 0 : index
    %c0_22 = arith.constant 0 : index
    %c0_23 = arith.constant 0 : index
    %39 = vector.load %arg4[%c0_21, %c0_22, %c0_23] : memref<3x50x100xbf16, #tpu.memory_space<vmem>>, vector<1x50x100xbf16>
    %40 = vector.shape_cast %39 : vector<1x50x100xbf16> to vector<50x100xbf16>
    %cst_24 = arith.constant dense<0.000000e+00> : vector<30x100xf32>
    %41 = tpu.matmul %38, %40, %cst_24 {dimension_numbers = #tpu.dot_dimension_numbers<[1], [0], [0], [1], [0, 0, 1, 1], [], []>} : vector<30x50xbf16>, vector<50x100xbf16>, vector<30x100xf32> -> vector<30x100xf32>
    %42 = arith.addf %36, %41 : vector<30x100xf32>
    %43 = vector.extract_strided_slice %32 {offsets = [0, 1, 0], sizes = [2, 15, 50], strides = [1, 1, 1]} : vector<2x17x50xbf16> to vector<2x15x50xbf16>
    %44 = vector.shape_cast %43 : vector<2x15x50xbf16> to vector<30x50xbf16>
    %c1_25 = arith.constant 1 : index
    %c0_26 = arith.constant 0 : index
    %c0_27 = arith.constant 0 : index
    %45 = vector.load %arg4[%c1_25, %c0_26, %c0_27] : memref<3x50x100xbf16, #tpu.memory_space<vmem>>, vector<1x50x100xbf16>
    %46 = vector.shape_cast %45 : vector<1x50x100xbf16> to vector<50x100xbf16>
    %cst_28 = arith.constant dense<0.000000e+00> : vector<30x100xf32>
    %47 = tpu.matmul %44, %46, %cst_28 {dimension_numbers = #tpu.dot_dimension_numbers<[1], [0], [0], [1], [0, 0, 1, 1], [], []>} : vector<30x50xbf16>, vector<50x100xbf16>, vector<30x100xf32> -> vector<30x100xf32>
    %48 = arith.addf %42, %47 : vector<30x100xf32>
    %49 = vector.extract_strided_slice %32 {offsets = [0, 2, 0], sizes = [2, 15, 50], strides = [1, 1, 1]} : vector<2x17x50xbf16> to vector<2x15x50xbf16>
    %50 = vector.shape_cast %49 : vector<2x15x50xbf16> to vector<30x50xbf16>
    %c2_29 = arith.constant 2 : index
    %c0_30 = arith.constant 0 : index
    %c0_31 = arith.constant 0 : index
    %51 = vector.load %arg4[%c2_29, %c0_30, %c0_31] : memref<3x50x100xbf16, #tpu.memory_space<vmem>>, vector<1x50x100xbf16>
    %52 = vector.shape_cast %51 : vector<1x50x100xbf16> to vector<50x100xbf16>
    %cst_32 = arith.constant dense<0.000000e+00> : vector<30x100xf32>
    %53 = tpu.matmul %50, %52, %cst_32 {dimension_numbers = #tpu.dot_dimension_numbers<[1], [0], [0], [1], [0, 0, 1, 1], [], []>} : vector<30x50xbf16>, vector<50x100xbf16>, vector<30x100xf32> -> vector<30x100xf32>
    %54 = arith.addf %48, %53 : vector<30x100xf32>
    %55 = vector.shape_cast %54 : vector<30x100xf32> to vector<2x15x100xf32>
    %cst_33 = arith.constant 0.000000e+00 : f32
    %56 = vector.broadcast %cst_33 : f32 to vector<2x15x100xf32>
    %57 = arith.maximumf %55, %56 : vector<2x15x100xf32>
    %58 = vector.extract_strided_slice %57 {offsets = [0, 0, 0], sizes = [2, 1, 100], strides = [1, 1, 1]} : vector<2x15x100xf32> to vector<2x1x100xf32>
    %59 = vector.extract_strided_slice %57 {offsets = [0, 1, 0], sizes = [2, 14, 100], strides = [1, 1, 1]} : vector<2x15x100xf32> to vector<2x14x100xf32>
    %60 = vector.shape_cast %59 : vector<2x14x100xf32> to vector<2x7x2x100xf32>
    %cst_34 = arith.constant dense<0xFF800000> : vector<2x7x100xf32>
    %61 = vector.multi_reduction <maximumf>, %60, %cst_34 [2] : vector<2x7x2x100xf32> to vector<2x7x100xf32>
    %62 = tpu.concatenate %58, %61 in 1 : vector<2x1x100xf32>, vector<2x7x100xf32> -> vector<2x8x100xf32>
    %63 = arith.truncf %62 : vector<2x8x100xf32> to vector<2x8x100xbf16>
    %cst_35 = arith.constant 0.000000e+00 : bf16
    %64 = vector.broadcast %cst_35 : bf16 to vector<2x1x100xbf16>
    %65 = tpu.concatenate %64, %63, %64 in 1 : vector<2x1x100xbf16>, vector<2x8x100xbf16>, vector<2x1x100xbf16> -> vector<2x10x100xbf16>
    %cst_36 = arith.constant 0.000000e+00 : f32
    %66 = vector.broadcast %cst_36 : f32 to vector<18x200xf32>
    %c0_37 = arith.constant 0 : index
    %c0_38 = arith.constant 0 : index
    %67 = vector.load %arg7[%c0_37, %c0_38] : memref<1x200xf32, #tpu.memory_space<vmem>>, vector<1x200xf32>
    %68 = vector.broadcast %67 : vector<1x200xf32> to vector<18x200xf32>
    %69 = arith.addf %66, %68 : vector<18x200xf32>
    %70 = vector.extract_strided_slice %65 {offsets = [0, 0, 0], sizes = [2, 9, 100], strides = [1, 1, 1]} : vector<2x10x100xbf16> to vector<2x9x100xbf16>
    %71 = vector.shape_cast %70 : vector<2x9x100xbf16> to vector<18x100xbf16>
    %c0_39 = arith.constant 0 : index
    %c0_40 = arith.constant 0 : index
    %c0_41 = arith.constant 0 : index
    %72 = vector.load %arg6[%c0_39, %c0_40, %c0_41] : memref<2x100x200xbf16, #tpu.memory_space<vmem>>, vector<1x100x200xbf16>
    %73 = vector.shape_cast %72 : vector<1x100x200xbf16> to vector<100x200xbf16>
    %cst_42 = arith.constant dense<0.000000e+00> : vector<18x200xf32>
    %74 = tpu.matmul %71, %73, %cst_42 {dimension_numbers = #tpu.dot_dimension_numbers<[1], [0], [0], [1], [0, 0, 1, 1], [], []>} : vector<18x100xbf16>, vector<100x200xbf16>, vector<18x200xf32> -> vector<18x200xf32>
    %75 = arith.addf %69, %74 : vector<18x200xf32>
    %76 = vector.extract_strided_slice %65 {offsets = [0, 1, 0], sizes = [2, 9, 100], strides = [1, 1, 1]} : vector<2x10x100xbf16> to vector<2x9x100xbf16>
    %77 = vector.shape_cast %76 : vector<2x9x100xbf16> to vector<18x100xbf16>
    %c1_43 = arith.constant 1 : index
    %c0_44 = arith.constant 0 : index
    %c0_45 = arith.constant 0 : index
    %78 = vector.load %arg6[%c1_43, %c0_44, %c0_45] : memref<2x100x200xbf16, #tpu.memory_space<vmem>>, vector<1x100x200xbf16>
    %79 = vector.shape_cast %78 : vector<1x100x200xbf16> to vector<100x200xbf16>
    %cst_46 = arith.constant dense<0.000000e+00> : vector<18x200xf32>
    %80 = tpu.matmul %77, %79, %cst_46 {dimension_numbers = #tpu.dot_dimension_numbers<[1], [0], [0], [1], [0, 0, 1, 1], [], []>} : vector<18x100xbf16>, vector<100x200xbf16>, vector<18x200xf32> -> vector<18x200xf32>
    %81 = arith.addf %75, %80 : vector<18x200xf32>
    %82 = vector.shape_cast %81 : vector<18x200xf32> to vector<2x9x200xf32>
    %cst_47 = arith.constant 0.000000e+00 : f32
    %83 = vector.broadcast %cst_47 : f32 to vector<2x9x200xf32>
    %84 = arith.maximumf %82, %83 : vector<2x9x200xf32>
    %85 = vector.extract_strided_slice %84 {offsets = [0, 0, 0], sizes = [2, 8, 200], strides = [1, 1, 1]} : vector<2x9x200xf32> to vector<2x8x200xf32>
    %86 = vector.shape_cast %85 : vector<2x8x200xf32> to vector<2x4x2x200xf32>
    %cst_48 = arith.constant dense<0xFF800000> : vector<2x4x200xf32>
    %87 = vector.multi_reduction <maximumf>, %86, %cst_48 [2] : vector<2x4x2x200xf32> to vector<2x4x200xf32>
    %88 = arith.truncf %87 : vector<2x4x200xf32> to vector<2x4x200xbf16>
    %cst_49 = arith.constant 0.000000e+00 : f32
    %89 = vector.broadcast %cst_49 : f32 to vector<2x200xf32>
    %c0_50 = arith.constant 0 : index
    %c0_51 = arith.constant 0 : index
    %90 = vector.load %arg9[%c0_50, %c0_51] : memref<1x200xf32, #tpu.memory_space<vmem>>, vector<1x200xf32>
    %91 = vector.broadcast %90 : vector<1x200xf32> to vector<2x200xf32>
    %92 = arith.addf %89, %91 : vector<2x200xf32>
    %93 = vector.extract_strided_slice %88 {offsets = [0, 0, 0], sizes = [2, 1, 200], strides = [1, 1, 1]} : vector<2x4x200xbf16> to vector<2x1x200xbf16>
    %94 = vector.shape_cast %93 : vector<2x1x200xbf16> to vector<2x200xbf16>
    %c0_52 = arith.constant 0 : index
    %c0_53 = arith.constant 0 : index
    %c0_54 = arith.constant 0 : index
    %95 = vector.load %arg8[%c0_52, %c0_53, %c0_54] : memref<4x200x200xbf16, #tpu.memory_space<vmem>>, vector<1x200x200xbf16>
    %96 = vector.shape_cast %95 : vector<1x200x200xbf16> to vector<200x200xbf16>
    %cst_55 = arith.constant dense<0.000000e+00> : vector<2x200xf32>
    %97 = tpu.matmul %94, %96, %cst_55 {dimension_numbers = #tpu.dot_dimension_numbers<[1], [0], [0], [1], [0, 0, 1, 1], [], []>} : vector<2x200xbf16>, vector<200x200xbf16>, vector<2x200xf32> -> vector<2x200xf32>
    %98 = arith.addf %92, %97 : vector<2x200xf32>
    %99 = vector.extract_strided_slice %88 {offsets = [0, 1, 0], sizes = [2, 1, 200], strides = [1, 1, 1]} : vector<2x4x200xbf16> to vector<2x1x200xbf16>
    %100 = vector.shape_cast %99 : vector<2x1x200xbf16> to vector<2x200xbf16>
    %c1_56 = arith.constant 1 : index
    %c0_57 = arith.constant 0 : index
    %c0_58 = arith.constant 0 : index
    %101 = vector.load %arg8[%c1_56, %c0_57, %c0_58] : memref<4x200x200xbf16, #tpu.memory_space<vmem>>, vector<1x200x200xbf16>
    %102 = vector.shape_cast %101 : vector<1x200x200xbf16> to vector<200x200xbf16>
    %cst_59 = arith.constant dense<0.000000e+00> : vector<2x200xf32>
    %103 = tpu.matmul %100, %102, %cst_59 {dimension_numbers = #tpu.dot_dimension_numbers<[1], [0], [0], [1], [0, 0, 1, 1], [], []>} : vector<2x200xbf16>, vector<200x200xbf16>, vector<2x200xf32> -> vector<2x200xf32>
    %104 = arith.addf %98, %103 : vector<2x200xf32>
    %105 = vector.extract_strided_slice %88 {offsets = [0, 2, 0], sizes = [2, 1, 200], strides = [1, 1, 1]} : vector<2x4x200xbf16> to vector<2x1x200xbf16>
    %106 = vector.shape_cast %105 : vector<2x1x200xbf16> to vector<2x200xbf16>
    %c2_60 = arith.constant 2 : index
    %c0_61 = arith.constant 0 : index
    %c0_62 = arith.constant 0 : index
    %107 = vector.load %arg8[%c2_60, %c0_61, %c0_62] : memref<4x200x200xbf16, #tpu.memory_space<vmem>>, vector<1x200x200xbf16>
    %108 = vector.shape_cast %107 : vector<1x200x200xbf16> to vector<200x200xbf16>
    %cst_63 = arith.constant dense<0.000000e+00> : vector<2x200xf32>
    %109 = tpu.matmul %106, %108, %cst_63 {dimension_numbers = #tpu.dot_dimension_numbers<[1], [0], [0], [1], [0, 0, 1, 1], [], []>} : vector<2x200xbf16>, vector<200x200xbf16>, vector<2x200xf32> -> vector<2x200xf32>
    %110 = arith.addf %104, %109 : vector<2x200xf32>
    %111 = vector.extract_strided_slice %88 {offsets = [0, 3, 0], sizes = [2, 1, 200], strides = [1, 1, 1]} : vector<2x4x200xbf16> to vector<2x1x200xbf16>
    %112 = vector.shape_cast %111 : vector<2x1x200xbf16> to vector<2x200xbf16>
    %c3 = arith.constant 3 : index
    %c0_64 = arith.constant 0 : index
    %c0_65 = arith.constant 0 : index
    %113 = vector.load %arg8[%c3, %c0_64, %c0_65] : memref<4x200x200xbf16, #tpu.memory_space<vmem>>, vector<1x200x200xbf16>
    %114 = vector.shape_cast %113 : vector<1x200x200xbf16> to vector<200x200xbf16>
    %cst_66 = arith.constant dense<0.000000e+00> : vector<2x200xf32>
    %115 = tpu.matmul %112, %114, %cst_66 {dimension_numbers = #tpu.dot_dimension_numbers<[1], [0], [0], [1], [0, 0, 1, 1], [], []>} : vector<2x200xbf16>, vector<200x200xbf16>, vector<2x200xf32> -> vector<2x200xf32>
    %116 = arith.addf %110, %115 : vector<2x200xf32>
    %cst_67 = arith.constant 0.000000e+00 : f32
    %117 = vector.broadcast %cst_67 : f32 to vector<2x200xf32>
    %118 = arith.maximumf %116, %117 : vector<2x200xf32>
    %119 = arith.truncf %118 : vector<2x200xf32> to vector<2x200xbf16>
    %c0_68 = arith.constant 0 : index
    %c0_69 = arith.constant 0 : index
    %120 = vector.load %arg10[%c0_68, %c0_69] : memref<200x128xbf16, #tpu.memory_space<vmem>>, vector<200x128xbf16>
    %cst_70 = arith.constant dense<0.000000e+00> : vector<2x128xf32>
    %121 = tpu.matmul %119, %120, %cst_70 {dimension_numbers = #tpu.dot_dimension_numbers<[1], [0], [0], [1], [0, 0, 1, 1], [], []>} : vector<2x200xbf16>, vector<200x128xbf16>, vector<2x128xf32> -> vector<2x128xf32>
    %c0_71 = arith.constant 0 : index
    %c0_72 = arith.constant 0 : index
    %122 = vector.load %arg11[%c0_71, %c0_72] : memref<1x128xf32, #tpu.memory_space<vmem>>, vector<1x128xf32>
    %123 = vector.broadcast %122 : vector<1x128xf32> to vector<2x128xf32>
    %124 = arith.addf %121, %123 : vector<2x128xf32>
    %c0_73 = arith.constant 0 : index
    %c0_74 = arith.constant 0 : index
    %125 = vector.load %arg12[%c0_73, %c0_74] : memref<2x128xf32, #tpu.memory_space<vmem>>, vector<2x128xf32>
    tpu.vector_store %arg12[%c0_73, %c0_74], %124 {strides = array<i32>} : memref<2x128xf32, #tpu.memory_space<vmem>>, vector<2x128xf32>,
    return
  }
  func.func @transform_0(%arg0: i32) -> (i32, i32, i32) {
    %c0_i32 = arith.constant 0 : i32
    %c0_i32_0 = arith.constant 0 : i32
    %c0_i32_1 = arith.constant 0 : i32
    return %arg0, %c0_i32, %c0_i32_0 : i32, i32, i32
  }
  func.func @transform_1(%arg0: i32) -> (i32, i32, i32) {
    %c0_i32 = arith.constant 0 : i32
    %c0_i32_0 = arith.constant 0 : i32
    %c0_i32_1 = arith.constant 0 : i32
    %c0_i32_2 = arith.constant 0 : i32
    return %c0_i32, %c0_i32_0, %c0_i32_1 : i32, i32, i32
  }
  func.func @transform_2(%arg0: i32) -> (i32, i32) {
    %c0_i32 = arith.constant 0 : i32
    %c0_i32_0 = arith.constant 0 : i32
    %c0_i32_1 = arith.constant 0 : i32
    return %c0_i32, %c0_i32_0 : i32, i32
  }
  func.func @transform_3(%arg0: i32) -> (i32, i32, i32) {
    %c0_i32 = arith.constant 0 : i32
    %c0_i32_0 = arith.constant 0 : i32
    %c0_i32_1 = arith.constant 0 : i32
    %c0_i32_2 = arith.constant 0 : i32
    return %c0_i32, %c0_i32_0, %c0_i32_1 : i32, i32, i32
  }
  func.func @transform_4(%arg0: i32) -> (i32, i32) {
    %c0_i32 = arith.constant 0 : i32
    %c0_i32_0 = arith.constant 0 : i32
    %c0_i32_1 = arith.constant 0 : i32
    return %c0_i32, %c0_i32_0 : i32, i32
  }
  func.func @transform_5(%arg0: i32) -> (i32, i32, i32) {
    %c0_i32 = arith.constant 0 : i32
    %c0_i32_0 = arith.constant 0 : i32
    %c0_i32_1 = arith.constant 0 : i32
    %c0_i32_2 = arith.constant 0 : i32
    return %c0_i32, %c0_i32_0, %c0_i32_1 : i32, i32, i32
  }
  func.func @transform_6(%arg0: i32) -> (i32, i32) {
    %c0_i32 = arith.constant 0 : i32
    %c0_i32_0 = arith.constant 0 : i32
    %c0_i32_1 = arith.constant 0 : i32
    return %c0_i32, %c0_i32_0 : i32, i32
  }
  func.func @transform_7(%arg0: i32) -> (i32, i32, i32) {
    %c0_i32 = arith.constant 0 : i32
    %c0_i32_0 = arith.constant 0 : i32
    %c0_i32_1 = arith.constant 0 : i32
    %c0_i32_2 = arith.constant 0 : i32
    return %c0_i32, %c0_i32_0, %c0_i32_1 : i32, i32, i32
  }
  func.func @transform_8(%arg0: i32) -> (i32, i32) {
    %c0_i32 = arith.constant 0 : i32
    %c0_i32_0 = arith.constant 0 : i32
    %c0_i32_1 = arith.constant 0 : i32
    return %c0_i32, %c0_i32_0 : i32, i32
  }
  func.func @transform_9(%arg0: i32) -> (i32, i32) {
    %c0_i32 = arith.constant 0 : i32
    %c0_i32_0 = arith.constant 0 : i32
    %c0_i32_1 = arith.constant 0 : i32
    return %c0_i32, %c0_i32_0 : i32, i32
  }
  func.func @transform_10(%arg0: i32) -> (i32, i32) {
    %c0_i32 = arith.constant 0 : i32
    %c0_i32_0 = arith.constant 0 : i32
    %c0_i32_1 = arith.constant 0 : i32
    return %c0_i32, %c0_i32_0 : i32, i32
  }
  func.func @transform_11(%arg0: i32) -> (i32, i32) {
    %c0_i32 = arith.constant 0 : i32
    %c0_i32_0 = arith.constant 0 : i32
    return %arg0, %c0_i32 : i32, i32
  }
}

</mosaic_0001>

<llo_original>
// kernel: cnn_forward.1
$region0: #{cnn_forward.1}
  #allocation0 [shape = 'u32[]', space=smem, size = 0x4, offset = 0x4, fixed_abs, tag = 'smem constant byte address 0x4 - core index']
  #allocation1 [shape = 'u32[144,128]{1,0:T(1,128)}', space=vmem, size = 0x12000, scoped, tag = 'internal scratch']
  %s0 = inlined_call_operand.vmem [shape: bf16[2,30,64], index: 0, kind: input, shape index: {}]
  %s1 = inlined_call_operand.vmem [shape: bf16[3,64,50], index: 1, kind: input, shape index: {}]
  %s2 = inlined_call_operand.vmem [shape: f32[1,50], index: 2, kind: input, shape index: {}]
  %s3 = inlined_call_operand.vmem [shape: bf16[3,50,100], index: 3, kind: input, shape index: {}]
  %s4 = inlined_call_operand.vmem [shape: f32[1,100], index: 4, kind: input, shape index: {}]
  %s5 = inlined_call_operand.vmem [shape: bf16[2,100,200], index: 5, kind: input, shape index: {}]
  %s6 = inlined_call_operand.vmem [shape: f32[1,200], index: 6, kind: input, shape index: {}]
  %s7 = inlined_call_operand.vmem [shape: bf16[4,200,200], index: 7, kind: input, shape index: {}]
  %s8 = inlined_call_operand.vmem [shape: f32[1,200], index: 8, kind: input, shape index: {}]
  %s9 = inlined_call_operand.vmem [shape: bf16[200,128], index: 9, kind: input, shape index: {}]
  %s10 = inlined_call_operand.vmem [shape: f32[1,128], index: 10, kind: input, shape index: {}]
  %s11 = inlined_call_operand.vmem [shape: f32[2,128], index: 11, kind: output, shape index: {}]
  %s12 = sld [smem:[#allocation0]]
  $region54: #{cnn_forward.1} parent=0
    _
  %s14 = ssub.s32 1, %s12
  %s15 = scalar_select 0, %s14, %s12
  // Predicated region
  $region2: #{cnn_forward.1} parent=0 // pred_check
    _
  $region3: #{cnn_forward.1} parent=0 // pred_check_branch
    %17 = sbr.rel (0) target = $region5
  $region4: #{cnn_forward.1} parent=0 // pred_region
    _
  $region5: #{cnn_forward.1} parent=0 // pred_fallthru
    _
  // Predicated region
  $region6: #{cnn_forward.1} parent=0 // pred_check
    _
  $region7: #{cnn_forward.1} parent=0 // pred_check_branch
    %19 = sbr.rel (0) target = $region9
  $region8: #{cnn_forward.1} parent=0 // pred_region
    _
  $region9: #{cnn_forward.1} parent=0 // pred_fallthru
    _
  // Predicated region
  $region10: #{cnn_forward.1} parent=0 // pred_check
    _
  $region11: #{cnn_forward.1} parent=0 // pred_check_branch
    %21 = sbr.rel (0) target = $region13
  $region12: #{cnn_forward.1} parent=0 // pred_region
    _
  $region13: #{cnn_forward.1} parent=0 // pred_fallthru
    _
  // Predicated region
  $region14: #{cnn_forward.1} parent=0 // pred_check
    _
  $region15: #{cnn_forward.1} parent=0 // pred_check_branch
    %23 = sbr.rel (0) target = $region17
  $region16: #{cnn_forward.1} parent=0 // pred_region
    _
  $region17: #{cnn_forward.1} parent=0 // pred_fallthru
    _
  // Predicated region
  $region18: #{cnn_forward.1} parent=0 // pred_check
    _
  $region19: #{cnn_forward.1} parent=0 // pred_check_branch
    %25 = sbr.rel (0) target = $region21
  $region20: #{cnn_forward.1} parent=0 // pred_region
    _
  $region21: #{cnn_forward.1} parent=0 // pred_fallthru
    _
  // Predicated region
  $region22: #{cnn_forward.1} parent=0 // pred_check
    _
  $region23: #{cnn_forward.1} parent=0 // pred_check_branch
    %27 = sbr.rel (0) target = $region25
  $region24: #{cnn_forward.1} parent=0 // pred_region
    _
  $region25: #{cnn_forward.1} parent=0 // pred_fallthru
    _
  // Predicated region
  $region26: #{cnn_forward.1} parent=0 // pred_check
    _
  $region27: #{cnn_forward.1} parent=0 // pred_check_branch
    %29 = sbr.rel (0) target = $region29
  $region28: #{cnn_forward.1} parent=0 // pred_region
    _
  $region29: #{cnn_forward.1} parent=0 // pred_fallthru
    _
  // Predicated region
  $region30: #{cnn_forward.1} parent=0 // pred_check
    _
  $region31: #{cnn_forward.1} parent=0 // pred_check_branch
    %31 = sbr.rel (0) target = $region33
  $region32: #{cnn_forward.1} parent=0 // pred_region
    _
  $region33: #{cnn_forward.1} parent=0 // pred_fallthru
    _
  // Predicated region
  $region34: #{cnn_forward.1} parent=0 // pred_check
    _
  $region35: #{cnn_forward.1} parent=0 // pred_check_branch
    %33 = sbr.rel (0) target = $region37
  $region36: #{cnn_forward.1} parent=0 // pred_region
    _
  $region37: #{cnn_forward.1} parent=0 // pred_fallthru
    _
  // Predicated region
  $region38: #{cnn_forward.1} parent=0 // pred_check
    _
  $region39: #{cnn_forward.1} parent=0 // pred_check_branch
    %35 = sbr.rel (0) target = $region41
  $region40: #{cnn_forward.1} parent=0 // pred_region
    _
  $region41: #{cnn_forward.1} parent=0 // pred_fallthru
    _
  // Predicated region
  $region42: #{cnn_forward.1} parent=0 // pred_check
    _
  $region43: #{cnn_forward.1} parent=0 // pred_check_branch
    %37 = sbr.rel (0) target = $region45
  $region44: #{cnn_forward.1} parent=0 // pred_region
    _
  $region45: #{cnn_forward.1} parent=0 // pred_fallthru
    _
  %v39 = vld [vmem:[%s0] sm:$0xf]
  %v40 = vld [vmem:[%s0 + $0x4] sm:$0xf]
  %v41 = vld [vmem:[%s0 + $0x8] sm:$0xf]
  %v42 = vld [vmem:[%s0 + $0xc] sm:$0x7]
  %v43 = vld [vmem:[%s0 + $0x10] sm:$0xf]
  %v44 = vld [vmem:[%s0 + $0x14] sm:$0xf]
  %v45 = vld [vmem:[%s0 + $0x18] sm:$0xf]
  %v46 = vld [vmem:[%s0 + $0x1c] sm:$0x7]
  %v55 = vunpack.c.l.b16 %v39
  %v56 = vunpack.c.l.b16 %v40
  %v57 = vunpack.c.l.b16 %v41
  %v58 = vunpack.c.l.b16 %v42
  %v59 = vunpack.c.l.b16 %v43
  %v60 = vunpack.c.l.b16 %v44
  %v61 = vunpack.c.l.b16 %v45
  %v62 = vunpack.c.l.b16 %v46
  %v63 = vpack.c.b16 %v56, %v55
  %v64 = vpack.c.b16 %v58, %v57
  %v65 = vpack.c.b16 %v60, %v59
  %v66 = vpack.c.b16 %v62, %v61
  %vm67 = vsmask.f32 256
  %v69 = vshrl.u32 %v63, 16
  %v71 = vrot.slane %v69, 7
  %v72 = vshll.u32 %v63, 16
  %v74 = vor.u32 %v71, %v72
  %v76 = vshrl.u32 %v64, 16
  %v78 = vrot.slane %v76, 7
  %v79 = vshll.u32 %v64, 16
  %v81 = vor.u32 %v78, %v79
  %v82 = vsel %vm67, %v71, %v81
  %v84 = vshrl.u32 %v65, 16
  %v86 = vrot.slane %v84, 7
  %v87 = vshll.u32 %v65, 16
  %v89 = vor.u32 %v86, %v87
  %v91 = vshrl.u32 %v66, 16
  %v93 = vrot.slane %v91, 7
  %v94 = vshll.u32 %v66, 16
  %v96 = vor.u32 %v93, %v94
  %v97 = vsel %vm67, %v86, %v96
  %vm102 = vcmask 1040384
  %vm103 = vmand %vm102, %vm67
  %v104 = vsel %vm103, 0, %v74
  %v105 = vsel %vm103, 0, %v89
  %vm106 = vcmask 1047552
  %vm107 = vsmask.f32 7424
  %vm108 = vmand %vm106, %vm107
  %v109 = vsel %vm108, %v82, 0
  %v110 = vsel %vm108, %v97, 0
  %v111 = vld [vmem:[%s2] sm:$0x1]
  %v113 = vlaneseq
  %v114 = vshrl.u32 %v113, 7
  %v115 = vsub.s32 0, %v114
  %v116 = vrot.slane %v111, %v115
  %v118 = vadd.f32 %v116, 0.0
  %v123 = vcombine.high %v104, %v104
  %v125 = vunpack.c.l.s4 1966171168
  %v126 = vunpack.c.0.s8 %v125
  %v127 = vlaneseq
  %v128 = vshrl.u32 %v127, 7
  %v129 = vsub.s32 %v126, %v128
  %v130 = vrot.slane %v104, %v129
  %v132 = vunpack.c.l.s4 1966171168
  %v133 = vunpack.c.0.s8 %v132
  %v134 = vlaneseq
  %v135 = vshrl.u32 %v134, 7
  %v136 = vsub.s32 %v133, %v135
  %v137 = vrot.slane %v123, %v136
  %v138 = vcombine.high %v130, %v130
  %v139 = vcombine.high %v137, %v137
  %v141 = vunpack.c.l.s4 1966171168
  %v142 = vunpack.c.0.s8 %v141
  %v143 = vlaneseq
  %v144 = vshrl.u32 %v143, 7
  %v145 = vsub.s32 %v142, %v144
  %v146 = vrot.slane %v130, %v145
  %v148 = vunpack.c.l.s4 1966171168
  %v149 = vunpack.c.0.s8 %v148
  %v150 = vlaneseq
  %v151 = vshrl.u32 %v150, 7
  %v152 = vsub.s32 %v149, %v151
  %v153 = vrot.slane %v137, %v152
  %v155 = vunpack.c.l.s4 1966171168
  %v156 = vunpack.c.0.s8 %v155
  %v157 = vlaneseq
  %v158 = vshrl.u32 %v157, 7
  %v159 = vsub.s32 %v156, %v158
  %v160 = vrot.slane %v138, %v159
  %v162 = vunpack.c.l.s4 1966171168
  %v163 = vunpack.c.0.s8 %v162
  %v164 = vlaneseq
  %v165 = vshrl.u32 %v164, 7
  %v166 = vsub.s32 %v163, %v165
  %v167 = vrot.slane %v139, %v166
  %v168 = vcombine.high %v146, %v146
  %v169 = vcombine.high %v153, %v153
  %v170 = vcombine.high %v160, %v160
  %v171 = vcombine.high %v167, %v167
  %v172 = vcombine.high %v109, %v109
  %v174 = vunpack.c.l.s4 1966171168
  %v175 = vunpack.c.0.s8 %v174
  %v176 = vlaneseq
  %v177 = vshrl.u32 %v176, 7
  %v178 = vsub.s32 %v175, %v177
  %v179 = vrot.slane %v109, %v178
  %v181 = vunpack.c.l.s4 1966171168
  %v182 = vunpack.c.0.s8 %v181
  %v183 = vlaneseq
  %v184 = vshrl.u32 %v183, 7
  %v185 = vsub.s32 %v182, %v184
  %v186 = vrot.slane %v172, %v185
  %v187 = vcombine.high %v179, %v179
  %v188 = vcombine.high %v186, %v186
  %v190 = vunpack.c.l.s4 1966171168
  %v191 = vunpack.c.0.s8 %v190
  %v192 = vlaneseq
  %v193 = vshrl.u32 %v192, 7
  %v194 = vsub.s32 %v191, %v193
  %v195 = vrot.slane %v179, %v194
  %v197 = vunpack.c.l.s4 1966171168
  %v198 = vunpack.c.0.s8 %v197
  %v199 = vlaneseq
  %v200 = vshrl.u32 %v199, 7
  %v201 = vsub.s32 %v198, %v200
  %v202 = vrot.slane %v186, %v201
  %v204 = vunpack.c.l.s4 1966171168
  %v205 = vunpack.c.0.s8 %v204
  %v206 = vlaneseq
  %v207 = vshrl.u32 %v206, 7
  %v208 = vsub.s32 %v205, %v207
  %v209 = vrot.slane %v187, %v208
  %v211 = vunpack.c.l.s4 1966171168
  %v212 = vunpack.c.0.s8 %v211
  %v213 = vlaneseq
  %v214 = vshrl.u32 %v213, 7
  %v215 = vsub.s32 %v212, %v214
  %v216 = vrot.slane %v188, %v215
  %v217 = vcombine.high %v195, %v195
  %v218 = vcombine.high %v202, %v202
  %v219 = vcombine.high %v209, %v209
  %v220 = vcombine.high %v105, %v105
  %v222 = vunpack.c.l.s4 1966171168
  %v223 = vunpack.c.0.s8 %v222
  %v224 = vlaneseq
  %v225 = vshrl.u32 %v224, 7
  %v226 = vsub.s32 %v223, %v225
  %v227 = vrot.slane %v105, %v226
  %v229 = vunpack.c.l.s4 1966171168
  %v230 = vunpack.c.0.s8 %v229
  %v231 = vlaneseq
  %v232 = vshrl.u32 %v231, 7
  %v233 = vsub.s32 %v230, %v232
  %v234 = vrot.slane %v220, %v233
  %v235 = vcombine.high %v227, %v227
  %v236 = vcombine.high %v234, %v234
  %v238 = vunpack.c.l.s4 1966171168
  %v239 = vunpack.c.0.s8 %v238
  %v240 = vlaneseq
  %v241 = vshrl.u32 %v240, 7
  %v242 = vsub.s32 %v239, %v241
  %v243 = vrot.slane %v227, %v242
  %v245 = vunpack.c.l.s4 1966171168
  %v246 = vunpack.c.0.s8 %v245
  %v247 = vlaneseq
  %v248 = vshrl.u32 %v247, 7
  %v249 = vsub.s32 %v246, %v248
  %v250 = vrot.slane %v234, %v249
  %v252 = vunpack.c.l.s4 1966171168
  %v253 = vunpack.c.0.s8 %v252
  %v254 = vlaneseq
  %v255 = vshrl.u32 %v254, 7
  %v256 = vsub.s32 %v253, %v255
  %v257 = vrot.slane %v235, %v256
  %v259 = vunpack.c.l.s4 1966171168
  %v260 = vunpack.c.0.s8 %v259
  %v261 = vlaneseq
  %v262 = vshrl.u32 %v261, 7
  %v263 = vsub.s32 %v260, %v262
  %v264 = vrot.slane %v236, %v263
  %v265 = vcombine.high %v243, %v243
  %v266 = vcombine.high %v250, %v250
  %v267 = vcombine.high %v257, %v257
  %v268 = vcombine.high %v264, %v264
  %v269 = vcombine.high %v110, %v110
  %v271 = vunpack.c.l.s4 1966171168
  %v272 = vunpack.c.0.s8 %v271
  %v273 = vlaneseq
  %v274 = vshrl.u32 %v273, 7
  %v275 = vsub.s32 %v272, %v274
  %v276 = vrot.slane %v110, %v275
  %v278 = vunpack.c.l.s4 1966171168
  %v279 = vunpack.c.0.s8 %v278
  %v280 = vlaneseq
  %v281 = vshrl.u32 %v280, 7
  %v282 = vsub.s32 %v279, %v281
  %v283 = vrot.slane %v269, %v282
  %v284 = vcombine.high %v276, %v276
  %v285 = vcombine.high %v283, %v283
  %v287 = vunpack.c.l.s4 1966171168
  %v288 = vunpack.c.0.s8 %v287
  %v289 = vlaneseq
  %v290 = vshrl.u32 %v289, 7
  %v291 = vsub.s32 %v288, %v290
  %v292 = vrot.slane %v276, %v291
  %v294 = vunpack.c.l.s4 1966171168
  %v295 = vunpack.c.0.s8 %v294
  %v296 = vlaneseq
  %v297 = vshrl.u32 %v296, 7
  %v298 = vsub.s32 %v295, %v297
  %v299 = vrot.slane %v283, %v298
  %v301 = vunpack.c.l.s4 1966171168
  %v302 = vunpack.c.0.s8 %v301
  %v303 = vlaneseq
  %v304 = vshrl.u32 %v303, 7
  %v305 = vsub.s32 %v302, %v304
  %v306 = vrot.slane %v284, %v305
  %v308 = vunpack.c.l.s4 1966171168
  %v309 = vunpack.c.0.s8 %v308
  %v310 = vlaneseq
  %v311 = vshrl.u32 %v310, 7
  %v312 = vsub.s32 %v309, %v311
  %v313 = vrot.slane %v285, %v312
  %v314 = vcombine.high %v292, %v292
  %v315 = vcombine.high %v299, %v299
  %v316 = vcombine.high %v306, %v306
  %v317 = vld [vmem:[%s1] sm:$0xf]
  %v318 = vld [vmem:[%s1 + $0x4] sm:$0xf]
  %v319 = vld [vmem:[%s1 + $0x8] sm:$0xf]
  %v320 = vld [vmem:[%s1 + $0xc] sm:$0xf]
  %v321 = vld [vmem:[%s1 + $0x10] sm:$0xf]
  %v322 = vld [vmem:[%s1 + $0x14] sm:$0xf]
  %v323 = vld [vmem:[%s1 + $0x18] sm:$0xf]
  %v324 = vld [vmem:[%s1 + $0x1c] sm:$0xf]
  %v325 = vcombine.low %v146, %v160
  %v326 = vcombine.low %v168, %v170
  %v327 = vcombine.low %v153, %v167
  %v328 = vcombine.low %v169, %v171
  %v330 = vunpack.c.l.s4 1966171168
  %v331 = vunpack.c.0.s8 %v330
  %v332 = vlaneseq
  %v333 = vshrl.u32 %v332, 7
  %v334 = vsub.s32 %v331, %v333
  %v335 = vrot.slane %v325, %v334
  %v337 = vunpack.c.l.s4 1966171168
  %v338 = vunpack.c.0.s8 %v337
  %v339 = vlaneseq
  %v340 = vshrl.u32 %v339, 7
  %v341 = vsub.s32 %v338, %v340
  %v342 = vrot.slane %v326, %v341
  %v344 = vunpack.c.l.s4 1966171168
  %v345 = vunpack.c.0.s8 %v344
  %v346 = vlaneseq
  %v347 = vshrl.u32 %v346, 7
  %v348 = vsub.s32 %v345, %v347
  %v349 = vrot.slane %v327, %v348
  %v351 = vunpack.c.l.s4 1966171168
  %v352 = vunpack.c.0.s8 %v351
  %v353 = vlaneseq
  %v354 = vshrl.u32 %v353, 7
  %v355 = vsub.s32 %v352, %v354
  %v356 = vrot.slane %v328, %v355
  %v357 = vcombine.low %v335, %v342
  %v358 = vcombine.low %v349, %v356
  %v360 = vunpack.c.l.s4 1966171168
  %v361 = vunpack.c.0.s8 %v360
  %v362 = vlaneseq
  %v363 = vshrl.u32 %v362, 7
  %v364 = vsub.s32 %v361, %v363
  %v365 = vrot.slane %v357, %v364
  %v367 = vunpack.c.l.s4 1966171168
  %v368 = vunpack.c.0.s8 %v367
  %v369 = vlaneseq
  %v370 = vshrl.u32 %v369, 7
  %v371 = vsub.s32 %v368, %v370
  %v372 = vrot.slane %v358, %v371
  %v373 = vcombine.low %v365, %v372
  %v374 = vcombine.low %v195, %v209
  %v375 = vcombine.low %v217, %v219
  %v376 = vcombine.low %v202, %v216
  %v377 = vcombine.low %v218, %v243
  %v379 = vunpack.c.l.s4 1966171168
  %v380 = vunpack.c.0.s8 %v379
  %v381 = vlaneseq
  %v382 = vshrl.u32 %v381, 7
  %v383 = vsub.s32 %v380, %v382
  %v384 = vrot.slane %v374, %v383
  %v386 = vunpack.c.l.s4 1966171168
  %v387 = vunpack.c.0.s8 %v386
  %v388 = vlaneseq
  %v389 = vshrl.u32 %v388, 7
  %v390 = vsub.s32 %v387, %v389
  %v391 = vrot.slane %v375, %v390
  %v393 = vunpack.c.l.s4 1966171168
  %v394 = vunpack.c.0.s8 %v393
  %v395 = vlaneseq
  %v396 = vshrl.u32 %v395, 7
  %v397 = vsub.s32 %v394, %v396
  %v398 = vrot.slane %v376, %v397
  %v400 = vunpack.c.l.s4 1966171168
  %v401 = vunpack.c.0.s8 %v400
  %v402 = vlaneseq
  %v403 = vshrl.u32 %v402, 7
  %v404 = vsub.s32 %v401, %v403
  %v405 = vrot.slane %v377, %v404
  %v406 = vcombine.low %v384, %v391
  %v407 = vcombine.low %v398, %v405
  %v409 = vunpack.c.l.s4 1966171168
  %v410 = vunpack.c.0.s8 %v409
  %v411 = vlaneseq
  %v412 = vshrl.u32 %v411, 7
  %v413 = vsub.s32 %v410, %v412
  %v414 = vrot.slane %v406, %v413
  %v416 = vunpack.c.l.s4 1966171168
  %v417 = vunpack.c.0.s8 %v416
  %v418 = vlaneseq
  %v419 = vshrl.u32 %v418, 7
  %v420 = vsub.s32 %v417, %v419
  %v421 = vrot.slane %v407, %v420
  %v422 = vcombine.low %v414, %v421
  %v423 = vcombine.low %v257, %v265
  %v424 = vcombine.low %v267, %v250
  %v425 = vcombine.low %v264, %v266
  %v426 = vcombine.low %v268, %v292
  %v428 = vunpack.c.l.s4 1966171168
  %v429 = vunpack.c.0.s8 %v428
  %v430 = vlaneseq
  %v431 = vshrl.u32 %v430, 7
  %v432 = vsub.s32 %v429, %v431
  %v433 = vrot.slane %v423, %v432
  %v435 = vunpack.c.l.s4 1966171168
  %v436 = vunpack.c.0.s8 %v435
  %v437 = vlaneseq
  %v438 = vshrl.u32 %v437, 7
  %v439 = vsub.s32 %v436, %v438
  %v440 = vrot.slane %v424, %v439
  %v442 = vunpack.c.l.s4 1966171168
  %v443 = vunpack.c.0.s8 %v442
  %v444 = vlaneseq
  %v445 = vshrl.u32 %v444, 7
  %v446 = vsub.s32 %v443, %v445
  %v447 = vrot.slane %v425, %v446
  %v449 = vunpack.c.l.s4 1966171168
  %v450 = vunpack.c.0.s8 %v449
  %v451 = vlaneseq
  %v452 = vshrl.u32 %v451, 7
  %v453 = vsub.s32 %v450, %v452
  %v454 = vrot.slane %v426, %v453
  %v455 = vcombine.low %v433, %v440
  %v456 = vcombine.low %v447, %v454
  %v458 = vunpack.c.l.s4 1966171168
  %v459 = vunpack.c.0.s8 %v458
  %v460 = vlaneseq
  %v461 = vshrl.u32 %v460, 7
  %v462 = vsub.s32 %v459, %v461
  %v463 = vrot.slane %v455, %v462
  %v465 = vunpack.c.l.s4 1966171168
  %v466 = vunpack.c.0.s8 %v465
  %v467 = vlaneseq
  %v468 = vshrl.u32 %v467, 7
  %v469 = vsub.s32 %v466, %v468
  %v470 = vrot.slane %v456, %v469
  %v471 = vcombine.low %v463, %v470
  %v472 = vcombine.low %v306, %v314
  %v473 = vcombine.low %v316, %v299
  %v474 = vcombine.low %v313, %v315
  %v476 = vunpack.c.l.s4 1966171168
  %v477 = vunpack.c.0.s8 %v476
  %v478 = vlaneseq
  %v479 = vshrl.u32 %v478, 7
  %v480 = vsub.s32 %v477, %v479
  %v481 = vrot.slane %v472, %v480
  %v483 = vunpack.c.l.s4 1966171168
  %v484 = vunpack.c.0.s8 %v483
  %v485 = vlaneseq
  %v486 = vshrl.u32 %v485, 7
  %v487 = vsub.s32 %v484, %v486
  %v488 = vrot.slane %v473, %v487
  %v490 = vunpack.c.l.s4 1966171168
  %v491 = vunpack.c.0.s8 %v490
  %v492 = vlaneseq
  %v493 = vshrl.u32 %v492, 7
  %v494 = vsub.s32 %v491, %v493
  %v495 = vrot.slane %v474, %v494
  %v496 = vcombine.low %v481, %v488
  %v498 = vunpack.c.l.s4 1966171168
  %v499 = vunpack.c.0.s8 %v498
  %v500 = vlaneseq
  %v501 = vshrl.u32 %v500, 7
  %v502 = vsub.s32 %v499, %v501
  %v503 = vrot.slane %v496, %v502
  %v505 = vunpack.c.l.s4 1966171168
  %v506 = vunpack.c.0.s8 %v505
  %v507 = vlaneseq
  %v508 = vshrl.u32 %v507, 7
  %v509 = vsub.s32 %v506, %v508
  %v510 = vrot.slane %v495, %v509
  %v511 = vcombine.low %v503, %v510
  %v520 = vunpack.c.l.b16 %v317
  %v521 = vunpack.c.l.b16 %v318
  %v522 = vunpack.c.l.b16 %v319
  %v523 = vunpack.c.l.b16 %v320
  %v524 = vunpack.c.l.b16 %v321
  %v525 = vunpack.c.l.b16 %v322
  %v526 = vunpack.c.l.b16 %v323
  %v527 = vunpack.c.l.b16 %v324
  %v528 = vpack.c.b16 %v521, %v520
  %v529 = vpack.c.b16 %v523, %v522
  %v530 = vpack.c.b16 %v525, %v524
  %v531 = vpack.c.b16 %v527, %v526
  %vm536 = vcmask 523264
  %v538 = vsel %vm536, %v373, 0
  %v541 = vsel %vm536, %v422, 0
  %v544 = vsel %vm536, %v471, 0
  %v547 = vsel %vm536, %v511, 0
  %549 = vmatprep.subr.bf16.mxu0 0
  %550 = vmatpush1.bf16.msra.mxu0 %v528
  %551 = vmatprep.subr.bf16.mxu0 0
  %552 = vmatpush1.bf16.msra.mxu0 %v529
  %553 = vmatprep.subr.bf16.mxu0 0
  %554 = vmatpush1.bf16.msra.mxu0 %v530
  %555 = vmatprep.subr.bf16.mxu0 0
  %556 = vmatpush1.bf16.msra.mxu0 %v531
  %557 = vmatprep.subr.bf16.mxu0 0
  %558 = vmatpush1.bf16.msra.mxu0 0
  %559 = vmatprep.subr.bf16.mxu0 0
  %560 = vmatpush1.bf16.msra.mxu0 0
  %561 = vmatprep.subr.bf16.mxu0 0
  %562 = vmatpush1.bf16.msra.mxu0 0
  %563 = vmatprep.subr.bf16.mxu0 0
  %564 = vmatpush1.bf16.msra.mxu0 0
  %565 = vmatprep.subr.bf16.mxu0 0
  %566 = vmatpush1.bf16.msra.mxu0 0
  %567 = vmatprep.subr.bf16.mxu0 0
  %568 = vmatpush1.bf16.msra.mxu0 0
  %569 = vmatprep.subr.bf16.mxu0 0
  %570 = vmatpush1.bf16.msra.mxu0 0
  %571 = vmatprep.subr.bf16.mxu0 0
  %572 = vmatpush1.bf16.msra.mxu0 0
  %573 = vmatprep.subr.bf16.mxu0 0
  %574 = vmatpush1.bf16.msra.mxu0 0
  %575 = vmatprep.subr.bf16.mxu0 0
  %576 = vmatpush1.bf16.msra.mxu0 0
  %577 = vmatprep.subr.bf16.mxu0 0
  %578 = vmatpush1.bf16.msra.mxu0 0
  %579 = vmatprep.subr.bf16.mxu0 0
  %580 = vmatpush1.bf16.msra.mxu0 0
  %581 = vmatprep.mubr.bf16.mxu0 0
  %582 = vmatmul.mubr.bf16.gmra.mrb[0].mxu0 %v538
  %v583 = vpop.f32.mrb[0].mxu0
  %v584 = vadd.f32 0.0, %v583
  %v585 = vpop.f32.mrb[0].mxu0
  %v586 = vpop.f32.mrb[0].mxu0
  %v587 = vadd.f32 0.0, %v586
  %v588 = vpop.f32.mrb[0].mxu0
  %589 = vmatprep.mubr.bf16.mxu0 0
  %590 = vmatmul.mubr.bf16.gmra.mrb[0].mxu0 %v541
  %v591 = vpop.f32.mrb[0].mxu0
  %v592 = vadd.f32 0.0, %v591
  %v593 = vpop.f32.mrb[0].mxu0
  %v594 = vpop.f32.mrb[0].mxu0
  %v595 = vadd.f32 0.0, %v594
  %v596 = vpop.f32.mrb[0].mxu0
  %597 = vmatprep.mubr.bf16.mxu0 0
  %598 = vmatmul.mubr.bf16.gmra.mrb[0].mxu0 %v544
  %v599 = vpop.f32.mrb[0].mxu0
  %v600 = vadd.f32 0.0, %v599
  %v601 = vpop.f32.mrb[0].mxu0
  %v602 = vpop.f32.mrb[0].mxu0
  %v603 = vadd.f32 0.0, %v602
  %v604 = vpop.f32.mrb[0].mxu0
  %605 = vmatprep.mubr.bf16.mxu0 0
  %606 = vmatmul.mubr.bf16.gmra.mrb[0].mxu0 %v547
  %v607 = vpop.f32.mrb[0].mxu0
  %v608 = vadd.f32 0.0, %v607
  %v609 = vpop.f32.mrb[0].mxu0
  %v610 = vpop.f32.mrb[0].mxu0
  %v611 = vadd.f32 0.0, %v610
  %v612 = vpop.f32.mrb[0].mxu0
  %613 = vdwg.mxu0
  %v614 = vadd.f32 %v118, %v584
  %v615 = vadd.f32 %v118, %v587
  %v616 = vadd.f32 %v118, %v592
  %v617 = vadd.f32 %v118, %v595
  %v618 = vadd.f32 %v118, %v600
  %v619 = vadd.f32 %v118, %v603
  %v620 = vadd.f32 %v118, %v608
  %v621 = vadd.f32 %v118, %v611
  %v622 = vcombine.high %v216, %v216
  %v623 = vcombine.high %v313, %v313
  %vm624 = vsmask.f32 1284
  %vm625 = vmor %vm67, %vm624
  %vm626 = vsmask.f32 2312
  %vm627 = vmor %vm625, %vm626
  %vm628 = vsmask.f32 3340
  %vm629 = vmor %vm627, %vm628
  %vm630 = vsmask.f32 4368
  %vm631 = vmor %vm629, %vm630
  %vm632 = vsmask.f32 5396
  %vm633 = vmor %vm631, %vm632
  %vm634 = vsmask.f32 6424
  %vm635 = vmor %vm633, %vm634
  %vm636 = vsmask.f32 7452
  %vm637 = vmor %vm635, %vm636
  %v639 = vshrl.u32 %v146, 16
  %v641 = vrot.slane %v639, 7
  %v642 = vrot.slane %v641, 1
  %v644 = vshll.u32 %v160, 16
  %v646 = vsel %vm637, %v642, %v644
  %v647 = vshrl.u32 %v160, 16
  %v649 = vrot.slane %v647, 7
  %v650 = vrot.slane %v649, 1
  %v652 = vshll.u32 %v168, 16
  %v654 = vsel %vm637, %v650, %v652
  %v655 = vshrl.u32 %v168, 16
  %v657 = vrot.slane %v655, 7
  %v658 = vrot.slane %v657, 1
  %v660 = vshll.u32 %v170, 16
  %v662 = vsel %vm637, %v658, %v660
  %v663 = vshrl.u32 %v170, 16
  %v665 = vrot.slane %v663, 7
  %v666 = vrot.slane %v665, 1
  %v668 = vshll.u32 %v153, 16
  %v670 = vsel %vm637, %v666, %v668
  %v671 = vshrl.u32 %v153, 16
  %v673 = vrot.slane %v671, 7
  %v674 = vrot.slane %v673, 1
  %v676 = vshll.u32 %v167, 16
  %v678 = vsel %vm637, %v674, %v676
  %v679 = vshrl.u32 %v167, 16
  %v681 = vrot.slane %v679, 7
  %v682 = vrot.slane %v681, 1
  %v684 = vshll.u32 %v169, 16
  %v686 = vsel %vm637, %v682, %v684
  %v687 = vshrl.u32 %v169, 16
  %v689 = vrot.slane %v687, 7
  %v690 = vrot.slane %v689, 1
  %v692 = vshll.u32 %v171, 16
  %v694 = vsel %vm637, %v690, %v692
  %v695 = vshrl.u32 %v171, 16
  %v697 = vrot.slane %v695, 7
  %v698 = vrot.slane %v697, 1
  %v700 = vshll.u32 %v195, 16
  %v702 = vsel %vm637, %v698, %v700
  %v703 = vshrl.u32 %v195, 16
  %v705 = vrot.slane %v703, 7
  %v706 = vrot.slane %v705, 1
  %v708 = vshll.u32 %v209, 16
  %v710 = vsel %vm637, %v706, %v708
  %v711 = vshrl.u32 %v209, 16
  %v713 = vrot.slane %v711, 7
  %v714 = vrot.slane %v713, 1
  %v716 = vshll.u32 %v217, 16
  %v718 = vsel %vm637, %v714, %v716
  %v719 = vshrl.u32 %v217, 16
  %v721 = vrot.slane %v719, 7
  %v722 = vrot.slane %v721, 1
  %v724 = vshll.u32 %v219, 16
  %v726 = vsel %vm637, %v722, %v724
  %v727 = vshrl.u32 %v219, 16
  %v729 = vrot.slane %v727, 7
  %v730 = vrot.slane %v729, 1
  %v732 = vshll.u32 %v202, 16
  %v734 = vsel %vm637, %v730, %v732
  %v735 = vshrl.u32 %v202, 16
  %v737 = vrot.slane %v735, 7
  %v738 = vrot.slane %v737, 1
  %v740 = vshll.u32 %v216, 16
  %v742 = vsel %vm637, %v738, %v740
  %v743 = vshrl.u32 %v216, 16
  %v745 = vrot.slane %v743, 7
  %v746 = vrot.slane %v745, 1
  %v748 = vshll.u32 %v218, 16
  %v750 = vsel %vm637, %v746, %v748
  %v751 = vshrl.u32 %v218, 16
  %v753 = vrot.slane %v751, 7
  %v754 = vrot.slane %v753, 1
  %v756 = vshll.u32 %v622, 16
  %v758 = vsel %vm637, %v754, %v756
  %v760 = vshrl.u32 %v243, 16
  %v762 = vrot.slane %v760, 7
  %v763 = vrot.slane %v762, 1
  %v765 = vshll.u32 %v257, 16
  %v767 = vsel %vm637, %v763, %v765
  %v768 = vshrl.u32 %v257, 16
  %v770 = vrot.slane %v768, 7
  %v771 = vrot.slane %v770, 1
  %v773 = vshll.u32 %v265, 16
  %v775 = vsel %vm637, %v771, %v773
  %v776 = vshrl.u32 %v265, 16
  %v778 = vrot.slane %v776, 7
  %v779 = vrot.slane %v778, 1
  %v781 = vshll.u32 %v267, 16
  %v783 = vsel %vm637, %v779, %v781
  %v784 = vshrl.u32 %v267, 16
  %v786 = vrot.slane %v784, 7
  %v787 = vrot.slane %v786, 1
  %v789 = vshll.u32 %v250, 16
  %v791 = vsel %vm637, %v787, %v789
  %v792 = vshrl.u32 %v250, 16
  %v794 = vrot.slane %v792, 7
  %v795 = vrot.slane %v794, 1
  %v797 = vshll.u32 %v264, 16
  %v799 = vsel %vm637, %v795, %v797
  %v800 = vshrl.u32 %v264, 16
  %v802 = vrot.slane %v800, 7
  %v803 = vrot.slane %v802, 1
  %v805 = vshll.u32 %v266, 16
  %v807 = vsel %vm637, %v803, %v805
  %v808 = vshrl.u32 %v266, 16
  %v810 = vrot.slane %v808, 7
  %v811 = vrot.slane %v810, 1
  %v813 = vshll.u32 %v268, 16
  %v815 = vsel %vm637, %v811, %v813
  %v816 = vshrl.u32 %v268, 16
  %v818 = vrot.slane %v816, 7
  %v819 = vrot.slane %v818, 1
  %v821 = vshll.u32 %v292, 16
  %v823 = vsel %vm637, %v819, %v821
  %v824 = vshrl.u32 %v292, 16
  %v826 = vrot.slane %v824, 7
  %v827 = vrot.slane %v826, 1
  %v829 = vshll.u32 %v306, 16
  %v831 = vsel %vm637, %v827, %v829
  %v832 = vshrl.u32 %v306, 16
  %v834 = vrot.slane %v832, 7
  %v835 = vrot.slane %v834, 1
  %v837 = vshll.u32 %v314, 16
  %v839 = vsel %vm637, %v835, %v837
  %v840 = vshrl.u32 %v314, 16
  %v842 = vrot.slane %v840, 7
  %v843 = vrot.slane %v842, 1
  %v845 = vshll.u32 %v316, 16
  %v847 = vsel %vm637, %v843, %v845
  %v848 = vshrl.u32 %v316, 16
  %v850 = vrot.slane %v848, 7
  %v851 = vrot.slane %v850, 1
  %v853 = vshll.u32 %v299, 16
  %v855 = vsel %vm637, %v851, %v853
  %v856 = vshrl.u32 %v299, 16
  %v858 = vrot.slane %v856, 7
  %v859 = vrot.slane %v858, 1
  %v861 = vshll.u32 %v313, 16
  %v863 = vsel %vm637, %v859, %v861
  %v864 = vshrl.u32 %v313, 16
  %v866 = vrot.slane %v864, 7
  %v867 = vrot.slane %v866, 1
  %v869 = vshll.u32 %v315, 16
  %v871 = vsel %vm637, %v867, %v869
  %v872 = vshrl.u32 %v315, 16
  %v874 = vrot.slane %v872, 7
  %v875 = vrot.slane %v874, 1
  %v877 = vshll.u32 %v623, 16
  %v879 = vsel %vm637, %v875, %v877
  %s880 = scalar_lea.vmem %s1, 32
  %v881 = vld [vmem:[%s880] sm:$0xf]
  %v882 = vld [vmem:[%s880 + $0x4] sm:$0xf]
  %v883 = vld [vmem:[%s880 + $0x8] sm:$0xf]
  %v884 = vld [vmem:[%s880 + $0xc] sm:$0xf]
  %v885 = vld [vmem:[%s880 + $0x10] sm:$0xf]
  %v886 = vld [vmem:[%s880 + $0x14] sm:$0xf]
  %v887 = vld [vmem:[%s880 + $0x18] sm:$0xf]
  %v888 = vld [vmem:[%s880 + $0x1c] sm:$0xf]
  %v889 = vcombine.low %v646, %v654
  %v890 = vcombine.low %v662, %v670
  %v891 = vcombine.low %v678, %v686
  %v892 = vcombine.low %v694, %v702
  %v894 = vunpack.c.l.s4 1966171168
  %v895 = vunpack.c.0.s8 %v894
  %v896 = vlaneseq
  %v897 = vshrl.u32 %v896, 7
  %v898 = vsub.s32 %v895, %v897
  %v899 = vrot.slane %v889, %v898
  %v901 = vunpack.c.l.s4 1966171168
  %v902 = vunpack.c.0.s8 %v901
  %v903 = vlaneseq
  %v904 = vshrl.u32 %v903, 7
  %v905 = vsub.s32 %v902, %v904
  %v906 = vrot.slane %v890, %v905
  %v908 = vunpack.c.l.s4 1966171168
  %v909 = vunpack.c.0.s8 %v908
  %v910 = vlaneseq
  %v911 = vshrl.u32 %v910, 7
  %v912 = vsub.s32 %v909, %v911
  %v913 = vrot.slane %v891, %v912
  %v915 = vunpack.c.l.s4 1966171168
  %v916 = vunpack.c.0.s8 %v915
  %v917 = vlaneseq
  %v918 = vshrl.u32 %v917, 7
  %v919 = vsub.s32 %v916, %v918
  %v920 = vrot.slane %v892, %v919
  %v921 = vcombine.low %v899, %v906
  %v922 = vcombine.low %v913, %v920
  %v924 = vunpack.c.l.s4 1966171168
  %v925 = vunpack.c.0.s8 %v924
  %v926 = vlaneseq
  %v927 = vshrl.u32 %v926, 7
  %v928 = vsub.s32 %v925, %v927
  %v929 = vrot.slane %v921, %v928
  %v931 = vunpack.c.l.s4 1966171168
  %v932 = vunpack.c.0.s8 %v931
  %v933 = vlaneseq
  %v934 = vshrl.u32 %v933, 7
  %v935 = vsub.s32 %v932, %v934
  %v936 = vrot.slane %v922, %v935
  %v937 = vcombine.low %v929, %v936
  %v938 = vcombine.low %v710, %v718
  %v939 = vcombine.low %v726, %v734
  %v940 = vcombine.low %v742, %v750
  %v941 = vcombine.low %v758, %v767
  %v943 = vunpack.c.l.s4 1966171168
  %v944 = vunpack.c.0.s8 %v943
  %v945 = vlaneseq
  %v946 = vshrl.u32 %v945, 7
  %v947 = vsub.s32 %v944, %v946
  %v948 = vrot.slane %v938, %v947
  %v950 = vunpack.c.l.s4 1966171168
  %v951 = vunpack.c.0.s8 %v950
  %v952 = vlaneseq
  %v953 = vshrl.u32 %v952, 7
  %v954 = vsub.s32 %v951, %v953
  %v955 = vrot.slane %v939, %v954
  %v957 = vunpack.c.l.s4 1966171168
  %v958 = vunpack.c.0.s8 %v957
  %v959 = vlaneseq
  %v960 = vshrl.u32 %v959, 7
  %v961 = vsub.s32 %v958, %v960
  %v962 = vrot.slane %v940, %v961
  %v964 = vunpack.c.l.s4 1966171168
  %v965 = vunpack.c.0.s8 %v964
  %v966 = vlaneseq
  %v967 = vshrl.u32 %v966, 7
  %v968 = vsub.s32 %v965, %v967
  %v969 = vrot.slane %v941, %v968
  %v970 = vcombine.low %v948, %v955
  %v971 = vcombine.low %v962, %v969
  %v973 = vunpack.c.l.s4 1966171168
  %v974 = vunpack.c.0.s8 %v973
  %v975 = vlaneseq
  %v976 = vshrl.u32 %v975, 7
  %v977 = vsub.s32 %v974, %v976
  %v978 = vrot.slane %v970, %v977
  %v980 = vunpack.c.l.s4 1966171168
  %v981 = vunpack.c.0.s8 %v980
  %v982 = vlaneseq
  %v983 = vshrl.u32 %v982, 7
  %v984 = vsub.s32 %v981, %v983
  %v985 = vrot.slane %v971, %v984
  %v986 = vcombine.low %v978, %v985
  %v987 = vcombine.low %v775, %v783
  %v988 = vcombine.low %v791, %v799
  %v989 = vcombine.low %v807, %v815
  %v990 = vcombine.low %v823, %v831
  %v992 = vunpack.c.l.s4 1966171168
  %v993 = vunpack.c.0.s8 %v992
  %v994 = vlaneseq
  %v995 = vshrl.u32 %v994, 7
  %v996 = vsub.s32 %v993, %v995
  %v997 = vrot.slane %v987, %v996
  %v999 = vunpack.c.l.s4 1966171168
  %v1000 = vunpack.c.0.s8 %v999
  %v1001 = vlaneseq
  %v1002 = vshrl.u32 %v1001, 7
  %v1003 = vsub.s32 %v1000, %v1002
  %v1004 = vrot.slane %v988, %v1003
  %v1006 = vunpack.c.l.s4 1966171168
  %v1007 = vunpack.c.0.s8 %v1006
  %v1008 = vlaneseq
  %v1009 = vshrl.u32 %v1008, 7
  %v1010 = vsub.s32 %v1007, %v1009
  %v1011 = vrot.slane %v989, %v1010
  %v1013 = vunpack.c.l.s4 1966171168
  %v1014 = vunpack.c.0.s8 %v1013
  %v1015 = vlaneseq
  %v1016 = vshrl.u32 %v1015, 7
  %v1017 = vsub.s32 %v1014, %v1016
  %v1018 = vrot.slane %v990, %v1017
  %v1019 = vcombine.low %v997, %v1004
  %v1020 = vcombine.low %v1011, %v1018
  %v1022 = vunpack.c.l.s4 1966171168
  %v1023 = vunpack.c.0.s8 %v1022
  %v1024 = vlaneseq
  %v1025 = vshrl.u32 %v1024, 7
  %v1026 = vsub.s32 %v1023, %v1025
  %v1027 = vrot.slane %v1019, %v1026
  %v1029 = vunpack.c.l.s4 1966171168
  %v1030 = vunpack.c.0.s8 %v1029
  %v1031 = vlaneseq
  %v1032 = vshrl.u32 %v1031, 7
  %v1033 = vsub.s32 %v1030, %v1032
  %v1034 = vrot.slane %v1020, %v1033
  %v1035 = vcombine.low %v1027, %v1034
  %v1036 = vcombine.low %v839, %v847
  %v1037 = vcombine.low %v855, %v863
  %v1038 = vcombine.low %v871, %v879
  %v1040 = vunpack.c.l.s4 1966171168
  %v1041 = vunpack.c.0.s8 %v1040
  %v1042 = vlaneseq
  %v1043 = vshrl.u32 %v1042, 7
  %v1044 = vsub.s32 %v1041, %v1043
  %v1045 = vrot.slane %v1036, %v1044
  %v1047 = vunpack.c.l.s4 1966171168
  %v1048 = vunpack.c.0.s8 %v1047
  %v1049 = vlaneseq
  %v1050 = vshrl.u32 %v1049, 7
  %v1051 = vsub.s32 %v1048, %v1050
  %v1052 = vrot.slane %v1037, %v1051
  %v1054 = vunpack.c.l.s4 1966171168
  %v1055 = vunpack.c.0.s8 %v1054
  %v1056 = vlaneseq
  %v1057 = vshrl.u32 %v1056, 7
  %v1058 = vsub.s32 %v1055, %v1057
  %v1059 = vrot.slane %v1038, %v1058
  %v1060 = vcombine.low %v1045, %v1052
  %v1062 = vunpack.c.l.s4 1966171168
  %v1063 = vunpack.c.0.s8 %v1062
  %v1064 = vlaneseq
  %v1065 = vshrl.u32 %v1064, 7
  %v1066 = vsub.s32 %v1063, %v1065
  %v1067 = vrot.slane %v1060, %v1066
  %v1069 = vunpack.c.l.s4 1966171168
  %v1070 = vunpack.c.0.s8 %v1069
  %v1071 = vlaneseq
  %v1072 = vshrl.u32 %v1071, 7
  %v1073 = vsub.s32 %v1070, %v1072
  %v1074 = vrot.slane %v1059, %v1073
  %v1075 = vcombine.low %v1067, %v1074
  %v1084 = vunpack.c.l.b16 %v881
  %v1085 = vunpack.c.l.b16 %v882
  %v1086 = vunpack.c.l.b16 %v883
  %v1087 = vunpack.c.l.b16 %v884
  %v1088 = vunpack.c.l.b16 %v885
  %v1089 = vunpack.c.l.b16 %v886
  %v1090 = vunpack.c.l.b16 %v887
  %v1091 = vunpack.c.l.b16 %v888
  %v1092 = vpack.c.b16 %v1085, %v1084
  %v1093 = vpack.c.b16 %v1087, %v1086
  %v1094 = vpack.c.b16 %v1089, %v1088
  %v1095 = vpack.c.b16 %v1091, %v1090
  %v1101 = vsel %vm536, %v937, 0
  %v1104 = vsel %vm536, %v986, 0
  %v1107 = vsel %vm536, %v1035, 0
  %v1110 = vsel %vm536, %v1075, 0
  %1112 = vmatprep.subr.bf16.mxu0 0
  %1113 = vmatpush1.bf16.msra.mxu0 %v1092
  %1114 = vmatprep.subr.bf16.mxu0 0
  %1115 = vmatpush1.bf16.msra.mxu0 %v1093
  %1116 = vmatprep.subr.bf16.mxu0 0
  %1117 = vmatpush1.bf16.msra.mxu0 %v1094
  %1118 = vmatprep.subr.bf16.mxu0 0
  %1119 = vmatpush1.bf16.msra.mxu0 %v1095
  %1120 = vmatprep.subr.bf16.mxu0 0
  %1121 = vmatpush1.bf16.msra.mxu0 0
  %1122 = vmatprep.subr.bf16.mxu0 0
  %1123 = vmatpush1.bf16.msra.mxu0 0
  %1124 = vmatprep.subr.bf16.mxu0 0
  %1125 = vmatpush1.bf16.msra.mxu0 0
  %1126 = vmatprep.subr.bf16.mxu0 0
  %1127 = vmatpush1.bf16.msra.mxu0 0
  %1128 = vmatprep.subr.bf16.mxu0 0
  %1129 = vmatpush1.bf16.msra.mxu0 0
  %1130 = vmatprep.subr.bf16.mxu0 0
  %1131 = vmatpush1.bf16.msra.mxu0 0
  %1132 = vmatprep.subr.bf16.mxu0 0
  %1133 = vmatpush1.bf16.msra.mxu0 0
  %1134 = vmatprep.subr.bf16.mxu0 0
  %1135 = vmatpush1.bf16.msra.mxu0 0
  %1136 = vmatprep.subr.bf16.mxu0 0
  %1137 = vmatpush1.bf16.msra.mxu0 0
  %1138 = vmatprep.subr.bf16.mxu0 0
  %1139 = vmatpush1.bf16.msra.mxu0 0
  %1140 = vmatprep.subr.bf16.mxu0 0
  %1141 = vmatpush1.bf16.msra.mxu0 0
  %1142 = vmatprep.subr.bf16.mxu0 0
  %1143 = vmatpush1.bf16.msra.mxu0 0
  %1144 = vmatprep.mubr.bf16.mxu0 0
  %1145 = vmatmul.mubr.bf16.gmra.mrb[0].mxu0 %v1101
  %v1146 = vpop.f32.mrb[0].mxu0
  %v1147 = vadd.f32 0.0, %v1146
  %v1148 = vpop.f32.mrb[0].mxu0
  %v1149 = vpop.f32.mrb[0].mxu0
  %v1150 = vadd.f32 0.0, %v1149
  %v1151 = vpop.f32.mrb[0].mxu0
  %1152 = vmatprep.mubr.bf16.mxu0 0
  %1153 = vmatmul.mubr.bf16.gmra.mrb[0].mxu0 %v1104
  %v1154 = vpop.f32.mrb[0].mxu0
  %v1155 = vadd.f32 0.0, %v1154
  %v1156 = vpop.f32.mrb[0].mxu0
  %v1157 = vpop.f32.mrb[0].mxu0
  %v1158 = vadd.f32 0.0, %v1157
  %v1159 = vpop.f32.mrb[0].mxu0
  %1160 = vmatprep.mubr.bf16.mxu0 0
  %1161 = vmatmul.mubr.bf16.gmra.mrb[0].mxu0 %v1107
  %v1162 = vpop.f32.mrb[0].mxu0
  %v1163 = vadd.f32 0.0, %v1162
  %v1164 = vpop.f32.mrb[0].mxu0
  %v1165 = vpop.f32.mrb[0].mxu0
  %v1166 = vadd.f32 0.0, %v1165
  %v1167 = vpop.f32.mrb[0].mxu0
  %1168 = vmatprep.mubr.bf16.mxu0 0
  %1169 = vmatmul.mubr.bf16.gmra.mrb[0].mxu0 %v1110
  %v1170 = vpop.f32.mrb[0].mxu0
  %v1171 = vadd.f32 0.0, %v1170
  %v1172 = vpop.f32.mrb[0].mxu0
  %v1173 = vpop.f32.mrb[0].mxu0
  %v1174 = vadd.f32 0.0, %v1173
  %v1175 = vpop.f32.mrb[0].mxu0
  %1176 = vdwg.mxu0
  %v1177 = vadd.f32 %v614, %v1147
  %v1178 = vadd.f32 %v615, %v1150
  %v1179 = vadd.f32 %v616, %v1155
  %v1180 = vadd.f32 %v617, %v1158
  %v1181 = vadd.f32 %v618, %v1163
  %v1182 = vadd.f32 %v619, %v1166
  %v1183 = vadd.f32 %v620, %v1171
  %v1184 = vadd.f32 %v621, %v1174
  %s1185 = scalar_lea.vmem %s1, 64
  %v1186 = vld [vmem:[%s1185] sm:$0xf]
  %v1187 = vld [vmem:[%s1185 + $0x4] sm:$0xf]
  %v1188 = vld [vmem:[%s1185 + $0x8] sm:$0xf]
  %v1189 = vld [vmem:[%s1185 + $0xc] sm:$0xf]
  %v1190 = vld [vmem:[%s1185 + $0x10] sm:$0xf]
  %v1191 = vld [vmem:[%s1185 + $0x14] sm:$0xf]
  %v1192 = vld [vmem:[%s1185 + $0x18] sm:$0xf]
  %v1193 = vld [vmem:[%s1185 + $0x1c] sm:$0xf]
  %v1194 = vcombine.low %v160, %v168
  %v1195 = vcombine.low %v170, %v153
  %v1196 = vcombine.low %v167, %v169
  %v1197 = vcombine.low %v171, %v195
  %v1199 = vunpack.c.l.s4 1966171168
  %v1200 = vunpack.c.0.s8 %v1199
  %v1201 = vlaneseq
  %v1202 = vshrl.u32 %v1201, 7
  %v1203 = vsub.s32 %v1200, %v1202
  %v1204 = vrot.slane %v1194, %v1203
  %v1206 = vunpack.c.l.s4 1966171168
  %v1207 = vunpack.c.0.s8 %v1206
  %v1208 = vlaneseq
  %v1209 = vshrl.u32 %v1208, 7
  %v1210 = vsub.s32 %v1207, %v1209
  %v1211 = vrot.slane %v1195, %v1210
  %v1213 = vunpack.c.l.s4 1966171168
  %v1214 = vunpack.c.0.s8 %v1213
  %v1215 = vlaneseq
  %v1216 = vshrl.u32 %v1215, 7
  %v1217 = vsub.s32 %v1214, %v1216
  %v1218 = vrot.slane %v1196, %v1217
  %v1220 = vunpack.c.l.s4 1966171168
  %v1221 = vunpack.c.0.s8 %v1220
  %v1222 = vlaneseq
  %v1223 = vshrl.u32 %v1222, 7
  %v1224 = vsub.s32 %v1221, %v1223
  %v1225 = vrot.slane %v1197, %v1224
  %v1226 = vcombine.low %v1204, %v1211
  %v1227 = vcombine.low %v1218, %v1225
  %v1229 = vunpack.c.l.s4 1966171168
  %v1230 = vunpack.c.0.s8 %v1229
  %v1231 = vlaneseq
  %v1232 = vshrl.u32 %v1231, 7
  %v1233 = vsub.s32 %v1230, %v1232
  %v1234 = vrot.slane %v1226, %v1233
  %v1236 = vunpack.c.l.s4 1966171168
  %v1237 = vunpack.c.0.s8 %v1236
  %v1238 = vlaneseq
  %v1239 = vshrl.u32 %v1238, 7
  %v1240 = vsub.s32 %v1237, %v1239
  %v1241 = vrot.slane %v1227, %v1240
  %v1242 = vcombine.low %v1234, %v1241
  %v1243 = vcombine.low %v209, %v217
  %v1244 = vcombine.low %v219, %v202
  %v1245 = vcombine.low %v216, %v218
  %v1246 = vcombine.low %v622, %v257
  %v1248 = vunpack.c.l.s4 1966171168
  %v1249 = vunpack.c.0.s8 %v1248
  %v1250 = vlaneseq
  %v1251 = vshrl.u32 %v1250, 7
  %v1252 = vsub.s32 %v1249, %v1251
  %v1253 = vrot.slane %v1243, %v1252
  %v1255 = vunpack.c.l.s4 1966171168
  %v1256 = vunpack.c.0.s8 %v1255
  %v1257 = vlaneseq
  %v1258 = vshrl.u32 %v1257, 7
  %v1259 = vsub.s32 %v1256, %v1258
  %v1260 = vrot.slane %v1244, %v1259
  %v1262 = vunpack.c.l.s4 1966171168
  %v1263 = vunpack.c.0.s8 %v1262
  %v1264 = vlaneseq
  %v1265 = vshrl.u32 %v1264, 7
  %v1266 = vsub.s32 %v1263, %v1265
  %v1267 = vrot.slane %v1245, %v1266
  %v1269 = vunpack.c.l.s4 1966171168
  %v1270 = vunpack.c.0.s8 %v1269
  %v1271 = vlaneseq
  %v1272 = vshrl.u32 %v1271, 7
  %v1273 = vsub.s32 %v1270, %v1272
  %v1274 = vrot.slane %v1246, %v1273
  %v1275 = vcombine.low %v1253, %v1260
  %v1276 = vcombine.low %v1267, %v1274
  %v1278 = vunpack.c.l.s4 1966171168
  %v1279 = vunpack.c.0.s8 %v1278
  %v1280 = vlaneseq
  %v1281 = vshrl.u32 %v1280, 7
  %v1282 = vsub.s32 %v1279, %v1281
  %v1283 = vrot.slane %v1275, %v1282
  %v1285 = vunpack.c.l.s4 1966171168
  %v1286 = vunpack.c.0.s8 %v1285
  %v1287 = vlaneseq
  %v1288 = vshrl.u32 %v1287, 7
  %v1289 = vsub.s32 %v1286, %v1288
  %v1290 = vrot.slane %v1276, %v1289
  %v1291 = vcombine.low %v1283, %v1290
  %v1292 = vcombine.low %v265, %v267
  %v1293 = vcombine.low %v250, %v264
  %v1294 = vcombine.low %v266, %v268
  %v1295 = vcombine.low %v292, %v306
  %v1297 = vunpack.c.l.s4 1966171168
  %v1298 = vunpack.c.0.s8 %v1297
  %v1299 = vlaneseq
  %v1300 = vshrl.u32 %v1299, 7
  %v1301 = vsub.s32 %v1298, %v1300
  %v1302 = vrot.slane %v1292, %v1301
  %v1304 = vunpack.c.l.s4 1966171168
  %v1305 = vunpack.c.0.s8 %v1304
  %v1306 = vlaneseq
  %v1307 = vshrl.u32 %v1306, 7
  %v1308 = vsub.s32 %v1305, %v1307
  %v1309 = vrot.slane %v1293, %v1308
  %v1311 = vunpack.c.l.s4 1966171168
  %v1312 = vunpack.c.0.s8 %v1311
  %v1313 = vlaneseq
  %v1314 = vshrl.u32 %v1313, 7
  %v1315 = vsub.s32 %v1312, %v1314
  %v1316 = vrot.slane %v1294, %v1315
  %v1318 = vunpack.c.l.s4 1966171168
  %v1319 = vunpack.c.0.s8 %v1318
  %v1320 = vlaneseq
  %v1321 = vshrl.u32 %v1320, 7
  %v1322 = vsub.s32 %v1319, %v1321
  %v1323 = vrot.slane %v1295, %v1322
  %v1324 = vcombine.low %v1302, %v1309
  %v1325 = vcombine.low %v1316, %v1323
  %v1327 = vunpack.c.l.s4 1966171168
  %v1328 = vunpack.c.0.s8 %v1327
  %v1329 = vlaneseq
  %v1330 = vshrl.u32 %v1329, 7
  %v1331 = vsub.s32 %v1328, %v1330
  %v1332 = vrot.slane %v1324, %v1331
  %v1334 = vunpack.c.l.s4 1966171168
  %v1335 = vunpack.c.0.s8 %v1334
  %v1336 = vlaneseq
  %v1337 = vshrl.u32 %v1336, 7
  %v1338 = vsub.s32 %v1335, %v1337
  %v1339 = vrot.slane %v1325, %v1338
  %v1340 = vcombine.low %v1332, %v1339
  %v1341 = vcombine.low %v314, %v316
  %v1342 = vcombine.low %v299, %v313
  %v1343 = vcombine.low %v315, %v623
  %v1345 = vunpack.c.l.s4 1966171168
  %v1346 = vunpack.c.0.s8 %v1345
  %v1347 = vlaneseq
  %v1348 = vshrl.u32 %v1347, 7
  %v1349 = vsub.s32 %v1346, %v1348
  %v1350 = vrot.slane %v1341, %v1349
  %v1352 = vunpack.c.l.s4 1966171168
  %v1353 = vunpack.c.0.s8 %v1352
  %v1354 = vlaneseq
  %v1355 = vshrl.u32 %v1354, 7
  %v1356 = vsub.s32 %v1353, %v1355
  %v1357 = vrot.slane %v1342, %v1356
  %v1359 = vunpack.c.l.s4 1966171168
  %v1360 = vunpack.c.0.s8 %v1359
  %v1361 = vlaneseq
  %v1362 = vshrl.u32 %v1361, 7
  %v1363 = vsub.s32 %v1360, %v1362
  %v1364 = vrot.slane %v1343, %v1363
  %v1365 = vcombine.low %v1350, %v1357
  %v1367 = vunpack.c.l.s4 1966171168
  %v1368 = vunpack.c.0.s8 %v1367
  %v1369 = vlaneseq
  %v1370 = vshrl.u32 %v1369, 7
  %v1371 = vsub.s32 %v1368, %v1370
  %v1372 = vrot.slane %v1365, %v1371
  %v1374 = vunpack.c.l.s4 1966171168
  %v1375 = vunpack.c.0.s8 %v1374
  %v1376 = vlaneseq
  %v1377 = vshrl.u32 %v1376, 7
  %v1378 = vsub.s32 %v1375, %v1377
  %v1379 = vrot.slane %v1364, %v1378
  %v1380 = vcombine.low %v1372, %v1379
  %v1389 = vunpack.c.l.b16 %v1186
  %v1390 = vunpack.c.l.b16 %v1187
  %v1391 = vunpack.c.l.b16 %v1188
  %v1392 = vunpack.c.l.b16 %v1189
  %v1393 = vunpack.c.l.b16 %v1190
  %v1394 = vunpack.c.l.b16 %v1191
  %v1395 = vunpack.c.l.b16 %v1192
  %v1396 = vunpack.c.l.b16 %v1193
  %v1397 = vpack.c.b16 %v1390, %v1389
  %v1398 = vpack.c.b16 %v1392, %v1391
  %v1399 = vpack.c.b16 %v1394, %v1393
  %v1400 = vpack.c.b16 %v1396, %v1395
  %v1406 = vsel %vm536, %v1242, 0
  %v1409 = vsel %vm536, %v1291, 0
  %v1412 = vsel %vm536, %v1340, 0
  %v1415 = vsel %vm536, %v1380, 0
  %1417 = vmatprep.subr.bf16.mxu0 0
  %1418 = vmatpush1.bf16.msra.mxu0 %v1397
  %1419 = vmatprep.subr.bf16.mxu0 0
  %1420 = vmatpush1.bf16.msra.mxu0 %v1398
  %1421 = vmatprep.subr.bf16.mxu0 0
  %1422 = vmatpush1.bf16.msra.mxu0 %v1399
  %1423 = vmatprep.subr.bf16.mxu0 0
  %1424 = vmatpush1.bf16.msra.mxu0 %v1400
  %1425 = vmatprep.subr.bf16.mxu0 0
  %1426 = vmatpush1.bf16.msra.mxu0 0
  %1427 = vmatprep.subr.bf16.mxu0 0
  %1428 = vmatpush1.bf16.msra.mxu0 0
  %1429 = vmatprep.subr.bf16.mxu0 0
  %1430 = vmatpush1.bf16.msra.mxu0 0
  %1431 = vmatprep.subr.bf16.mxu0 0
  %1432 = vmatpush1.bf16.msra.mxu0 0
  %1433 = vmatprep.subr.bf16.mxu0 0
  %1434 = vmatpush1.bf16.msra.mxu0 0
  %1435 = vmatprep.subr.bf16.mxu0 0
  %1436 = vmatpush1.bf16.msra.mxu0 0
  %1437 = vmatprep.subr.bf16.mxu0 0
  %1438 = vmatpush1.bf16.msra.mxu0 0
  %1439 = vmatprep.subr.bf16.mxu0 0
  %1440 = vmatpush1.bf16.msra.mxu0 0
  %1441 = vmatprep.subr.bf16.mxu0 0
  %1442 = vmatpush1.bf16.msra.mxu0 0
  %1443 = vmatprep.subr.bf16.mxu0 0
  %1444 = vmatpush1.bf16.msra.mxu0 0
  %1445 = vmatprep.subr.bf16.mxu0 0
  %1446 = vmatpush1.bf16.msra.mxu0 0
  %1447 = vmatprep.subr.bf16.mxu0 0
  %1448 = vmatpush1.bf16.msra.mxu0 0
  %1449 = vmatprep.mubr.bf16.mxu0 0
  %1450 = vmatmul.mubr.bf16.gmra.mrb[0].mxu0 %v1406
  %v1451 = vpop.f32.mrb[0].mxu0
  %v1452 = vadd.f32 0.0, %v1451
  %v1453 = vpop.f32.mrb[0].mxu0
  %v1454 = vpop.f32.mrb[0].mxu0
  %v1455 = vadd.f32 0.0, %v1454
  %v1456 = vpop.f32.mrb[0].mxu0
  %1457 = vmatprep.mubr.bf16.mxu0 0
  %1458 = vmatmul.mubr.bf16.gmra.mrb[0].mxu0 %v1409
  %v1459 = vpop.f32.mrb[0].mxu0
  %v1460 = vadd.f32 0.0, %v1459
  %v1461 = vpop.f32.mrb[0].mxu0
  %v1462 = vpop.f32.mrb[0].mxu0
  %v1463 = vadd.f32 0.0, %v1462
  %v1464 = vpop.f32.mrb[0].mxu0
  %1465 = vmatprep.mubr.bf16.mxu0 0
  %1466 = vmatmul.mubr.bf16.gmra.mrb[0].mxu0 %v1412
  %v1467 = vpop.f32.mrb[0].mxu0
  %v1468 = vadd.f32 0.0, %v1467
  %v1469 = vpop.f32.mrb[0].mxu0
  %v1470 = vpop.f32.mrb[0].mxu0
  %v1471 = vadd.f32 0.0, %v1470
  %v1472 = vpop.f32.mrb[0].mxu0
  %1473 = vmatprep.mubr.bf16.mxu0 0
  %1474 = vmatmul.mubr.bf16.gmra.mrb[0].mxu0 %v1415
  %v1475 = vpop.f32.mrb[0].mxu0
  %v1476 = vadd.f32 0.0, %v1475
  %v1477 = vpop.f32.mrb[0].mxu0
  %v1478 = vpop.f32.mrb[0].mxu0
  %v1479 = vadd.f32 0.0, %v1478
  %v1480 = vpop.f32.mrb[0].mxu0
  %1481 = vdwg.mxu0
  %v1482 = vadd.f32 %v1177, %v1452
  %v1483 = vadd.f32 %v1178, %v1455
  %v1484 = vadd.f32 %v1179, %v1460
  %v1485 = vadd.f32 %v1180, %v1463
  %v1486 = vadd.f32 %v1181, %v1468
  %v1487 = vadd.f32 %v1182, %v1471
  %v1488 = vadd.f32 %v1183, %v1476
  %v1489 = vadd.f32 %v1184, %v1479
  %v1498 = vcombine.high %v1482, %v1482
  %v1500 = vunpack.c.l.s4 1983009808
  %v1501 = vunpack.c.0.s8 %v1500
  %v1502 = vlaneseq
  %v1503 = vshrl.u32 %v1502, 7
  %v1504 = vsub.s32 %v1501, %v1503
  %v1505 = vrot.slane %v1482, %v1504
  %v1507 = vunpack.c.l.s4 1983009808
  %v1508 = vunpack.c.0.s8 %v1507
  %v1509 = vlaneseq
  %v1510 = vshrl.u32 %v1509, 7
  %v1511 = vsub.s32 %v1508, %v1510
  %v1512 = vrot.slane %v1498, %v1511
  %v1513 = vcombine.high %v1505, %v1505
  %v1514 = vcombine.high %v1512, %v1512
  %v1515 = vcombine.high %v1483, %v1483
  %v1517 = vunpack.c.l.s4 1983009808
  %v1518 = vunpack.c.0.s8 %v1517
  %v1519 = vlaneseq
  %v1520 = vshrl.u32 %v1519, 7
  %v1521 = vsub.s32 %v1518, %v1520
  %v1522 = vrot.slane %v1483, %v1521
  %v1524 = vunpack.c.l.s4 1983009808
  %v1525 = vunpack.c.0.s8 %v1524
  %v1526 = vlaneseq
  %v1527 = vshrl.u32 %v1526, 7
  %v1528 = vsub.s32 %v1525, %v1527
  %v1529 = vrot.slane %v1515, %v1528
  %v1530 = vcombine.high %v1522, %v1522
  %v1531 = vcombine.high %v1529, %v1529
  %v1532 = vcombine.high %v1484, %v1484
  %v1534 = vunpack.c.l.s4 1983009808
  %v1535 = vunpack.c.0.s8 %v1534
  %v1536 = vlaneseq
  %v1537 = vshrl.u32 %v1536, 7
  %v1538 = vsub.s32 %v1535, %v1537
  %v1539 = vrot.slane %v1484, %v1538
  %v1541 = vunpack.c.l.s4 1983009808
  %v1542 = vunpack.c.0.s8 %v1541
  %v1543 = vlaneseq
  %v1544 = vshrl.u32 %v1543, 7
  %v1545 = vsub.s32 %v1542, %v1544
  %v1546 = vrot.slane %v1532, %v1545
  %v1547 = vcombine.high %v1539, %v1539
  %v1548 = vcombine.high %v1546, %v1546
  %v1549 = vcombine.high %v1485, %v1485
  %v1551 = vunpack.c.l.s4 1983009808
  %v1552 = vunpack.c.0.s8 %v1551
  %v1553 = vlaneseq
  %v1554 = vshrl.u32 %v1553, 7
  %v1555 = vsub.s32 %v1552, %v1554
  %v1556 = vrot.slane %v1485, %v1555
  %v1558 = vunpack.c.l.s4 1983009808
  %v1559 = vunpack.c.0.s8 %v1558
  %v1560 = vlaneseq
  %v1561 = vshrl.u32 %v1560, 7
  %v1562 = vsub.s32 %v1559, %v1561
  %v1563 = vrot.slane %v1549, %v1562
  %v1564 = vcombine.high %v1556, %v1556
  %v1565 = vcombine.high %v1563, %v1563
  %v1566 = vcombine.high %v1486, %v1486
  %v1568 = vunpack.c.l.s4 1983009808
  %v1569 = vunpack.c.0.s8 %v1568
  %v1570 = vlaneseq
  %v1571 = vshrl.u32 %v1570, 7
  %v1572 = vsub.s32 %v1569, %v1571
  %v1573 = vrot.slane %v1486, %v1572
  %v1575 = vunpack.c.l.s4 1983009808
  %v1576 = vunpack.c.0.s8 %v1575
  %v1577 = vlaneseq
  %v1578 = vshrl.u32 %v1577, 7
  %v1579 = vsub.s32 %v1576, %v1578
  %v1580 = vrot.slane %v1566, %v1579
  %v1581 = vcombine.high %v1573, %v1573
  %v1582 = vcombine.high %v1580, %v1580
  %v1583 = vcombine.high %v1487, %v1487
  %v1585 = vunpack.c.l.s4 1983009808
  %v1586 = vunpack.c.0.s8 %v1585
  %v1587 = vlaneseq
  %v1588 = vshrl.u32 %v1587, 7
  %v1589 = vsub.s32 %v1586, %v1588
  %v1590 = vrot.slane %v1487, %v1589
  %v1592 = vunpack.c.l.s4 1983009808
  %v1593 = vunpack.c.0.s8 %v1592
  %v1594 = vlaneseq
  %v1595 = vshrl.u32 %v1594, 7
  %v1596 = vsub.s32 %v1593, %v1595
  %v1597 = vrot.slane %v1583, %v1596
  %v1598 = vcombine.high %v1590, %v1590
  %v1599 = vcombine.high %v1597, %v1597
  %v1600 = vcombine.high %v1488, %v1488
  %v1602 = vunpack.c.l.s4 1983009808
  %v1603 = vunpack.c.0.s8 %v1602
  %v1604 = vlaneseq
  %v1605 = vshrl.u32 %v1604, 7
  %v1606 = vsub.s32 %v1603, %v1605
  %v1607 = vrot.slane %v1488, %v1606
  %v1609 = vunpack.c.l.s4 1983009808
  %v1610 = vunpack.c.0.s8 %v1609
  %v1611 = vlaneseq
  %v1612 = vshrl.u32 %v1611, 7
  %v1613 = vsub.s32 %v1610, %v1612
  %v1614 = vrot.slane %v1600, %v1613
  %v1615 = vcombine.high %v1607, %v1607
  %v1616 = vcombine.high %v1614, %v1614
  %v1618 = vunpack.c.l.s4 1983009808
  %v1619 = vunpack.c.0.s8 %v1618
  %v1620 = vlaneseq
  %v1621 = vshrl.u32 %v1620, 7
  %v1622 = vsub.s32 %v1619, %v1621
  %v1623 = vrot.slane %v1489, %v1622
  %v1624 = vcombine.high %v1623, %v1623
  %v1655 = vmax.f32 %v1505, 0.0
  %v1656 = vmax.f32 %v1513, 0.0
  %v1657 = vmax.f32 %v1512, 0.0
  %v1658 = vmax.f32 %v1514, 0.0
  %v1659 = vmax.f32 %v1522, 0.0
  %v1660 = vmax.f32 %v1530, 0.0
  %v1661 = vmax.f32 %v1529, 0.0
  %v1662 = vmax.f32 %v1531, 0.0
  %v1663 = vmax.f32 %v1539, 0.0
  %v1664 = vmax.f32 %v1547, 0.0
  %v1665 = vmax.f32 %v1546, 0.0
  %v1666 = vmax.f32 %v1548, 0.0
  %v1667 = vmax.f32 %v1556, 0.0
  %v1668 = vmax.f32 %v1564, 0.0
  %v1669 = vmax.f32 %v1563, 0.0
  %v1670 = vmax.f32 %v1565, 0.0
  %v1671 = vmax.f32 %v1573, 0.0
  %v1672 = vmax.f32 %v1581, 0.0
  %v1673 = vmax.f32 %v1580, 0.0
  %v1674 = vmax.f32 %v1582, 0.0
  %v1675 = vmax.f32 %v1590, 0.0
  %v1676 = vmax.f32 %v1598, 0.0
  %v1677 = vmax.f32 %v1597, 0.0
  %v1678 = vmax.f32 %v1599, 0.0
  %v1679 = vmax.f32 %v1607, 0.0
  %v1680 = vmax.f32 %v1615, 0.0
  %v1681 = vmax.f32 %v1614, 0.0
  %v1682 = vmax.f32 %v1616, 0.0
  %v1683 = vmax.f32 %v1623, 0.0
  %v1684 = vmax.f32 %v1624, 0.0
  %vm1685 = vcmask 402432
  %v1686 = vsel %vm1685, %v1655, -inf
  %v1687 = vrot.slane %v1686, 4
  %v1688 = vmax.f32 %v1686, %v1687
  %v1689 = vrot.slane %v1688, 2
  %v1690 = vmax.f32 %v1688, %v1689
  %v1691 = vrot.slane %v1690, 1
  %v1692 = vmax.f32 %v1690, %v1691
  %v1693 = vsel %vm1685, %v1656, -inf
  %v1694 = vrot.slane %v1693, 4
  %v1695 = vmax.f32 %v1693, %v1694
  %v1696 = vrot.slane %v1695, 2
  %v1697 = vmax.f32 %v1695, %v1696
  %v1698 = vrot.slane %v1697, 1
  %v1699 = vmax.f32 %v1697, %v1698
  %v1700 = vsel %vm1685, %v1657, -inf
  %v1701 = vrot.slane %v1700, 4
  %v1702 = vmax.f32 %v1700, %v1701
  %v1703 = vrot.slane %v1702, 2
  %v1704 = vmax.f32 %v1702, %v1703
  %v1705 = vrot.slane %v1704, 1
  %v1706 = vmax.f32 %v1704, %v1705
  %v1707 = vsel %vm1685, %v1658, -inf
  %v1708 = vrot.slane %v1707, 4
  %v1709 = vmax.f32 %v1707, %v1708
  %v1710 = vrot.slane %v1709, 2
  %v1711 = vmax.f32 %v1709, %v1710
  %v1712 = vrot.slane %v1711, 1
  %v1713 = vmax.f32 %v1711, %v1712
  %v1714 = vsel %vm1685, %v1659, -inf
  %v1715 = vrot.slane %v1714, 4
  %v1716 = vmax.f32 %v1714, %v1715
  %v1717 = vrot.slane %v1716, 2
  %v1718 = vmax.f32 %v1716, %v1717
  %v1719 = vrot.slane %v1718, 1
  %v1720 = vmax.f32 %v1718, %v1719
  %v1721 = vsel %vm1685, %v1660, -inf
  %v1722 = vrot.slane %v1721, 4
  %v1723 = vmax.f32 %v1721, %v1722
  %v1724 = vrot.slane %v1723, 2
  %v1725 = vmax.f32 %v1723, %v1724
  %v1726 = vrot.slane %v1725, 1
  %v1727 = vmax.f32 %v1725, %v1726
  %v1728 = vsel %vm1685, %v1661, -inf
  %v1729 = vrot.slane %v1728, 4
  %v1730 = vmax.f32 %v1728, %v1729
  %v1731 = vrot.slane %v1730, 2
  %v1732 = vmax.f32 %v1730, %v1731
  %v1733 = vrot.slane %v1732, 1
  %v1734 = vmax.f32 %v1732, %v1733
  %v1735 = vsel %vm1685, %v1662, -inf
  %v1736 = vrot.slane %v1735, 4
  %v1737 = vmax.f32 %v1735, %v1736
  %v1738 = vrot.slane %v1737, 2
  %v1739 = vmax.f32 %v1737, %v1738
  %v1740 = vrot.slane %v1739, 1
  %v1741 = vmax.f32 %v1739, %v1740
  %v1742 = vsel %vm1685, %v1663, -inf
  %v1743 = vrot.slane %v1742, 4
  %v1744 = vmax.f32 %v1742, %v1743
  %v1745 = vrot.slane %v1744, 2
  %v1746 = vmax.f32 %v1744, %v1745
  %v1747 = vrot.slane %v1746, 1
  %v1748 = vmax.f32 %v1746, %v1747
  %v1749 = vsel %vm1685, %v1664, -inf
  %v1750 = vrot.slane %v1749, 4
  %v1751 = vmax.f32 %v1749, %v1750
  %v1752 = vrot.slane %v1751, 2
  %v1753 = vmax.f32 %v1751, %v1752
  %v1754 = vrot.slane %v1753, 1
  %v1755 = vmax.f32 %v1753, %v1754
  %v1756 = vsel %vm1685, %v1665, -inf
  %v1757 = vrot.slane %v1756, 4
  %v1758 = vmax.f32 %v1756, %v1757
  %v1759 = vrot.slane %v1758, 2
  %v1760 = vmax.f32 %v1758, %v1759
  %v1761 = vrot.slane %v1760, 1
  %v1762 = vmax.f32 %v1760, %v1761
  %v1763 = vsel %vm1685, %v1666, -inf
  %v1764 = vrot.slane %v1763, 4
  %v1765 = vmax.f32 %v1763, %v1764
  %v1766 = vrot.slane %v1765, 2
  %v1767 = vmax.f32 %v1765, %v1766
  %v1768 = vrot.slane %v1767, 1
  %v1769 = vmax.f32 %v1767, %v1768
  %v1770 = vsel %vm1685, %v1667, -inf
  %v1771 = vrot.slane %v1770, 4
  %v1772 = vmax.f32 %v1770, %v1771
  %v1773 = vrot.slane %v1772, 2
  %v1774 = vmax.f32 %v1772, %v1773
  %v1775 = vrot.slane %v1774, 1
  %v1776 = vmax.f32 %v1774, %v1775
  %v1777 = vsel %vm1685, %v1668, -inf
  %v1778 = vrot.slane %v1777, 4
  %v1779 = vmax.f32 %v1777, %v1778
  %v1780 = vrot.slane %v1779, 2
  %v1781 = vmax.f32 %v1779, %v1780
  %v1782 = vrot.slane %v1781, 1
  %v1783 = vmax.f32 %v1781, %v1782
  %v1784 = vsel %vm1685, %v1669, -inf
  %v1785 = vrot.slane %v1784, 4
  %v1786 = vmax.f32 %v1784, %v1785
  %v1787 = vrot.slane %v1786, 2
  %v1788 = vmax.f32 %v1786, %v1787
  %v1789 = vrot.slane %v1788, 1
  %v1790 = vmax.f32 %v1788, %v1789
  %v1791 = vsel %vm1685, %v1670, -inf
  %v1792 = vrot.slane %v1791, 4
  %v1793 = vmax.f32 %v1791, %v1792
  %v1794 = vrot.slane %v1793, 2
  %v1795 = vmax.f32 %v1793, %v1794
  %v1796 = vrot.slane %v1795, 1
  %v1797 = vmax.f32 %v1795, %v1796
  %v1798 = vsel %vm1685, %v1671, -inf
  %v1799 = vrot.slane %v1798, 4
  %v1800 = vmax.f32 %v1798, %v1799
  %v1801 = vrot.slane %v1800, 2
  %v1802 = vmax.f32 %v1800, %v1801
  %v1803 = vrot.slane %v1802, 1
  %v1804 = vmax.f32 %v1802, %v1803
  %v1805 = vsel %vm1685, %v1672, -inf
  %v1806 = vrot.slane %v1805, 4
  %v1807 = vmax.f32 %v1805, %v1806
  %v1808 = vrot.slane %v1807, 2
  %v1809 = vmax.f32 %v1807, %v1808
  %v1810 = vrot.slane %v1809, 1
  %v1811 = vmax.f32 %v1809, %v1810
  %v1812 = vsel %vm1685, %v1673, -inf
  %v1813 = vrot.slane %v1812, 4
  %v1814 = vmax.f32 %v1812, %v1813
  %v1815 = vrot.slane %v1814, 2
  %v1816 = vmax.f32 %v1814, %v1815
  %v1817 = vrot.slane %v1816, 1
  %v1818 = vmax.f32 %v1816, %v1817
  %v1819 = vsel %vm1685, %v1674, -inf
  %v1820 = vrot.slane %v1819, 4
  %v1821 = vmax.f32 %v1819, %v1820
  %v1822 = vrot.slane %v1821, 2
  %v1823 = vmax.f32 %v1821, %v1822
  %v1824 = vrot.slane %v1823, 1
  %v1825 = vmax.f32 %v1823, %v1824
  %v1826 = vsel %vm1685, %v1675, -inf
  %v1827 = vrot.slane %v1826, 4
  %v1828 = vmax.f32 %v1826, %v1827
  %v1829 = vrot.slane %v1828, 2
  %v1830 = vmax.f32 %v1828, %v1829
  %v1831 = vrot.slane %v1830, 1
  %v1832 = vmax.f32 %v1830, %v1831
  %v1833 = vsel %vm1685, %v1676, -inf
  %v1834 = vrot.slane %v1833, 4
  %v1835 = vmax.f32 %v1833, %v1834
  %v1836 = vrot.slane %v1835, 2
  %v1837 = vmax.f32 %v1835, %v1836
  %v1838 = vrot.slane %v1837, 1
  %v1839 = vmax.f32 %v1837, %v1838
  %v1840 = vsel %vm1685, %v1677, -inf
  %v1841 = vrot.slane %v1840, 4
  %v1842 = vmax.f32 %v1840, %v1841
  %v1843 = vrot.slane %v1842, 2
  %v1844 = vmax.f32 %v1842, %v1843
  %v1845 = vrot.slane %v1844, 1
  %v1846 = vmax.f32 %v1844, %v1845
  %v1847 = vsel %vm1685, %v1678, -inf
  %v1848 = vrot.slane %v1847, 4
  %v1849 = vmax.f32 %v1847, %v1848
  %v1850 = vrot.slane %v1849, 2
  %v1851 = vmax.f32 %v1849, %v1850
  %v1852 = vrot.slane %v1851, 1
  %v1853 = vmax.f32 %v1851, %v1852
  %v1854 = vsel %vm1685, %v1679, -inf
  %v1855 = vrot.slane %v1854, 4
  %v1856 = vmax.f32 %v1854, %v1855
  %v1857 = vrot.slane %v1856, 2
  %v1858 = vmax.f32 %v1856, %v1857
  %v1859 = vrot.slane %v1858, 1
  %v1860 = vmax.f32 %v1858, %v1859
  %v1861 = vsel %vm1685, %v1680, -inf
  %v1862 = vrot.slane %v1861, 4
  %v1863 = vmax.f32 %v1861, %v1862
  %v1864 = vrot.slane %v1863, 2
  %v1865 = vmax.f32 %v1863, %v1864
  %v1866 = vrot.slane %v1865, 1
  %v1867 = vmax.f32 %v1865, %v1866
  %v1868 = vsel %vm1685, %v1681, -inf
  %v1869 = vrot.slane %v1868, 4
  %v1870 = vmax.f32 %v1868, %v1869
  %v1871 = vrot.slane %v1870, 2
  %v1872 = vmax.f32 %v1870, %v1871
  %v1873 = vrot.slane %v1872, 1
  %v1874 = vmax.f32 %v1872, %v1873
  %v1875 = vsel %vm1685, %v1682, -inf
  %v1876 = vrot.slane %v1875, 4
  %v1877 = vmax.f32 %v1875, %v1876
  %v1878 = vrot.slane %v1877, 2
  %v1879 = vmax.f32 %v1877, %v1878
  %v1880 = vrot.slane %v1879, 1
  %v1881 = vmax.f32 %v1879, %v1880
  %v1882 = vsel %vm1685, %v1683, -inf
  %v1883 = vrot.slane %v1882, 4
  %v1884 = vmax.f32 %v1882, %v1883
  %v1885 = vrot.slane %v1884, 2
  %v1886 = vmax.f32 %v1884, %v1885
  %v1887 = vrot.slane %v1886, 1
  %v1888 = vmax.f32 %v1886, %v1887
  %v1889 = vsel %vm1685, %v1684, -inf
  %v1890 = vrot.slane %v1889, 4
  %v1891 = vmax.f32 %v1889, %v1890
  %v1892 = vrot.slane %v1891, 2
  %v1893 = vmax.f32 %v1891, %v1892
  %v1894 = vrot.slane %v1893, 1
  %v1895 = vmax.f32 %v1893, %v1894
  %v1896 = vpack.c.bf16 %v1692, %v1692
  %v1897 = vpack.c.bf16 %v1699, %v1699
  %v1898 = vpack.c.bf16 %v1706, %v1706
  %v1899 = vpack.c.bf16 %v1713, %v1713
  %v1900 = vpack.c.bf16 %v1720, %v1720
  %v1901 = vpack.c.bf16 %v1727, %v1727
  %v1902 = vpack.c.bf16 %v1734, %v1734
  %v1903 = vpack.c.bf16 %v1741, %v1741
  %v1904 = vpack.c.bf16 %v1748, %v1748
  %v1905 = vpack.c.bf16 %v1755, %v1755
  %v1906 = vpack.c.bf16 %v1762, %v1762
  %v1907 = vpack.c.bf16 %v1769, %v1769
  %v1908 = vpack.c.bf16 %v1776, %v1776
  %v1909 = vpack.c.bf16 %v1783, %v1783
  %v1910 = vpack.c.bf16 %v1790, %v1790
  %v1911 = vpack.c.bf16 %v1797, %v1797
  %v1912 = vpack.c.bf16 %v1804, %v1804
  %v1913 = vpack.c.bf16 %v1811, %v1811
  %v1914 = vpack.c.bf16 %v1818, %v1818
  %v1915 = vpack.c.bf16 %v1825, %v1825
  %v1916 = vpack.c.bf16 %v1832, %v1832
  %v1917 = vpack.c.bf16 %v1839, %v1839
  %v1918 = vpack.c.bf16 %v1846, %v1846
  %v1919 = vpack.c.bf16 %v1853, %v1853
  %v1920 = vpack.c.bf16 %v1860, %v1860
  %v1921 = vpack.c.bf16 %v1867, %v1867
  %v1922 = vpack.c.bf16 %v1874, %v1874
  %v1923 = vpack.c.bf16 %v1881, %v1881
  %v1924 = vpack.c.bf16 %v1888, %v1888
  %v1925 = vpack.c.bf16 %v1895, %v1895
  %v1956 = vunpack.c.l.b16 %v1896
  %v1957 = vunpack.c.l.b16 %v1897
  %v1958 = vunpack.c.l.b16 %v1898
  %v1959 = vunpack.c.l.b16 %v1899
  %v1960 = vunpack.c.l.b16 %v1900
  %v1961 = vunpack.c.l.b16 %v1901
  %v1962 = vunpack.c.l.b16 %v1902
  %v1963 = vunpack.c.l.b16 %v1903
  %v1964 = vunpack.c.l.b16 %v1904
  %v1965 = vunpack.c.l.b16 %v1905
  %v1966 = vunpack.c.l.b16 %v1906
  %v1967 = vunpack.c.l.b16 %v1907
  %v1968 = vunpack.c.l.b16 %v1908
  %v1969 = vunpack.c.l.b16 %v1909
  %v1970 = vunpack.c.l.b16 %v1910
  %v1971 = vunpack.c.l.b16 %v1911
  %v1972 = vunpack.c.l.b16 %v1912
  %v1973 = vunpack.c.l.b16 %v1913
  %v1974 = vunpack.c.l.b16 %v1914
  %v1975 = vunpack.c.l.b16 %v1915
  %v1976 = vunpack.c.l.b16 %v1916
  %v1977 = vunpack.c.l.b16 %v1917
  %v1978 = vunpack.c.l.b16 %v1918
  %v1979 = vunpack.c.l.b16 %v1919
  %v1980 = vunpack.c.l.b16 %v1920
  %v1981 = vunpack.c.l.b16 %v1921
  %v1982 = vunpack.c.l.b16 %v1922
  %v1983 = vunpack.c.l.b16 %v1923
  %v1984 = vunpack.c.l.b16 %v1924
  %v1985 = vunpack.c.l.b16 %v1925
  %vm1986 = vcmask 1042434
  %v1987 = vsel %vm1986, %v1957, %v1956
  %vm1988 = vcmask 1043459
  %v1989 = vsel %vm1988, %v1958, %v1987
  %vm1990 = vcmask 1044484
  %v1991 = vsel %vm1990, %v1959, %v1989
  %vm1992 = vcmask 1045509
  %v1993 = vsel %vm1992, %v1960, %v1991
  %vm1994 = vcmask 1046534
  %v1995 = vsel %vm1994, %v1961, %v1993
  %vm1996 = vcmask 1047559
  %v1997 = vsel %vm1996, %v1962, %v1995
  %vm1998 = vcmask 1041409
  %v1999 = vsel %vm1998, %v1964, %v1963
  %v2000 = vsel %vm1986, %v1965, %v1999
  %v2001 = vsel %vm1988, %v1966, %v2000
  %v2002 = vsel %vm1990, %v1967, %v2001
  %v2003 = vsel %vm1992, %v1968, %v2002
  %v2004 = vsel %vm1994, %v1969, %v2003
  %v2005 = vsel %vm1996, %v1970, %v2004
  %v2006 = vsel %vm1986, %v1972, %v1971
  %v2007 = vsel %vm1988, %v1973, %v2006
  %v2008 = vsel %vm1990, %v1974, %v2007
  %v2009 = vsel %vm1992, %v1975, %v2008
  %v2010 = vsel %vm1994, %v1976, %v2009
  %v2011 = vsel %vm1996, %v1977, %v2010
  %v2012 = vsel %vm1998, %v1979, %v1978
  %v2013 = vsel %vm1986, %v1980, %v2012
  %v2014 = vsel %vm1988, %v1981, %v2013
  %v2015 = vsel %vm1990, %v1982, %v2014
  %v2016 = vsel %vm1992, %v1983, %v2015
  %v2017 = vsel %vm1994, %v1984, %v2016
  %v2018 = vsel %vm1996, %v1985, %v2017
  %v2019 = vpack.c.b16 %v2005, %v1997
  %v2020 = vpack.c.b16 %v2018, %v2011
  %v2023 = vsel %vm103, 0, %v2019
  %v2024 = vsel %vm103, 0, %v2020
  %v2025 = vld [vmem:[%s4] sm:$0x1]
  %v2027 = vlaneseq
  %v2028 = vshrl.u32 %v2027, 7
  %v2029 = vsub.s32 0, %v2028
  %v2030 = vrot.slane %v2025, %v2029
  %v2032 = vadd.f32 %v2030, 0.0
  %v2035 = vcombine.high %v2023, %v2023
  %v2037 = vunpack.c.l.s4 1966171168
  %v2038 = vunpack.c.0.s8 %v2037
  %v2039 = vlaneseq
  %v2040 = vshrl.u32 %v2039, 7
  %v2041 = vsub.s32 %v2038, %v2040
  %v2042 = vrot.slane %v2023, %v2041
  %v2044 = vunpack.c.l.s4 1966171168
  %v2045 = vunpack.c.0.s8 %v2044
  %v2046 = vlaneseq
  %v2047 = vshrl.u32 %v2046, 7
  %v2048 = vsub.s32 %v2045, %v2047
  %v2049 = vrot.slane %v2035, %v2048
  %v2050 = vcombine.high %v2042, %v2042
  %v2051 = vcombine.high %v2049, %v2049
  %v2053 = vunpack.c.l.s4 1966171168
  %v2054 = vunpack.c.0.s8 %v2053
  %v2055 = vlaneseq
  %v2056 = vshrl.u32 %v2055, 7
  %v2057 = vsub.s32 %v2054, %v2056
  %v2058 = vrot.slane %v2042, %v2057
  %v2060 = vunpack.c.l.s4 1966171168
  %v2061 = vunpack.c.0.s8 %v2060
  %v2062 = vlaneseq
  %v2063 = vshrl.u32 %v2062, 7
  %v2064 = vsub.s32 %v2061, %v2063
  %v2065 = vrot.slane %v2049, %v2064
  %v2067 = vunpack.c.l.s4 1966171168
  %v2068 = vunpack.c.0.s8 %v2067
  %v2069 = vlaneseq
  %v2070 = vshrl.u32 %v2069, 7
  %v2071 = vsub.s32 %v2068, %v2070
  %v2072 = vrot.slane %v2050, %v2071
  %v2074 = vunpack.c.l.s4 1966171168
  %v2075 = vunpack.c.0.s8 %v2074
  %v2076 = vlaneseq
  %v2077 = vshrl.u32 %v2076, 7
  %v2078 = vsub.s32 %v2075, %v2077
  %v2079 = vrot.slane %v2051, %v2078
  %v2080 = vcombine.high %v2058, %v2058
  %v2081 = vcombine.high %v2065, %v2065
  %v2082 = vcombine.high %v2072, %v2072
  %v2083 = vcombine.high %v2079, %v2079
  %v2084 = vcombine.high %v2024, %v2024
  %v2086 = vunpack.c.l.s4 1966171168
  %v2087 = vunpack.c.0.s8 %v2086
  %v2088 = vlaneseq
  %v2089 = vshrl.u32 %v2088, 7
  %v2090 = vsub.s32 %v2087, %v2089
  %v2091 = vrot.slane %v2024, %v2090
  %v2093 = vunpack.c.l.s4 1966171168
  %v2094 = vunpack.c.0.s8 %v2093
  %v2095 = vlaneseq
  %v2096 = vshrl.u32 %v2095, 7
  %v2097 = vsub.s32 %v2094, %v2096
  %v2098 = vrot.slane %v2084, %v2097
  %v2099 = vcombine.high %v2091, %v2091
  %v2100 = vcombine.high %v2098, %v2098
  %v2102 = vunpack.c.l.s4 1966171168
  %v2103 = vunpack.c.0.s8 %v2102
  %v2104 = vlaneseq
  %v2105 = vshrl.u32 %v2104, 7
  %v2106 = vsub.s32 %v2103, %v2105
  %v2107 = vrot.slane %v2091, %v2106
  %v2109 = vunpack.c.l.s4 1966171168
  %v2110 = vunpack.c.0.s8 %v2109
  %v2111 = vlaneseq
  %v2112 = vshrl.u32 %v2111, 7
  %v2113 = vsub.s32 %v2110, %v2112
  %v2114 = vrot.slane %v2098, %v2113
  %v2116 = vunpack.c.l.s4 1966171168
  %v2117 = vunpack.c.0.s8 %v2116
  %v2118 = vlaneseq
  %v2119 = vshrl.u32 %v2118, 7
  %v2120 = vsub.s32 %v2117, %v2119
  %v2121 = vrot.slane %v2099, %v2120
  %v2123 = vunpack.c.l.s4 1966171168
  %v2124 = vunpack.c.0.s8 %v2123
  %v2125 = vlaneseq
  %v2126 = vshrl.u32 %v2125, 7
  %v2127 = vsub.s32 %v2124, %v2126
  %v2128 = vrot.slane %v2100, %v2127
  %v2129 = vcombine.high %v2107, %v2107
  %v2130 = vcombine.high %v2114, %v2114
  %v2131 = vcombine.high %v2121, %v2121
  %v2132 = vcombine.high %v2128, %v2128
  %v2133 = vunpack.i.l.s16 %v2058
  %v2134 = vunpack.i.h.s16 %v2058
  %v2135 = vunpack.i.l.s16 %v2072
  %v2136 = vunpack.i.h.s16 %v2072
  %v2137 = vunpack.i.l.s16 %v2080
  %v2138 = vunpack.i.h.s16 %v2080
  %v2139 = vunpack.i.l.s16 %v2082
  %v2140 = vunpack.i.h.s16 %v2082
  %v2141 = vunpack.i.l.s16 %v2065
  %v2142 = vunpack.i.h.s16 %v2065
  %v2143 = vunpack.i.l.s16 %v2079
  %v2144 = vunpack.i.h.s16 %v2079
  %v2145 = vunpack.i.l.s16 %v2081
  %v2146 = vunpack.i.h.s16 %v2081
  %v2147 = vunpack.i.l.s16 %v2083
  %v2148 = vunpack.i.l.s16 %v2107
  %v2149 = vunpack.i.h.s16 %v2107
  %v2150 = vunpack.i.l.s16 %v2121
  %v2151 = vunpack.i.h.s16 %v2121
  %v2152 = vunpack.i.l.s16 %v2129
  %v2153 = vunpack.i.h.s16 %v2129
  %v2154 = vunpack.i.l.s16 %v2131
  %v2155 = vunpack.i.h.s16 %v2131
  %v2156 = vunpack.i.l.s16 %v2114
  %v2157 = vunpack.i.h.s16 %v2114
  %v2158 = vunpack.i.l.s16 %v2128
  %v2159 = vunpack.i.h.s16 %v2128
  %v2160 = vunpack.i.l.s16 %v2130
  %v2161 = vunpack.i.h.s16 %v2130
  %v2162 = vunpack.i.l.s16 %v2132
  %v2163 = vld [vmem:[%s3] sm:$0xf]
  %v2164 = vld [vmem:[%s3 + $0x4] sm:$0xf]
  %v2165 = vld [vmem:[%s3 + $0x8] sm:$0xf]
  %v2166 = vld [vmem:[%s3 + $0xc] sm:$0xf]
  %v2167 = vld [vmem:[%s3 + $0x10] sm:$0xf]
  %v2168 = vld [vmem:[%s3 + $0x14] sm:$0xf]
  %v2169 = vld [vmem:[%s3 + $0x18] sm:$0x1]
  %v2170 = vpack.i.b16 %v2134, %v2133
  %v2171 = vpack.i.b16 %v2136, %v2135
  %v2172 = vpack.i.b16 %v2138, %v2137
  %v2173 = vpack.i.b16 %v2140, %v2139
  %v2174 = vpack.i.b16 %v2142, %v2141
  %v2175 = vpack.i.b16 %v2144, %v2143
  %v2176 = vpack.i.b16 %v2146, %v2145
  %v2177 = vpack.i.b16 %v2148, %v2147
  %v2178 = vpack.i.b16 %v2150, %v2149
  %v2179 = vpack.i.b16 %v2152, %v2151
  %v2180 = vpack.i.b16 %v2154, %v2153
  %v2181 = vpack.i.b16 %v2156, %v2155
  %v2182 = vpack.i.b16 %v2158, %v2157
  %v2183 = vpack.i.b16 %v2160, %v2159
  %v2184 = vpack.i.b16 %v2162, %v2161
  %v2185 = vcombine.low %v2170, %v2171
  %v2186 = vcombine.low %v2172, %v2173
  %v2187 = vcombine.low %v2174, %v2175
  %v2188 = vcombine.low %v2176, %v2177
  %v2190 = vunpack.c.l.s4 1966171168
  %v2191 = vunpack.c.0.s8 %v2190
  %v2192 = vlaneseq
  %v2193 = vshrl.u32 %v2192, 7
  %v2194 = vsub.s32 %v2191, %v2193
  %v2195 = vrot.slane %v2185, %v2194
  %v2197 = vunpack.c.l.s4 1966171168
  %v2198 = vunpack.c.0.s8 %v2197
  %v2199 = vlaneseq
  %v2200 = vshrl.u32 %v2199, 7
  %v2201 = vsub.s32 %v2198, %v2200
  %v2202 = vrot.slane %v2186, %v2201
  %v2204 = vunpack.c.l.s4 1966171168
  %v2205 = vunpack.c.0.s8 %v2204
  %v2206 = vlaneseq
  %v2207 = vshrl.u32 %v2206, 7
  %v2208 = vsub.s32 %v2205, %v2207
  %v2209 = vrot.slane %v2187, %v2208
  %v2211 = vunpack.c.l.s4 1966171168
  %v2212 = vunpack.c.0.s8 %v2211
  %v2213 = vlaneseq
  %v2214 = vshrl.u32 %v2213, 7
  %v2215 = vsub.s32 %v2212, %v2214
  %v2216 = vrot.slane %v2188, %v2215
  %v2217 = vcombine.low %v2195, %v2202
  %v2218 = vcombine.low %v2209, %v2216
  %v2220 = vunpack.c.l.s4 1966171168
  %v2221 = vunpack.c.0.s8 %v2220
  %v2222 = vlaneseq
  %v2223 = vshrl.u32 %v2222, 7
  %v2224 = vsub.s32 %v2221, %v2223
  %v2225 = vrot.slane %v2217, %v2224
  %v2227 = vunpack.c.l.s4 1966171168
  %v2228 = vunpack.c.0.s8 %v2227
  %v2229 = vlaneseq
  %v2230 = vshrl.u32 %v2229, 7
  %v2231 = vsub.s32 %v2228, %v2230
  %v2232 = vrot.slane %v2218, %v2231
  %v2233 = vcombine.low %v2225, %v2232
  %v2234 = vcombine.low %v2178, %v2179
  %v2235 = vcombine.low %v2180, %v2181
  %v2236 = vcombine.low %v2182, %v2183
  %v2238 = vunpack.c.l.s4 1966171168
  %v2239 = vunpack.c.0.s8 %v2238
  %v2240 = vlaneseq
  %v2241 = vshrl.u32 %v2240, 7
  %v2242 = vsub.s32 %v2239, %v2241
  %v2243 = vrot.slane %v2234, %v2242
  %v2245 = vunpack.c.l.s4 1966171168
  %v2246 = vunpack.c.0.s8 %v2245
  %v2247 = vlaneseq
  %v2248 = vshrl.u32 %v2247, 7
  %v2249 = vsub.s32 %v2246, %v2248
  %v2250 = vrot.slane %v2235, %v2249
  %v2252 = vunpack.c.l.s4 1966171168
  %v2253 = vunpack.c.0.s8 %v2252
  %v2254 = vlaneseq
  %v2255 = vshrl.u32 %v2254, 7
  %v2256 = vsub.s32 %v2253, %v2255
  %v2257 = vrot.slane %v2236, %v2256
  %v2259 = vunpack.c.l.s4 1966171168
  %v2260 = vunpack.c.0.s8 %v2259
  %v2261 = vlaneseq
  %v2262 = vshrl.u32 %v2261, 7
  %v2263 = vsub.s32 %v2260, %v2262
  %v2264 = vrot.slane %v2184, %v2263
  %v2265 = vcombine.low %v2243, %v2250
  %v2266 = vcombine.low %v2257, %v2264
  %v2268 = vunpack.c.l.s4 1966171168
  %v2269 = vunpack.c.0.s8 %v2268
  %v2270 = vlaneseq
  %v2271 = vshrl.u32 %v2270, 7
  %v2272 = vsub.s32 %v2269, %v2271
  %v2273 = vrot.slane %v2265, %v2272
  %v2275 = vunpack.c.l.s4 1966171168
  %v2276 = vunpack.c.0.s8 %v2275
  %v2277 = vlaneseq
  %v2278 = vshrl.u32 %v2277, 7
  %v2279 = vsub.s32 %v2276, %v2278
  %v2280 = vrot.slane %v2266, %v2279
  %v2281 = vcombine.low %v2273, %v2280
  %v2289 = vunpack.c.l.b16 %v2163
  %v2290 = vunpack.c.l.b16 %v2164
  %v2291 = vunpack.c.l.b16 %v2165
  %v2292 = vunpack.c.l.b16 %v2166
  %v2293 = vunpack.c.l.b16 %v2167
  %v2294 = vunpack.c.l.b16 %v2168
  %v2295 = vunpack.c.l.b16 %v2169
  %v2296 = vpack.c.b16 %v2290, %v2289
  %v2297 = vpack.c.b16 %v2292, %v2291
  %v2298 = vpack.c.b16 %v2294, %v2293
  %v2299 = vpack.c.b16 %v2295, %v2295
  %vm2303 = vcmask 408576
  %v2305 = vsel %vm2303, %v2233, 0
  %v2308 = vsel %vm2303, %v2281, 0
  %vm2310 = vcmask 1040384
  %v2312 = vsel %vm2310, %v2299, 0
  %2314 = vmatprep.subr.bf16.mxu0 0
  %2315 = vmatpush1.bf16.msra.mxu0 %v2296
  %2316 = vmatprep.subr.bf16.mxu0 0
  %2317 = vmatpush1.bf16.msra.mxu0 %v2297
  %2318 = vmatprep.subr.bf16.mxu0 0
  %2319 = vmatpush1.bf16.msra.mxu0 %v2298
  %2320 = vmatprep.subr.bf16.mxu0 0
  %2321 = vmatpush1.bf16.msra.mxu0 %v2312
  %2322 = vmatprep.subr.bf16.mxu0 0
  %2323 = vmatpush1.bf16.msra.mxu0 0
  %2324 = vmatprep.subr.bf16.mxu0 0
  %2325 = vmatpush1.bf16.msra.mxu0 0
  %2326 = vmatprep.subr.bf16.mxu0 0
  %2327 = vmatpush1.bf16.msra.mxu0 0
  %2328 = vmatprep.subr.bf16.mxu0 0
  %2329 = vmatpush1.bf16.msra.mxu0 0
  %2330 = vmatprep.subr.bf16.mxu0 0
  %2331 = vmatpush1.bf16.msra.mxu0 0
  %2332 = vmatprep.subr.bf16.mxu0 0
  %2333 = vmatpush1.bf16.msra.mxu0 0
  %2334 = vmatprep.subr.bf16.mxu0 0
  %2335 = vmatpush1.bf16.msra.mxu0 0
  %2336 = vmatprep.subr.bf16.mxu0 0
  %2337 = vmatpush1.bf16.msra.mxu0 0
  %2338 = vmatprep.subr.bf16.mxu0 0
  %2339 = vmatpush1.bf16.msra.mxu0 0
  %2340 = vmatprep.subr.bf16.mxu0 0
  %2341 = vmatpush1.bf16.msra.mxu0 0
  %2342 = vmatprep.subr.bf16.mxu0 0
  %2343 = vmatpush1.bf16.msra.mxu0 0
  %2344 = vmatprep.subr.bf16.mxu0 0
  %2345 = vmatpush1.bf16.msra.mxu0 0
  %2346 = vmatprep.mubr.bf16.mxu0 0
  %2347 = vmatmul.mubr.bf16.gmra.mrb[0].mxu0 %v2305
  %v2348 = vpop.f32.mrb[0].mxu0
  %v2349 = vadd.f32 0.0, %v2348
  %v2350 = vpop.f32.mrb[0].mxu0
  %v2351 = vpop.f32.mrb[0].mxu0
  %v2352 = vadd.f32 0.0, %v2351
  %v2353 = vpop.f32.mrb[0].mxu0
  %2354 = vmatprep.mubr.bf16.mxu0 0
  %2355 = vmatmul.mubr.bf16.gmra.mrb[0].mxu0 %v2308
  %v2356 = vpop.f32.mrb[0].mxu0
  %v2357 = vadd.f32 0.0, %v2356
  %v2358 = vpop.f32.mrb[0].mxu0
  %v2359 = vpop.f32.mrb[0].mxu0
  %v2360 = vadd.f32 0.0, %v2359
  %v2361 = vpop.f32.mrb[0].mxu0
  %2362 = vdwg.mxu0
  %v2363 = vadd.f32 %v2032, %v2349
  %v2364 = vadd.f32 %v2032, %v2352
  %v2365 = vadd.f32 %v2032, %v2357
  %v2366 = vadd.f32 %v2032, %v2360
  %v2367 = vunpack.i.h.s16 %v2083
  %v2368 = vunpack.i.h.s16 %v2132
  %s2369 = scalar_lea.vmem %s3, 28
  %v2370 = vld [vmem:[%s2369] sm:$0xf]
  %v2371 = vld [vmem:[%s2369 + $0x4] sm:$0xf]
  %v2372 = vld [vmem:[%s2369 + $0x8] sm:$0xf]
  %v2373 = vld [vmem:[%s2369 + $0xc] sm:$0xf]
  %v2374 = vld [vmem:[%s2369 + $0x10] sm:$0xf]
  %v2375 = vld [vmem:[%s2369 + $0x14] sm:$0xf]
  %v2376 = vld [vmem:[%s2369 + $0x18] sm:$0x1]
  %v2377 = vpack.i.b16 %v2135, %v2134
  %v2378 = vpack.i.b16 %v2137, %v2136
  %v2379 = vpack.i.b16 %v2139, %v2138
  %v2380 = vpack.i.b16 %v2141, %v2140
  %v2381 = vpack.i.b16 %v2143, %v2142
  %v2382 = vpack.i.b16 %v2145, %v2144
  %v2383 = vpack.i.b16 %v2147, %v2146
  %v2384 = vpack.i.b16 %v2149, %v2367
  %v2385 = vpack.i.b16 %v2151, %v2150
  %v2386 = vpack.i.b16 %v2153, %v2152
  %v2387 = vpack.i.b16 %v2155, %v2154
  %v2388 = vpack.i.b16 %v2157, %v2156
  %v2389 = vpack.i.b16 %v2159, %v2158
  %v2390 = vpack.i.b16 %v2161, %v2160
  %v2391 = vpack.i.b16 %v2368, %v2162
  %v2392 = vcombine.low %v2377, %v2378
  %v2393 = vcombine.low %v2379, %v2380
  %v2394 = vcombine.low %v2381, %v2382
  %v2395 = vcombine.low %v2383, %v2384
  %v2397 = vunpack.c.l.s4 1966171168
  %v2398 = vunpack.c.0.s8 %v2397
  %v2399 = vlaneseq
  %v2400 = vshrl.u32 %v2399, 7
  %v2401 = vsub.s32 %v2398, %v2400
  %v2402 = vrot.slane %v2392, %v2401
  %v2404 = vunpack.c.l.s4 1966171168
  %v2405 = vunpack.c.0.s8 %v2404
  %v2406 = vlaneseq
  %v2407 = vshrl.u32 %v2406, 7
  %v2408 = vsub.s32 %v2405, %v2407
  %v2409 = vrot.slane %v2393, %v2408
  %v2411 = vunpack.c.l.s4 1966171168
  %v2412 = vunpack.c.0.s8 %v2411
  %v2413 = vlaneseq
  %v2414 = vshrl.u32 %v2413, 7
  %v2415 = vsub.s32 %v2412, %v2414
  %v2416 = vrot.slane %v2394, %v2415
  %v2418 = vunpack.c.l.s4 1966171168
  %v2419 = vunpack.c.0.s8 %v2418
  %v2420 = vlaneseq
  %v2421 = vshrl.u32 %v2420, 7
  %v2422 = vsub.s32 %v2419, %v2421
  %v2423 = vrot.slane %v2395, %v2422
  %v2424 = vcombine.low %v2402, %v2409
  %v2425 = vcombine.low %v2416, %v2423
  %v2427 = vunpack.c.l.s4 1966171168
  %v2428 = vunpack.c.0.s8 %v2427
  %v2429 = vlaneseq
  %v2430 = vshrl.u32 %v2429, 7
  %v2431 = vsub.s32 %v2428, %v2430
  %v2432 = vrot.slane %v2424, %v2431
  %v2434 = vunpack.c.l.s4 1966171168
  %v2435 = vunpack.c.0.s8 %v2434
  %v2436 = vlaneseq
  %v2437 = vshrl.u32 %v2436, 7
  %v2438 = vsub.s32 %v2435, %v2437
  %v2439 = vrot.slane %v2425, %v2438
  %v2440 = vcombine.low %v2432, %v2439
  %v2441 = vcombine.low %v2385, %v2386
  %v2442 = vcombine.low %v2387, %v2388
  %v2443 = vcombine.low %v2389, %v2390
  %v2445 = vunpack.c.l.s4 1966171168
  %v2446 = vunpack.c.0.s8 %v2445
  %v2447 = vlaneseq
  %v2448 = vshrl.u32 %v2447, 7
  %v2449 = vsub.s32 %v2446, %v2448
  %v2450 = vrot.slane %v2441, %v2449
  %v2452 = vunpack.c.l.s4 1966171168
  %v2453 = vunpack.c.0.s8 %v2452
  %v2454 = vlaneseq
  %v2455 = vshrl.u32 %v2454, 7
  %v2456 = vsub.s32 %v2453, %v2455
  %v2457 = vrot.slane %v2442, %v2456
  %v2459 = vunpack.c.l.s4 1966171168
  %v2460 = vunpack.c.0.s8 %v2459
  %v2461 = vlaneseq
  %v2462 = vshrl.u32 %v2461, 7
  %v2463 = vsub.s32 %v2460, %v2462
  %v2464 = vrot.slane %v2443, %v2463
  %v2466 = vunpack.c.l.s4 1966171168
  %v2467 = vunpack.c.0.s8 %v2466
  %v2468 = vlaneseq
  %v2469 = vshrl.u32 %v2468, 7
  %v2470 = vsub.s32 %v2467, %v2469
  %v2471 = vrot.slane %v2391, %v2470
  %v2472 = vcombine.low %v2450, %v2457
  %v2473 = vcombine.low %v2464, %v2471
  %v2475 = vunpack.c.l.s4 1966171168
  %v2476 = vunpack.c.0.s8 %v2475
  %v2477 = vlaneseq
  %v2478 = vshrl.u32 %v2477, 7
  %v2479 = vsub.s32 %v2476, %v2478
  %v2480 = vrot.slane %v2472, %v2479
  %v2482 = vunpack.c.l.s4 1966171168
  %v2483 = vunpack.c.0.s8 %v2482
  %v2484 = vlaneseq
  %v2485 = vshrl.u32 %v2484, 7
  %v2486 = vsub.s32 %v2483, %v2485
  %v2487 = vrot.slane %v2473, %v2486
  %v2488 = vcombine.low %v2480, %v2487
  %v2496 = vunpack.c.l.b16 %v2370
  %v2497 = vunpack.c.l.b16 %v2371
  %v2498 = vunpack.c.l.b16 %v2372
  %v2499 = vunpack.c.l.b16 %v2373
  %v2500 = vunpack.c.l.b16 %v2374
  %v2501 = vunpack.c.l.b16 %v2375
  %v2502 = vunpack.c.l.b16 %v2376
  %v2503 = vpack.c.b16 %v2497, %v2496
  %v2504 = vpack.c.b16 %v2499, %v2498
  %v2505 = vpack.c.b16 %v2501, %v2500
  %v2506 = vpack.c.b16 %v2502, %v2502
  %v2511 = vsel %vm2303, %v2440, 0
  %v2514 = vsel %vm2303, %v2488, 0
  %v2517 = vsel %vm2310, %v2506, 0
  %2519 = vmatprep.subr.bf16.mxu0 0
  %2520 = vmatpush1.bf16.msra.mxu0 %v2503
  %2521 = vmatprep.subr.bf16.mxu0 0
  %2522 = vmatpush1.bf16.msra.mxu0 %v2504
  %2523 = vmatprep.subr.bf16.mxu0 0
  %2524 = vmatpush1.bf16.msra.mxu0 %v2505
  %2525 = vmatprep.subr.bf16.mxu0 0
  %2526 = vmatpush1.bf16.msra.mxu0 %v2517
  %2527 = vmatprep.subr.bf16.mxu0 0
  %2528 = vmatpush1.bf16.msra.mxu0 0
  %2529 = vmatprep.subr.bf16.mxu0 0
  %2530 = vmatpush1.bf16.msra.mxu0 0
  %2531 = vmatprep.subr.bf16.mxu0 0
  %2532 = vmatpush1.bf16.msra.mxu0 0
  %2533 = vmatprep.subr.bf16.mxu0 0
  %2534 = vmatpush1.bf16.msra.mxu0 0
  %2535 = vmatprep.subr.bf16.mxu0 0
  %2536 = vmatpush1.bf16.msra.mxu0 0
  %2537 = vmatprep.subr.bf16.mxu0 0
  %2538 = vmatpush1.bf16.msra.mxu0 0
  %2539 = vmatprep.subr.bf16.mxu0 0
  %2540 = vmatpush1.bf16.msra.mxu0 0
  %2541 = vmatprep.subr.bf16.mxu0 0
  %2542 = vmatpush1.bf16.msra.mxu0 0
  %2543 = vmatprep.subr.bf16.mxu0 0
  %2544 = vmatpush1.bf16.msra.mxu0 0
  %2545 = vmatprep.subr.bf16.mxu0 0
  %2546 = vmatpush1.bf16.msra.mxu0 0
  %2547 = vmatprep.subr.bf16.mxu0 0
  %2548 = vmatpush1.bf16.msra.mxu0 0
  %2549 = vmatprep.subr.bf16.mxu0 0
  %2550 = vmatpush1.bf16.msra.mxu0 0
  %2551 = vmatprep.mubr.bf16.mxu0 0
  %2552 = vmatmul.mubr.bf16.gmra.mrb[0].mxu0 %v2511
  %v2553 = vpop.f32.mrb[0].mxu0
  %v2554 = vadd.f32 0.0, %v2553
  %v2555 = vpop.f32.mrb[0].mxu0
  %v2556 = vpop.f32.mrb[0].mxu0
  %v2557 = vadd.f32 0.0, %v2556
  %v2558 = vpop.f32.mrb[0].mxu0
  %2559 = vmatprep.mubr.bf16.mxu0 0
  %2560 = vmatmul.mubr.bf16.gmra.mrb[0].mxu0 %v2514
  %v2561 = vpop.f32.mrb[0].mxu0
  %v2562 = vadd.f32 0.0, %v2561
  %v2563 = vpop.f32.mrb[0].mxu0
  %v2564 = vpop.f32.mrb[0].mxu0
  %v2565 = vadd.f32 0.0, %v2564
  %v2566 = vpop.f32.mrb[0].mxu0
  %2567 = vdwg.mxu0
  %v2568 = vadd.f32 %v2363, %v2554
  %v2569 = vadd.f32 %v2364, %v2557
  %v2570 = vadd.f32 %v2365, %v2562
  %v2571 = vadd.f32 %v2366, %v2565
  %v2574 = vunpack.c.l.s4 1966171168
  %v2575 = vunpack.c.0.s8 %v2574
  %v2576 = vlaneseq
  %v2577 = vshrl.u32 %v2576, 7
  %v2578 = vsub.s32 %v2575, %v2577
  %v2579 = vrot.slane 0, %v2578
  %v2581 = vunpack.c.l.s4 1966171168
  %v2582 = vunpack.c.0.s8 %v2581
  %v2583 = vlaneseq
  %v2584 = vshrl.u32 %v2583, 7
  %v2585 = vsub.s32 %v2582, %v2584
  %v2586 = vrot.slane %v2579, %v2585
  %v2587 = vunpack.i.l.s16 %v2586
  %s2588 = scalar_lea.vmem %s3, 56
  %v2589 = vld [vmem:[%s2588] sm:$0xf]
  %v2590 = vld [vmem:[%s2588 + $0x4] sm:$0xf]
  %v2591 = vld [vmem:[%s2588 + $0x8] sm:$0xf]
  %v2592 = vld [vmem:[%s2588 + $0xc] sm:$0xf]
  %v2593 = vld [vmem:[%s2588 + $0x10] sm:$0xf]
  %v2594 = vld [vmem:[%s2588 + $0x14] sm:$0xf]
  %v2595 = vld [vmem:[%s2588 + $0x18] sm:$0x1]
  %v2596 = vpack.i.b16 %v2367, %v2147
  %v2597 = vpack.i.b16 %v2150, %v2587
  %v2598 = vpack.i.b16 %v2587, %v2368
  %v2599 = vcombine.low %v2171, %v2172
  %v2600 = vcombine.low %v2173, %v2174
  %v2601 = vcombine.low %v2175, %v2176
  %v2602 = vcombine.low %v2596, %v2597
  %v2604 = vunpack.c.l.s4 1966171168
  %v2605 = vunpack.c.0.s8 %v2604
  %v2606 = vlaneseq
  %v2607 = vshrl.u32 %v2606, 7
  %v2608 = vsub.s32 %v2605, %v2607
  %v2609 = vrot.slane %v2599, %v2608
  %v2611 = vunpack.c.l.s4 1966171168
  %v2612 = vunpack.c.0.s8 %v2611
  %v2613 = vlaneseq
  %v2614 = vshrl.u32 %v2613, 7
  %v2615 = vsub.s32 %v2612, %v2614
  %v2616 = vrot.slane %v2600, %v2615
  %v2618 = vunpack.c.l.s4 1966171168
  %v2619 = vunpack.c.0.s8 %v2618
  %v2620 = vlaneseq
  %v2621 = vshrl.u32 %v2620, 7
  %v2622 = vsub.s32 %v2619, %v2621
  %v2623 = vrot.slane %v2601, %v2622
  %v2625 = vunpack.c.l.s4 1966171168
  %v2626 = vunpack.c.0.s8 %v2625
  %v2627 = vlaneseq
  %v2628 = vshrl.u32 %v2627, 7
  %v2629 = vsub.s32 %v2626, %v2628
  %v2630 = vrot.slane %v2602, %v2629
  %v2631 = vcombine.low %v2609, %v2616
  %v2632 = vcombine.low %v2623, %v2630
  %v2634 = vunpack.c.l.s4 1966171168
  %v2635 = vunpack.c.0.s8 %v2634
  %v2636 = vlaneseq
  %v2637 = vshrl.u32 %v2636, 7
  %v2638 = vsub.s32 %v2635, %v2637
  %v2639 = vrot.slane %v2631, %v2638
  %v2641 = vunpack.c.l.s4 1966171168
  %v2642 = vunpack.c.0.s8 %v2641
  %v2643 = vlaneseq
  %v2644 = vshrl.u32 %v2643, 7
  %v2645 = vsub.s32 %v2642, %v2644
  %v2646 = vrot.slane %v2632, %v2645
  %v2647 = vcombine.low %v2639, %v2646
  %v2648 = vcombine.low %v2179, %v2180
  %v2649 = vcombine.low %v2181, %v2182
  %v2650 = vcombine.low %v2183, %v2184
  %v2652 = vunpack.c.l.s4 1966171168
  %v2653 = vunpack.c.0.s8 %v2652
  %v2654 = vlaneseq
  %v2655 = vshrl.u32 %v2654, 7
  %v2656 = vsub.s32 %v2653, %v2655
  %v2657 = vrot.slane %v2648, %v2656
  %v2659 = vunpack.c.l.s4 1966171168
  %v2660 = vunpack.c.0.s8 %v2659
  %v2661 = vlaneseq
  %v2662 = vshrl.u32 %v2661, 7
  %v2663 = vsub.s32 %v2660, %v2662
  %v2664 = vrot.slane %v2649, %v2663
  %v2666 = vunpack.c.l.s4 1966171168
  %v2667 = vunpack.c.0.s8 %v2666
  %v2668 = vlaneseq
  %v2669 = vshrl.u32 %v2668, 7
  %v2670 = vsub.s32 %v2667, %v2669
  %v2671 = vrot.slane %v2650, %v2670
  %v2673 = vunpack.c.l.s4 1966171168
  %v2674 = vunpack.c.0.s8 %v2673
  %v2675 = vlaneseq
  %v2676 = vshrl.u32 %v2675, 7
  %v2677 = vsub.s32 %v2674, %v2676
  %v2678 = vrot.slane %v2598, %v2677
  %v2679 = vcombine.low %v2657, %v2664
  %v2680 = vcombine.low %v2671, %v2678
  %v2682 = vunpack.c.l.s4 1966171168
  %v2683 = vunpack.c.0.s8 %v2682
  %v2684 = vlaneseq
  %v2685 = vshrl.u32 %v2684, 7
  %v2686 = vsub.s32 %v2683, %v2685
  %v2687 = vrot.slane %v2679, %v2686
  %v2689 = vunpack.c.l.s4 1966171168
  %v2690 = vunpack.c.0.s8 %v2689
  %v2691 = vlaneseq
  %v2692 = vshrl.u32 %v2691, 7
  %v2693 = vsub.s32 %v2690, %v2692
  %v2694 = vrot.slane %v2680, %v2693
  %v2695 = vcombine.low %v2687, %v2694
  %v2703 = vunpack.c.l.b16 %v2589
  %v2704 = vunpack.c.l.b16 %v2590
  %v2705 = vunpack.c.l.b16 %v2591
  %v2706 = vunpack.c.l.b16 %v2592
  %v2707 = vunpack.c.l.b16 %v2593
  %v2708 = vunpack.c.l.b16 %v2594
  %v2709 = vunpack.c.l.b16 %v2595
  %v2710 = vpack.c.b16 %v2704, %v2703
  %v2711 = vpack.c.b16 %v2706, %v2705
  %v2712 = vpack.c.b16 %v2708, %v2707
  %v2713 = vpack.c.b16 %v2709, %v2709
  %v2718 = vsel %vm2303, %v2647, 0
  %v2721 = vsel %vm2303, %v2695, 0
  %v2724 = vsel %vm2310, %v2713, 0
  %2726 = vmatprep.subr.bf16.mxu0 0
  %2727 = vmatpush1.bf16.msra.mxu0 %v2710
  %2728 = vmatprep.subr.bf16.mxu0 0
  %2729 = vmatpush1.bf16.msra.mxu0 %v2711
  %2730 = vmatprep.subr.bf16.mxu0 0
  %2731 = vmatpush1.bf16.msra.mxu0 %v2712
  %2732 = vmatprep.subr.bf16.mxu0 0
  %2733 = vmatpush1.bf16.msra.mxu0 %v2724
  %2734 = vmatprep.subr.bf16.mxu0 0
  %2735 = vmatpush1.bf16.msra.mxu0 0
  %2736 = vmatprep.subr.bf16.mxu0 0
  %2737 = vmatpush1.bf16.msra.mxu0 0
  %2738 = vmatprep.subr.bf16.mxu0 0
  %2739 = vmatpush1.bf16.msra.mxu0 0
  %2740 = vmatprep.subr.bf16.mxu0 0
  %2741 = vmatpush1.bf16.msra.mxu0 0
  %2742 = vmatprep.subr.bf16.mxu0 0
  %2743 = vmatpush1.bf16.msra.mxu0 0
  %2744 = vmatprep.subr.bf16.mxu0 0
  %2745 = vmatpush1.bf16.msra.mxu0 0
  %2746 = vmatprep.subr.bf16.mxu0 0
  %2747 = vmatpush1.bf16.msra.mxu0 0
  %2748 = vmatprep.subr.bf16.mxu0 0
  %2749 = vmatpush1.bf16.msra.mxu0 0
  %2750 = vmatprep.subr.bf16.mxu0 0
  %2751 = vmatpush1.bf16.msra.mxu0 0
  %2752 = vmatprep.subr.bf16.mxu0 0
  %2753 = vmatpush1.bf16.msra.mxu0 0
  %2754 = vmatprep.subr.bf16.mxu0 0
  %2755 = vmatpush1.bf16.msra.mxu0 0
  %2756 = vmatprep.subr.bf16.mxu0 0
  %2757 = vmatpush1.bf16.msra.mxu0 0
  %2758 = vmatprep.mubr.bf16.mxu0 0
  %2759 = vmatmul.mubr.bf16.gmra.mrb[0].mxu0 %v2718
  %v2760 = vpop.f32.mrb[0].mxu0
  %v2761 = vadd.f32 0.0, %v2760
  %v2762 = vpop.f32.mrb[0].mxu0
  %v2763 = vpop.f32.mrb[0].mxu0
  %v2764 = vadd.f32 0.0, %v2763
  %v2765 = vpop.f32.mrb[0].mxu0
  %2766 = vmatprep.mubr.bf16.mxu0 0
  %2767 = vmatmul.mubr.bf16.gmra.mrb[0].mxu0 %v2721
  %v2768 = vpop.f32.mrb[0].mxu0
  %v2769 = vadd.f32 0.0, %v2768
  %v2770 = vpop.f32.mrb[0].mxu0
  %v2771 = vpop.f32.mrb[0].mxu0
  %v2772 = vadd.f32 0.0, %v2771
  %v2773 = vpop.f32.mrb[0].mxu0
  %2774 = vdwg.mxu0
  %v2775 = vadd.f32 %v2568, %v2761
  %v2776 = vadd.f32 %v2569, %v2764
  %v2777 = vadd.f32 %v2570, %v2769
  %v2778 = vadd.f32 %v2571, %v2772
  %v2783 = vcombine.high %v2775, %v2775
  %v2785 = vunpack.c.l.s4 1966171168
  %v2786 = vunpack.c.0.s8 %v2785
  %v2787 = vlaneseq
  %v2788 = vshrl.u32 %v2787, 7
  %v2789 = vsub.s32 %v2786, %v2788
  %v2790 = vrot.slane %v2775, %v2789
  %v2792 = vunpack.c.l.s4 1966171168
  %v2793 = vunpack.c.0.s8 %v2792
  %v2794 = vlaneseq
  %v2795 = vshrl.u32 %v2794, 7
  %v2796 = vsub.s32 %v2793, %v2795
  %v2797 = vrot.slane %v2783, %v2796
  %v2798 = vcombine.high %v2790, %v2790
  %v2799 = vcombine.high %v2797, %v2797
  %v2801 = vunpack.c.l.s4 1966171168
  %v2802 = vunpack.c.0.s8 %v2801
  %v2803 = vlaneseq
  %v2804 = vshrl.u32 %v2803, 7
  %v2805 = vsub.s32 %v2802, %v2804
  %v2806 = vrot.slane %v2790, %v2805
  %v2808 = vunpack.c.l.s4 1966171168
  %v2809 = vunpack.c.0.s8 %v2808
  %v2810 = vlaneseq
  %v2811 = vshrl.u32 %v2810, 7
  %v2812 = vsub.s32 %v2809, %v2811
  %v2813 = vrot.slane %v2797, %v2812
  %v2815 = vunpack.c.l.s4 1966171168
  %v2816 = vunpack.c.0.s8 %v2815
  %v2817 = vlaneseq
  %v2818 = vshrl.u32 %v2817, 7
  %v2819 = vsub.s32 %v2816, %v2818
  %v2820 = vrot.slane %v2798, %v2819
  %v2822 = vunpack.c.l.s4 1966171168
  %v2823 = vunpack.c.0.s8 %v2822
  %v2824 = vlaneseq
  %v2825 = vshrl.u32 %v2824, 7
  %v2826 = vsub.s32 %v2823, %v2825
  %v2827 = vrot.slane %v2799, %v2826
  %v2828 = vcombine.high %v2806, %v2806
  %v2829 = vcombine.high %v2813, %v2813
  %v2830 = vcombine.high %v2820, %v2820
  %v2831 = vcombine.high %v2827, %v2827
  %v2832 = vcombine.high %v2776, %v2776
  %v2834 = vunpack.c.l.s4 1966171168
  %v2835 = vunpack.c.0.s8 %v2834
  %v2836 = vlaneseq
  %v2837 = vshrl.u32 %v2836, 7
  %v2838 = vsub.s32 %v2835, %v2837
  %v2839 = vrot.slane %v2776, %v2838
  %v2841 = vunpack.c.l.s4 1966171168
  %v2842 = vunpack.c.0.s8 %v2841
  %v2843 = vlaneseq
  %v2844 = vshrl.u32 %v2843, 7
  %v2845 = vsub.s32 %v2842, %v2844
  %v2846 = vrot.slane %v2832, %v2845
  %v2847 = vcombine.high %v2839, %v2839
  %v2848 = vcombine.high %v2846, %v2846
  %v2850 = vunpack.c.l.s4 1966171168
  %v2851 = vunpack.c.0.s8 %v2850
  %v2852 = vlaneseq
  %v2853 = vshrl.u32 %v2852, 7
  %v2854 = vsub.s32 %v2851, %v2853
  %v2855 = vrot.slane %v2839, %v2854
  %v2857 = vunpack.c.l.s4 1966171168
  %v2858 = vunpack.c.0.s8 %v2857
  %v2859 = vlaneseq
  %v2860 = vshrl.u32 %v2859, 7
  %v2861 = vsub.s32 %v2858, %v2860
  %v2862 = vrot.slane %v2846, %v2861
  %v2864 = vunpack.c.l.s4 1966171168
  %v2865 = vunpack.c.0.s8 %v2864
  %v2866 = vlaneseq
  %v2867 = vshrl.u32 %v2866, 7
  %v2868 = vsub.s32 %v2865, %v2867
  %v2869 = vrot.slane %v2847, %v2868
  %v2871 = vunpack.c.l.s4 1966171168
  %v2872 = vunpack.c.0.s8 %v2871
  %v2873 = vlaneseq
  %v2874 = vshrl.u32 %v2873, 7
  %v2875 = vsub.s32 %v2872, %v2874
  %v2876 = vrot.slane %v2848, %v2875
  %v2877 = vcombine.high %v2855, %v2855
  %v2878 = vcombine.high %v2862, %v2862
  %v2879 = vcombine.high %v2869, %v2869
  %v2880 = vcombine.high %v2876, %v2876
  %v2881 = vcombine.high %v2777, %v2777
  %v2883 = vunpack.c.l.s4 1966171168
  %v2884 = vunpack.c.0.s8 %v2883
  %v2885 = vlaneseq
  %v2886 = vshrl.u32 %v2885, 7
  %v2887 = vsub.s32 %v2884, %v2886
  %v2888 = vrot.slane %v2777, %v2887
  %v2890 = vunpack.c.l.s4 1966171168
  %v2891 = vunpack.c.0.s8 %v2890
  %v2892 = vlaneseq
  %v2893 = vshrl.u32 %v2892, 7
  %v2894 = vsub.s32 %v2891, %v2893
  %v2895 = vrot.slane %v2881, %v2894
  %v2896 = vcombine.high %v2888, %v2888
  %v2897 = vcombine.high %v2895, %v2895
  %v2899 = vunpack.c.l.s4 1966171168
  %v2900 = vunpack.c.0.s8 %v2899
  %v2901 = vlaneseq
  %v2902 = vshrl.u32 %v2901, 7
  %v2903 = vsub.s32 %v2900, %v2902
  %v2904 = vrot.slane %v2888, %v2903
  %v2906 = vunpack.c.l.s4 1966171168
  %v2907 = vunpack.c.0.s8 %v2906
  %v2908 = vlaneseq
  %v2909 = vshrl.u32 %v2908, 7
  %v2910 = vsub.s32 %v2907, %v2909
  %v2911 = vrot.slane %v2895, %v2910
  %v2913 = vunpack.c.l.s4 1966171168
  %v2914 = vunpack.c.0.s8 %v2913
  %v2915 = vlaneseq
  %v2916 = vshrl.u32 %v2915, 7
  %v2917 = vsub.s32 %v2914, %v2916
  %v2918 = vrot.slane %v2896, %v2917
  %v2920 = vunpack.c.l.s4 1966171168
  %v2921 = vunpack.c.0.s8 %v2920
  %v2922 = vlaneseq
  %v2923 = vshrl.u32 %v2922, 7
  %v2924 = vsub.s32 %v2921, %v2923
  %v2925 = vrot.slane %v2897, %v2924
  %v2926 = vcombine.high %v2904, %v2904
  %v2927 = vcombine.high %v2911, %v2911
  %v2928 = vcombine.high %v2918, %v2918
  %v2929 = vcombine.high %v2925, %v2925
  %v2930 = vcombine.high %v2778, %v2778
  %v2932 = vunpack.c.l.s4 1966171168
  %v2933 = vunpack.c.0.s8 %v2932
  %v2934 = vlaneseq
  %v2935 = vshrl.u32 %v2934, 7
  %v2936 = vsub.s32 %v2933, %v2935
  %v2937 = vrot.slane %v2778, %v2936
  %v2939 = vunpack.c.l.s4 1966171168
  %v2940 = vunpack.c.0.s8 %v2939
  %v2941 = vlaneseq
  %v2942 = vshrl.u32 %v2941, 7
  %v2943 = vsub.s32 %v2940, %v2942
  %v2944 = vrot.slane %v2930, %v2943
  %v2945 = vcombine.high %v2937, %v2937
  %v2946 = vcombine.high %v2944, %v2944
  %v2948 = vunpack.c.l.s4 1966171168
  %v2949 = vunpack.c.0.s8 %v2948
  %v2950 = vlaneseq
  %v2951 = vshrl.u32 %v2950, 7
  %v2952 = vsub.s32 %v2949, %v2951
  %v2953 = vrot.slane %v2937, %v2952
  %v2955 = vunpack.c.l.s4 1966171168
  %v2956 = vunpack.c.0.s8 %v2955
  %v2957 = vlaneseq
  %v2958 = vshrl.u32 %v2957, 7
  %v2959 = vsub.s32 %v2956, %v2958
  %v2960 = vrot.slane %v2944, %v2959
  %v2962 = vunpack.c.l.s4 1966171168
  %v2963 = vunpack.c.0.s8 %v2962
  %v2964 = vlaneseq
  %v2965 = vshrl.u32 %v2964, 7
  %v2966 = vsub.s32 %v2963, %v2965
  %v2967 = vrot.slane %v2945, %v2966
  %v2969 = vunpack.c.l.s4 1966171168
  %v2970 = vunpack.c.0.s8 %v2969
  %v2971 = vlaneseq
  %v2972 = vshrl.u32 %v2971, 7
  %v2973 = vsub.s32 %v2970, %v2972
  %v2974 = vrot.slane %v2946, %v2973
  %v2975 = vcombine.high %v2953, %v2953
  %v2976 = vcombine.high %v2967, %v2967
  %v3007 = vmax.f32 %v2806, 0.0
  %v3008 = vmax.f32 %v2820, 0.0
  %v3009 = vmax.f32 %v2828, 0.0
  %v3010 = vmax.f32 %v2830, 0.0
  %v3011 = vmax.f32 %v2813, 0.0
  %v3012 = vmax.f32 %v2827, 0.0
  %v3013 = vmax.f32 %v2829, 0.0
  %v3014 = vmax.f32 %v2831, 0.0
  %v3015 = vmax.f32 %v2855, 0.0
  %v3016 = vmax.f32 %v2869, 0.0
  %v3017 = vmax.f32 %v2877, 0.0
  %v3018 = vmax.f32 %v2879, 0.0
  %v3019 = vmax.f32 %v2862, 0.0
  %v3020 = vmax.f32 %v2876, 0.0
  %v3021 = vmax.f32 %v2878, 0.0
  %v3022 = vmax.f32 %v2880, 0.0
  %v3023 = vmax.f32 %v2904, 0.0
  %v3024 = vmax.f32 %v2918, 0.0
  %v3025 = vmax.f32 %v2926, 0.0
  %v3026 = vmax.f32 %v2928, 0.0
  %v3027 = vmax.f32 %v2911, 0.0
  %v3028 = vmax.f32 %v2925, 0.0
  %v3029 = vmax.f32 %v2927, 0.0
  %v3030 = vmax.f32 %v2929, 0.0
  %v3031 = vmax.f32 %v2953, 0.0
  %v3032 = vmax.f32 %v2967, 0.0
  %v3033 = vmax.f32 %v2975, 0.0
  %v3034 = vmax.f32 %v2976, 0.0
  %v3035 = vmax.f32 %v2960, 0.0
  %v3036 = vmax.f32 %v2974, 0.0
  %v3065 = vcombine.low %v3008, %v3009
  %v3067 = vunpack.c.l.s4 1966171168
  %v3068 = vunpack.c.0.s8 %v3067
  %v3069 = vlaneseq
  %v3070 = vshrl.u32 %v3069, 7
  %v3071 = vsub.s32 %v3068, %v3070
  %v3072 = vrot.slane %v3065, %v3071
  %v3074 = vunpack.c.l.s4 1966171168
  %v3075 = vunpack.c.0.s8 %v3074
  %v3076 = vlaneseq
  %v3077 = vshrl.u32 %v3076, 7
  %v3078 = vsub.s32 %v3075, %v3077
  %v3079 = vrot.slane %v3072, %v3078
  %v3080 = vcombine.low %v3010, %v3011
  %v3082 = vunpack.c.l.s4 1966171168
  %v3083 = vunpack.c.0.s8 %v3082
  %v3084 = vlaneseq
  %v3085 = vshrl.u32 %v3084, 7
  %v3086 = vsub.s32 %v3083, %v3085
  %v3087 = vrot.slane %v3080, %v3086
  %v3089 = vunpack.c.l.s4 1966171168
  %v3090 = vunpack.c.0.s8 %v3089
  %v3091 = vlaneseq
  %v3092 = vshrl.u32 %v3091, 7
  %v3093 = vsub.s32 %v3090, %v3092
  %v3094 = vrot.slane %v3087, %v3093
  %v3095 = vcombine.low %v3012, %v3013
  %v3097 = vunpack.c.l.s4 1966171168
  %v3098 = vunpack.c.0.s8 %v3097
  %v3099 = vlaneseq
  %v3100 = vshrl.u32 %v3099, 7
  %v3101 = vsub.s32 %v3098, %v3100
  %v3102 = vrot.slane %v3095, %v3101
  %v3104 = vunpack.c.l.s4 1966171168
  %v3105 = vunpack.c.0.s8 %v3104
  %v3106 = vlaneseq
  %v3107 = vshrl.u32 %v3106, 7
  %v3108 = vsub.s32 %v3105, %v3107
  %v3109 = vrot.slane %v3102, %v3108
  %v3110 = vcombine.low %v3014, %v3015
  %v3112 = vunpack.c.l.s4 1966171168
  %v3113 = vunpack.c.0.s8 %v3112
  %v3114 = vlaneseq
  %v3115 = vshrl.u32 %v3114, 7
  %v3116 = vsub.s32 %v3113, %v3115
  %v3117 = vrot.slane %v3110, %v3116
  %v3119 = vunpack.c.l.s4 1966171168
  %v3120 = vunpack.c.0.s8 %v3119
  %v3121 = vlaneseq
  %v3122 = vshrl.u32 %v3121, 7
  %v3123 = vsub.s32 %v3120, %v3122
  %v3124 = vrot.slane %v3117, %v3123
  %v3125 = vcombine.low %v3016, %v3017
  %v3127 = vunpack.c.l.s4 1966171168
  %v3128 = vunpack.c.0.s8 %v3127
  %v3129 = vlaneseq
  %v3130 = vshrl.u32 %v3129, 7
  %v3131 = vsub.s32 %v3128, %v3130
  %v3132 = vrot.slane %v3125, %v3131
  %v3134 = vunpack.c.l.s4 1966171168
  %v3135 = vunpack.c.0.s8 %v3134
  %v3136 = vlaneseq
  %v3137 = vshrl.u32 %v3136, 7
  %v3138 = vsub.s32 %v3135, %v3137
  %v3139 = vrot.slane %v3132, %v3138
  %v3140 = vcombine.low %v3018, %v3019
  %v3142 = vunpack.c.l.s4 1966171168
  %v3143 = vunpack.c.0.s8 %v3142
  %v3144 = vlaneseq
  %v3145 = vshrl.u32 %v3144, 7
  %v3146 = vsub.s32 %v3143, %v3145
  %v3147 = vrot.slane %v3140, %v3146
  %v3149 = vunpack.c.l.s4 1966171168
  %v3150 = vunpack.c.0.s8 %v3149
  %v3151 = vlaneseq
  %v3152 = vshrl.u32 %v3151, 7
  %v3153 = vsub.s32 %v3150, %v3152
  %v3154 = vrot.slane %v3147, %v3153
  %v3155 = vcombine.low %v3020, %v3021
  %v3157 = vunpack.c.l.s4 1966171168
  %v3158 = vunpack.c.0.s8 %v3157
  %v3159 = vlaneseq
  %v3160 = vshrl.u32 %v3159, 7
  %v3161 = vsub.s32 %v3158, %v3160
  %v3162 = vrot.slane %v3155, %v3161
  %v3164 = vunpack.c.l.s4 1966171168
  %v3165 = vunpack.c.0.s8 %v3164
  %v3166 = vlaneseq
  %v3167 = vshrl.u32 %v3166, 7
  %v3168 = vsub.s32 %v3165, %v3167
  %v3169 = vrot.slane %v3162, %v3168
  %v3170 = vcombine.low %v3023, %v3024
  %v3172 = vunpack.c.l.s4 1966171168
  %v3173 = vunpack.c.0.s8 %v3172
  %v3174 = vlaneseq
  %v3175 = vshrl.u32 %v3174, 7
  %v3176 = vsub.s32 %v3173, %v3175
  %v3177 = vrot.slane %v3170, %v3176
  %v3179 = vunpack.c.l.s4 1966171168
  %v3180 = vunpack.c.0.s8 %v3179
  %v3181 = vlaneseq
  %v3182 = vshrl.u32 %v3181, 7
  %v3183 = vsub.s32 %v3180, %v3182
  %v3184 = vrot.slane %v3177, %v3183
  %v3185 = vcombine.low %v3025, %v3026
  %v3187 = vunpack.c.l.s4 1966171168
  %v3188 = vunpack.c.0.s8 %v3187
  %v3189 = vlaneseq
  %v3190 = vshrl.u32 %v3189, 7
  %v3191 = vsub.s32 %v3188, %v3190
  %v3192 = vrot.slane %v3185, %v3191
  %v3194 = vunpack.c.l.s4 1966171168
  %v3195 = vunpack.c.0.s8 %v3194
  %v3196 = vlaneseq
  %v3197 = vshrl.u32 %v3196, 7
  %v3198 = vsub.s32 %v3195, %v3197
  %v3199 = vrot.slane %v3192, %v3198
  %v3200 = vcombine.low %v3027, %v3028
  %v3202 = vunpack.c.l.s4 1966171168
  %v3203 = vunpack.c.0.s8 %v3202
  %v3204 = vlaneseq
  %v3205 = vshrl.u32 %v3204, 7
  %v3206 = vsub.s32 %v3203, %v3205
  %v3207 = vrot.slane %v3200, %v3206
  %v3209 = vunpack.c.l.s4 1966171168
  %v3210 = vunpack.c.0.s8 %v3209
  %v3211 = vlaneseq
  %v3212 = vshrl.u32 %v3211, 7
  %v3213 = vsub.s32 %v3210, %v3212
  %v3214 = vrot.slane %v3207, %v3213
  %v3215 = vcombine.low %v3029, %v3030
  %v3217 = vunpack.c.l.s4 1966171168
  %v3218 = vunpack.c.0.s8 %v3217
  %v3219 = vlaneseq
  %v3220 = vshrl.u32 %v3219, 7
  %v3221 = vsub.s32 %v3218, %v3220
  %v3222 = vrot.slane %v3215, %v3221
  %v3224 = vunpack.c.l.s4 1966171168
  %v3225 = vunpack.c.0.s8 %v3224
  %v3226 = vlaneseq
  %v3227 = vshrl.u32 %v3226, 7
  %v3228 = vsub.s32 %v3225, %v3227
  %v3229 = vrot.slane %v3222, %v3228
  %v3230 = vcombine.low %v3031, %v3032
  %v3232 = vunpack.c.l.s4 1966171168
  %v3233 = vunpack.c.0.s8 %v3232
  %v3234 = vlaneseq
  %v3235 = vshrl.u32 %v3234, 7
  %v3236 = vsub.s32 %v3233, %v3235
  %v3237 = vrot.slane %v3230, %v3236
  %v3239 = vunpack.c.l.s4 1966171168
  %v3240 = vunpack.c.0.s8 %v3239
  %v3241 = vlaneseq
  %v3242 = vshrl.u32 %v3241, 7
  %v3243 = vsub.s32 %v3240, %v3242
  %v3244 = vrot.slane %v3237, %v3243
  %v3245 = vcombine.low %v3033, %v3034
  %v3247 = vunpack.c.l.s4 1966171168
  %v3248 = vunpack.c.0.s8 %v3247
  %v3249 = vlaneseq
  %v3250 = vshrl.u32 %v3249, 7
  %v3251 = vsub.s32 %v3248, %v3250
  %v3252 = vrot.slane %v3245, %v3251
  %v3254 = vunpack.c.l.s4 1966171168
  %v3255 = vunpack.c.0.s8 %v3254
  %v3256 = vlaneseq
  %v3257 = vshrl.u32 %v3256, 7
  %v3258 = vsub.s32 %v3255, %v3257
  %v3259 = vrot.slane %v3252, %v3258
  %v3260 = vcombine.low %v3035, %v3036
  %v3262 = vunpack.c.l.s4 1966171168
  %v3263 = vunpack.c.0.s8 %v3262
  %v3264 = vlaneseq
  %v3265 = vshrl.u32 %v3264, 7
  %v3266 = vsub.s32 %v3263, %v3265
  %v3267 = vrot.slane %v3260, %v3266
  %v3269 = vunpack.c.l.s4 1966171168
  %v3270 = vunpack.c.0.s8 %v3269
  %v3271 = vlaneseq
  %v3272 = vshrl.u32 %v3271, 7
  %v3273 = vsub.s32 %v3270, %v3272
  %v3274 = vrot.slane %v3267, %v3273
  %vm3289 = vcmask 812032
  %v3290 = vsel %vm3289, %v3079, -inf
  %v3291 = vrot.slane %v3290, 4
  %v3292 = vmax.f32 %v3290, %v3291
  %v3293 = vrot.slane %v3292, 2
  %v3294 = vmax.f32 %v3292, %v3293
  %v3295 = vrot.slane %v3294, 1
  %v3296 = vmax.f32 %v3294, %v3295
  %v3297 = vsel %vm3289, %v3094, -inf
  %v3298 = vrot.slane %v3297, 4
  %v3299 = vmax.f32 %v3297, %v3298
  %v3300 = vrot.slane %v3299, 2
  %v3301 = vmax.f32 %v3299, %v3300
  %v3302 = vrot.slane %v3301, 1
  %v3303 = vmax.f32 %v3301, %v3302
  %v3304 = vsel %vm3289, %v3109, -inf
  %v3305 = vrot.slane %v3304, 4
  %v3306 = vmax.f32 %v3304, %v3305
  %v3307 = vrot.slane %v3306, 2
  %v3308 = vmax.f32 %v3306, %v3307
  %v3309 = vrot.slane %v3308, 1
  %v3310 = vmax.f32 %v3308, %v3309
  %v3311 = vsel %vm3289, %v3124, -inf
  %v3312 = vrot.slane %v3311, 4
  %v3313 = vmax.f32 %v3311, %v3312
  %v3314 = vrot.slane %v3313, 2
  %v3315 = vmax.f32 %v3313, %v3314
  %v3316 = vrot.slane %v3315, 1
  %v3317 = vmax.f32 %v3315, %v3316
  %v3318 = vsel %vm3289, %v3139, -inf
  %v3319 = vrot.slane %v3318, 4
  %v3320 = vmax.f32 %v3318, %v3319
  %v3321 = vrot.slane %v3320, 2
  %v3322 = vmax.f32 %v3320, %v3321
  %v3323 = vrot.slane %v3322, 1
  %v3324 = vmax.f32 %v3322, %v3323
  %v3325 = vsel %vm3289, %v3154, -inf
  %v3326 = vrot.slane %v3325, 4
  %v3327 = vmax.f32 %v3325, %v3326
  %v3328 = vrot.slane %v3327, 2
  %v3329 = vmax.f32 %v3327, %v3328
  %v3330 = vrot.slane %v3329, 1
  %v3331 = vmax.f32 %v3329, %v3330
  %v3332 = vsel %vm3289, %v3169, -inf
  %v3333 = vrot.slane %v3332, 4
  %v3334 = vmax.f32 %v3332, %v3333
  %v3335 = vrot.slane %v3334, 2
  %v3336 = vmax.f32 %v3334, %v3335
  %v3337 = vrot.slane %v3336, 1
  %v3338 = vmax.f32 %v3336, %v3337
  %v3339 = vsel %vm3289, %v3184, -inf
  %v3340 = vrot.slane %v3339, 4
  %v3341 = vmax.f32 %v3339, %v3340
  %v3342 = vrot.slane %v3341, 2
  %v3343 = vmax.f32 %v3341, %v3342
  %v3344 = vrot.slane %v3343, 1
  %v3345 = vmax.f32 %v3343, %v3344
  %v3346 = vsel %vm3289, %v3199, -inf
  %v3347 = vrot.slane %v3346, 4
  %v3348 = vmax.f32 %v3346, %v3347
  %v3349 = vrot.slane %v3348, 2
  %v3350 = vmax.f32 %v3348, %v3349
  %v3351 = vrot.slane %v3350, 1
  %v3352 = vmax.f32 %v3350, %v3351
  %v3353 = vsel %vm3289, %v3214, -inf
  %v3354 = vrot.slane %v3353, 4
  %v3355 = vmax.f32 %v3353, %v3354
  %v3356 = vrot.slane %v3355, 2
  %v3357 = vmax.f32 %v3355, %v3356
  %v3358 = vrot.slane %v3357, 1
  %v3359 = vmax.f32 %v3357, %v3358
  %v3360 = vsel %vm3289, %v3229, -inf
  %v3361 = vrot.slane %v3360, 4
  %v3362 = vmax.f32 %v3360, %v3361
  %v3363 = vrot.slane %v3362, 2
  %v3364 = vmax.f32 %v3362, %v3363
  %v3365 = vrot.slane %v3364, 1
  %v3366 = vmax.f32 %v3364, %v3365
  %v3367 = vsel %vm3289, %v3244, -inf
  %v3368 = vrot.slane %v3367, 4
  %v3369 = vmax.f32 %v3367, %v3368
  %v3370 = vrot.slane %v3369, 2
  %v3371 = vmax.f32 %v3369, %v3370
  %v3372 = vrot.slane %v3371, 1
  %v3373 = vmax.f32 %v3371, %v3372
  %v3374 = vsel %vm3289, %v3259, -inf
  %v3375 = vrot.slane %v3374, 4
  %v3376 = vmax.f32 %v3374, %v3375
  %v3377 = vrot.slane %v3376, 2
  %v3378 = vmax.f32 %v3376, %v3377
  %v3379 = vrot.slane %v3378, 1
  %v3380 = vmax.f32 %v3378, %v3379
  %v3381 = vsel %vm3289, %v3274, -inf
  %v3382 = vrot.slane %v3381, 4
  %v3383 = vmax.f32 %v3381, %v3382
  %v3384 = vrot.slane %v3383, 2
  %v3385 = vmax.f32 %v3383, %v3384
  %v3386 = vrot.slane %v3385, 1
  %v3387 = vmax.f32 %v3385, %v3386
  %v3402 = vsel %vm1986, %v3303, %v3296
  %v3403 = vsel %vm1988, %v3310, %v3402
  %v3404 = vsel %vm1990, %v3317, %v3403
  %v3405 = vsel %vm1992, %v3324, %v3404
  %v3406 = vsel %vm1994, %v3331, %v3405
  %v3407 = vsel %vm1996, %v3338, %v3406
  %v3408 = vsel %vm1986, %v3352, %v3345
  %v3409 = vsel %vm1988, %v3359, %v3408
  %v3410 = vsel %vm1990, %v3366, %v3409
  %v3411 = vsel %vm1992, %v3373, %v3410
  %v3412 = vsel %vm1994, %v3380, %v3411
  %v3413 = vsel %vm1996, %v3387, %v3412
  %v3416 = vsel %vm2310, %v3007, %v3407
  %v3417 = vsel %vm2310, %v3022, %v3413
  %v3418 = vpack.c.bf16 %v3416, %v3416
  %v3419 = vpack.c.bf16 %v3417, %v3417
  %v3421 = vshrl.u32 %v3418, 16
  %v3423 = vrot.slane %v3421, 7
  %v3424 = vshll.u32 %v3418, 16
  %v3426 = vor.u32 %v3423, %v3424
  %v3428 = vshrl.u32 %v3419, 16
  %v3430 = vrot.slane %v3428, 7
  %v3431 = vshll.u32 %v3419, 16
  %v3433 = vor.u32 %v3430, %v3431
  %v3436 = vsel %vm103, 0, %v3426
  %v3437 = vsel %vm103, 0, %v3433
  %vm3438 = vcmask 1044480
  %vm3439 = vsmask.f32 4352
  %vm3440 = vmand %vm3438, %vm3439
  %v3441 = vsel %vm3440, %v3436, 0
  %v3442 = vsel %vm3440, %v3437, 0
  %v3443 = vld [vmem:[%s6] sm:$0x3]
  %v3445 = vlaneseq
  %v3446 = vshrl.u32 %v3445, 7
  %v3447 = vsub.s32 0, %v3446
  %v3448 = vrot.slane %v3443, %v3447
  %v3449 = vlaneseq
  %v3450 = vshrl.u32 %v3449, 7
  %v3451 = vsub.s32 1, %v3450
  %v3452 = vrot.slane %v3443, %v3451
  %v3455 = vadd.f32 %v3448, 0.0
  %v3456 = vadd.f32 %v3452, 0.0
  %v3459 = vcombine.high %v3441, %v3441
  %v3461 = vunpack.c.l.s4 1966171168
  %v3462 = vunpack.c.0.s8 %v3461
  %v3463 = vlaneseq
  %v3464 = vshrl.u32 %v3463, 7
  %v3465 = vsub.s32 %v3462, %v3464
  %v3466 = vrot.slane %v3441, %v3465
  %v3468 = vunpack.c.l.s4 1966171168
  %v3469 = vunpack.c.0.s8 %v3468
  %v3470 = vlaneseq
  %v3471 = vshrl.u32 %v3470, 7
  %v3472 = vsub.s32 %v3469, %v3471
  %v3473 = vrot.slane %v3459, %v3472
  %v3474 = vcombine.high %v3466, %v3466
  %v3476 = vunpack.c.l.s4 1966171168
  %v3477 = vunpack.c.0.s8 %v3476
  %v3478 = vlaneseq
  %v3479 = vshrl.u32 %v3478, 7
  %v3480 = vsub.s32 %v3477, %v3479
  %v3481 = vrot.slane %v3466, %v3480
  %v3483 = vunpack.c.l.s4 1966171168
  %v3484 = vunpack.c.0.s8 %v3483
  %v3485 = vlaneseq
  %v3486 = vshrl.u32 %v3485, 7
  %v3487 = vsub.s32 %v3484, %v3486
  %v3488 = vrot.slane %v3473, %v3487
  %v3490 = vunpack.c.l.s4 1966171168
  %v3491 = vunpack.c.0.s8 %v3490
  %v3492 = vlaneseq
  %v3493 = vshrl.u32 %v3492, 7
  %v3494 = vsub.s32 %v3491, %v3493
  %v3495 = vrot.slane %v3474, %v3494
  %v3496 = vcombine.high %v3481, %v3481
  %v3497 = vcombine.high %v3495, %v3495
  %v3498 = vcombine.high %v3442, %v3442
  %v3500 = vunpack.c.l.s4 1966171168
  %v3501 = vunpack.c.0.s8 %v3500
  %v3502 = vlaneseq
  %v3503 = vshrl.u32 %v3502, 7
  %v3504 = vsub.s32 %v3501, %v3503
  %v3505 = vrot.slane %v3442, %v3504
  %v3507 = vunpack.c.l.s4 1966171168
  %v3508 = vunpack.c.0.s8 %v3507
  %v3509 = vlaneseq
  %v3510 = vshrl.u32 %v3509, 7
  %v3511 = vsub.s32 %v3508, %v3510
  %v3512 = vrot.slane %v3498, %v3511
  %v3513 = vcombine.high %v3505, %v3505
  %v3515 = vunpack.c.l.s4 1966171168
  %v3516 = vunpack.c.0.s8 %v3515
  %v3517 = vlaneseq
  %v3518 = vshrl.u32 %v3517, 7
  %v3519 = vsub.s32 %v3516, %v3518
  %v3520 = vrot.slane %v3505, %v3519
  %v3522 = vunpack.c.l.s4 1966171168
  %v3523 = vunpack.c.0.s8 %v3522
  %v3524 = vlaneseq
  %v3525 = vshrl.u32 %v3524, 7
  %v3526 = vsub.s32 %v3523, %v3525
  %v3527 = vrot.slane %v3512, %v3526
  %v3529 = vunpack.c.l.s4 1966171168
  %v3530 = vunpack.c.0.s8 %v3529
  %v3531 = vlaneseq
  %v3532 = vshrl.u32 %v3531, 7
  %v3533 = vsub.s32 %v3530, %v3532
  %v3534 = vrot.slane %v3513, %v3533
  %v3535 = vcombine.high %v3520, %v3520
  %v3536 = vcombine.high %v3534, %v3534
  %v3537 = vunpack.i.l.s16 %v3481
  %v3538 = vunpack.i.h.s16 %v3481
  %v3539 = vunpack.i.l.s16 %v3495
  %v3540 = vunpack.i.h.s16 %v3495
  %v3541 = vunpack.i.l.s16 %v3496
  %v3542 = vunpack.i.h.s16 %v3496
  %v3543 = vunpack.i.l.s16 %v3497
  %v3544 = vunpack.i.h.s16 %v3497
  %v3545 = vunpack.i.l.s16 %v3488
  %v3546 = vunpack.i.l.s16 %v3520
  %v3547 = vunpack.i.h.s16 %v3520
  %v3548 = vunpack.i.l.s16 %v3534
  %v3549 = vunpack.i.h.s16 %v3534
  %v3550 = vunpack.i.l.s16 %v3535
  %v3551 = vunpack.i.h.s16 %v3535
  %v3552 = vunpack.i.l.s16 %v3536
  %v3553 = vunpack.i.h.s16 %v3536
  %v3554 = vunpack.i.l.s16 %v3527
  %v3555 = vld [vmem:[%s5] sm:$0xff]
  %v3556 = vld [vmem:[%s5 + $0x8] sm:$0xff]
  %v3557 = vld [vmem:[%s5 + $0x10] sm:$0xff]
  %v3558 = vld [vmem:[%s5 + $0x18] sm:$0xff]
  %v3559 = vld [vmem:[%s5 + $0x20] sm:$0xff]
  %v3560 = vld [vmem:[%s5 + $0x28] sm:$0xff]
  %v3561 = vld [vmem:[%s5 + $0x30] sm:$0xff]
  %v3562 = vld [vmem:[%s5 + $0x38] sm:$0xff]
  %v3563 = vld [vmem:[%s5 + $0x40] sm:$0xff]
  %v3564 = vld [vmem:[%s5 + $0x48] sm:$0xff]
  %v3565 = vld [vmem:[%s5 + $0x50] sm:$0xff]
  %v3566 = vld [vmem:[%s5 + $0x58] sm:$0xff]
  %v3567 = vld [vmem:[%s5 + $0x60] sm:$0x33]
  %v3568 = vpack.i.b16 %v3538, %v3537
  %v3569 = vpack.i.b16 %v3540, %v3539
  %v3570 = vpack.i.b16 %v3542, %v3541
  %v3571 = vpack.i.b16 %v3544, %v3543
  %v3572 = vpack.i.b16 %v3546, %v3545
  %v3573 = vpack.i.b16 %v3548, %v3547
  %v3574 = vpack.i.b16 %v3550, %v3549
  %v3575 = vpack.i.b16 %v3552, %v3551
  %v3576 = vpack.i.b16 %v3554, %v3553
  %v3577 = vcombine.low %v3568, %v3569
  %v3578 = vcombine.low %v3570, %v3571
  %v3579 = vcombine.low %v3572, %v3573
  %v3580 = vcombine.low %v3574, %v3575
  %v3582 = vunpack.c.l.s4 1966171168
  %v3583 = vunpack.c.0.s8 %v3582
  %v3584 = vlaneseq
  %v3585 = vshrl.u32 %v3584, 7
  %v3586 = vsub.s32 %v3583, %v3585
  %v3587 = vrot.slane %v3577, %v3586
  %v3589 = vunpack.c.l.s4 1966171168
  %v3590 = vunpack.c.0.s8 %v3589
  %v3591 = vlaneseq
  %v3592 = vshrl.u32 %v3591, 7
  %v3593 = vsub.s32 %v3590, %v3592
  %v3594 = vrot.slane %v3578, %v3593
  %v3596 = vunpack.c.l.s4 1966171168
  %v3597 = vunpack.c.0.s8 %v3596
  %v3598 = vlaneseq
  %v3599 = vshrl.u32 %v3598, 7
  %v3600 = vsub.s32 %v3597, %v3599
  %v3601 = vrot.slane %v3579, %v3600
  %v3603 = vunpack.c.l.s4 1966171168
  %v3604 = vunpack.c.0.s8 %v3603
  %v3605 = vlaneseq
  %v3606 = vshrl.u32 %v3605, 7
  %v3607 = vsub.s32 %v3604, %v3606
  %v3608 = vrot.slane %v3580, %v3607
  %v3609 = vcombine.low %v3587, %v3594
  %v3610 = vcombine.low %v3601, %v3608
  %v3612 = vunpack.c.l.s4 1966171168
  %v3613 = vunpack.c.0.s8 %v3612
  %v3614 = vlaneseq
  %v3615 = vshrl.u32 %v3614, 7
  %v3616 = vsub.s32 %v3613, %v3615
  %v3617 = vrot.slane %v3609, %v3616
  %v3619 = vunpack.c.l.s4 1966171168
  %v3620 = vunpack.c.0.s8 %v3619
  %v3621 = vlaneseq
  %v3622 = vshrl.u32 %v3621, 7
  %v3623 = vsub.s32 %v3620, %v3622
  %v3624 = vrot.slane %v3610, %v3623
  %v3625 = vcombine.low %v3617, %v3624
  %v3627 = vunpack.c.l.s4 1966171168
  %v3628 = vunpack.c.0.s8 %v3627
  %v3629 = vlaneseq
  %v3630 = vshrl.u32 %v3629, 7
  %v3631 = vsub.s32 %v3628, %v3630
  %v3632 = vrot.slane %v3576, %v3631
  %v3634 = vunpack.c.l.s4 1966171168
  %v3635 = vunpack.c.0.s8 %v3634
  %v3636 = vlaneseq
  %v3637 = vshrl.u32 %v3636, 7
  %v3638 = vsub.s32 %v3635, %v3637
  %v3639 = vrot.slane %v3632, %v3638
  %v3653 = vunpack.c.l.b16 %v3555
  %v3654 = vunpack.c.h.b16 %v3555
  %v3655 = vunpack.c.l.b16 %v3556
  %v3656 = vunpack.c.h.b16 %v3556
  %v3657 = vunpack.c.l.b16 %v3557
  %v3658 = vunpack.c.h.b16 %v3557
  %v3659 = vunpack.c.l.b16 %v3558
  %v3660 = vunpack.c.h.b16 %v3558
  %v3661 = vunpack.c.l.b16 %v3559
  %v3662 = vunpack.c.h.b16 %v3559
  %v3663 = vunpack.c.l.b16 %v3560
  %v3664 = vunpack.c.h.b16 %v3560
  %v3665 = vunpack.c.l.b16 %v3561
  %v3666 = vunpack.c.h.b16 %v3561
  %v3667 = vunpack.c.l.b16 %v3562
  %v3668 = vunpack.c.h.b16 %v3562
  %v3669 = vunpack.c.l.b16 %v3563
  %v3670 = vunpack.c.h.b16 %v3563
  %v3671 = vunpack.c.l.b16 %v3564
  %v3672 = vunpack.c.h.b16 %v3564
  %v3673 = vunpack.c.l.b16 %v3565
  %v3674 = vunpack.c.h.b16 %v3565
  %v3675 = vunpack.c.l.b16 %v3566
  %v3676 = vunpack.c.h.b16 %v3566
  %v3677 = vunpack.c.l.b16 %v3567
  %v3678 = vunpack.c.h.b16 %v3567
  %v3679 = vpack.c.b16 %v3655, %v3653
  %v3680 = vpack.c.b16 %v3656, %v3654
  %v3681 = vpack.c.b16 %v3659, %v3657
  %v3682 = vpack.c.b16 %v3660, %v3658
  %v3683 = vpack.c.b16 %v3663, %v3661
  %v3684 = vpack.c.b16 %v3664, %v3662
  %v3685 = vpack.c.b16 %v3667, %v3665
  %v3686 = vpack.c.b16 %v3668, %v3666
  %v3687 = vpack.c.b16 %v3671, %v3669
  %v3688 = vpack.c.b16 %v3672, %v3670
  %v3689 = vpack.c.b16 %v3675, %v3673
  %v3690 = vpack.c.b16 %v3676, %v3674
  %v3691 = vpack.c.b16 %v3677, %v3677
  %v3692 = vpack.c.b16 %v3678, %v3678
  %vm3705 = vcmask 818176
  %v3707 = vsel %vm3705, %v3625, 0
  %v3710 = vsel %vm3705, %v3639, 0
  %vm3712 = vcmask 1041408
  %v3714 = vsel %vm3712, %v3691, 0
  %v3717 = vsel %vm3712, %v3692, 0
  %3719 = vmatprep.subr.bf16.mxu0 %v3680
  %3720 = vmatpush1.bf16.msra.mxu0 %v3679
  %3721 = vmatprep.subr.bf16.mxu0 %v3682
  %3722 = vmatpush1.bf16.msra.mxu0 %v3681
  %3723 = vmatprep.subr.bf16.mxu0 %v3684
  %3724 = vmatpush1.bf16.msra.mxu0 %v3683
  %3725 = vmatprep.subr.bf16.mxu0 %v3686
  %3726 = vmatpush1.bf16.msra.mxu0 %v3685
  %3727 = vmatprep.subr.bf16.mxu0 %v3688
  %3728 = vmatpush1.bf16.msra.mxu0 %v3687
  %3729 = vmatprep.subr.bf16.mxu0 %v3690
  %3730 = vmatpush1.bf16.msra.mxu0 %v3689
  %3731 = vmatprep.subr.bf16.mxu0 %v3717
  %3732 = vmatpush1.bf16.msra.mxu0 %v3714
  %3733 = vmatprep.subr.bf16.mxu0 0
  %3734 = vmatpush1.bf16.msra.mxu0 0
  %3735 = vmatprep.subr.bf16.mxu0 0
  %3736 = vmatpush1.bf16.msra.mxu0 0
  %3737 = vmatprep.subr.bf16.mxu0 0
  %3738 = vmatpush1.bf16.msra.mxu0 0
  %3739 = vmatprep.subr.bf16.mxu0 0
  %3740 = vmatpush1.bf16.msra.mxu0 0
  %3741 = vmatprep.subr.bf16.mxu0 0
  %3742 = vmatpush1.bf16.msra.mxu0 0
  %3743 = vmatprep.subr.bf16.mxu0 0
  %3744 = vmatpush1.bf16.msra.mxu0 0
  %3745 = vmatprep.subr.bf16.mxu0 0
  %3746 = vmatpush1.bf16.msra.mxu0 0
  %3747 = vmatprep.subr.bf16.mxu0 0
  %3748 = vmatpush1.bf16.msra.mxu0 0
  %3749 = vmatprep.subr.bf16.mxu0 0
  %3750 = vmatpush1.bf16.msra.mxu0 0
  %3751 = vmatprep.mubr.bf16.mxu0 0
  %3752 = vmatmul.mubr.bf16.gmra.mrb[0].mxu0 %v3707
  %v3753 = vpop.f32.mrb[0].mxu0
  %v3754 = vadd.f32 0.0, %v3753
  %v3755 = vpop.f32.mrb[0].mxu0
  %v3756 = vadd.f32 0.0, %v3755
  %v3757 = vpop.f32.mrb[0].mxu0
  %v3758 = vadd.f32 0.0, %v3757
  %v3759 = vpop.f32.mrb[0].mxu0
  %v3760 = vadd.f32 0.0, %v3759
  %3761 = vmatprep.mubr.bf16.mxu0 0
  %3762 = vmatmul.mubr.bf16.gmra.mrb[0].mxu0 %v3710
  %v3763 = vpop.f32.mrb[0].mxu0
  %v3764 = vadd.f32 0.0, %v3763
  %v3765 = vpop.f32.mrb[0].mxu0
  %v3766 = vadd.f32 0.0, %v3765
  %v3767 = vpop.f32.mrb[0].mxu0
  %v3768 = vpop.f32.mrb[0].mxu0
  %3769 = vdwg.mxu0
  %v3770 = vadd.f32 %v3455, %v3754
  %v3771 = vadd.f32 %v3456, %v3756
  %v3772 = vadd.f32 %v3455, %v3758
  %v3773 = vadd.f32 %v3456, %v3760
  %v3774 = vadd.f32 %v3455, %v3764
  %v3775 = vadd.f32 %v3456, %v3766
  %v3776 = vunpack.i.h.s16 %v3488
  %v3777 = vunpack.i.h.s16 %v3527
  %s3778 = scalar_lea.vmem %s5, 104
  %v3779 = vld [vmem:[%s3778] sm:$0xff]
  %v3780 = vld [vmem:[%s3778 + $0x8] sm:$0xff]
  %v3781 = vld [vmem:[%s3778 + $0x10] sm:$0xff]
  %v3782 = vld [vmem:[%s3778 + $0x18] sm:$0xff]
  %v3783 = vld [vmem:[%s3778 + $0x20] sm:$0xff]
  %v3784 = vld [vmem:[%s3778 + $0x28] sm:$0xff]
  %v3785 = vld [vmem:[%s3778 + $0x30] sm:$0xff]
  %v3786 = vld [vmem:[%s3778 + $0x38] sm:$0xff]
  %v3787 = vld [vmem:[%s3778 + $0x40] sm:$0xff]
  %v3788 = vld [vmem:[%s3778 + $0x48] sm:$0xff]
  %v3789 = vld [vmem:[%s3778 + $0x50] sm:$0xff]
  %v3790 = vld [vmem:[%s3778 + $0x58] sm:$0xff]
  %v3791 = vld [vmem:[%s3778 + $0x60] sm:$0x33]
  %v3792 = vpack.i.b16 %v3539, %v3538
  %v3793 = vpack.i.b16 %v3541, %v3540
  %v3794 = vpack.i.b16 %v3543, %v3542
  %v3795 = vpack.i.b16 %v3545, %v3544
  %v3796 = vpack.i.b16 %v3547, %v3776
  %v3797 = vpack.i.b16 %v3549, %v3548
  %v3798 = vpack.i.b16 %v3551, %v3550
  %v3799 = vpack.i.b16 %v3553, %v3552
  %v3800 = vpack.i.b16 %v3777, %v3554
  %v3801 = vcombine.low %v3792, %v3793
  %v3802 = vcombine.low %v3794, %v3795
  %v3803 = vcombine.low %v3796, %v3797
  %v3804 = vcombine.low %v3798, %v3799
  %v3806 = vunpack.c.l.s4 1966171168
  %v3807 = vunpack.c.0.s8 %v3806
  %v3808 = vlaneseq
  %v3809 = vshrl.u32 %v3808, 7
  %v3810 = vsub.s32 %v3807, %v3809
  %v3811 = vrot.slane %v3801, %v3810
  %v3813 = vunpack.c.l.s4 1966171168
  %v3814 = vunpack.c.0.s8 %v3813
  %v3815 = vlaneseq
  %v3816 = vshrl.u32 %v3815, 7
  %v3817 = vsub.s32 %v3814, %v3816
  %v3818 = vrot.slane %v3802, %v3817
  %v3820 = vunpack.c.l.s4 1966171168
  %v3821 = vunpack.c.0.s8 %v3820
  %v3822 = vlaneseq
  %v3823 = vshrl.u32 %v3822, 7
  %v3824 = vsub.s32 %v3821, %v3823
  %v3825 = vrot.slane %v3803, %v3824
  %v3827 = vunpack.c.l.s4 1966171168
  %v3828 = vunpack.c.0.s8 %v3827
  %v3829 = vlaneseq
  %v3830 = vshrl.u32 %v3829, 7
  %v3831 = vsub.s32 %v3828, %v3830
  %v3832 = vrot.slane %v3804, %v3831
  %v3833 = vcombine.low %v3811, %v3818
  %v3834 = vcombine.low %v3825, %v3832
  %v3836 = vunpack.c.l.s4 1966171168
  %v3837 = vunpack.c.0.s8 %v3836
  %v3838 = vlaneseq
  %v3839 = vshrl.u32 %v3838, 7
  %v3840 = vsub.s32 %v3837, %v3839
  %v3841 = vrot.slane %v3833, %v3840
  %v3843 = vunpack.c.l.s4 1966171168
  %v3844 = vunpack.c.0.s8 %v3843
  %v3845 = vlaneseq
  %v3846 = vshrl.u32 %v3845, 7
  %v3847 = vsub.s32 %v3844, %v3846
  %v3848 = vrot.slane %v3834, %v3847
  %v3849 = vcombine.low %v3841, %v3848
  %v3851 = vunpack.c.l.s4 1966171168
  %v3852 = vunpack.c.0.s8 %v3851
  %v3853 = vlaneseq
  %v3854 = vshrl.u32 %v3853, 7
  %v3855 = vsub.s32 %v3852, %v3854
  %v3856 = vrot.slane %v3800, %v3855
  %v3858 = vunpack.c.l.s4 1966171168
  %v3859 = vunpack.c.0.s8 %v3858
  %v3860 = vlaneseq
  %v3861 = vshrl.u32 %v3860, 7
  %v3862 = vsub.s32 %v3859, %v3861
  %v3863 = vrot.slane %v3856, %v3862
  %v3877 = vunpack.c.l.b16 %v3779
  %v3878 = vunpack.c.h.b16 %v3779
  %v3879 = vunpack.c.l.b16 %v3780
  %v3880 = vunpack.c.h.b16 %v3780
  %v3881 = vunpack.c.l.b16 %v3781
  %v3882 = vunpack.c.h.b16 %v3781
  %v3883 = vunpack.c.l.b16 %v3782
  %v3884 = vunpack.c.h.b16 %v3782
  %v3885 = vunpack.c.l.b16 %v3783
  %v3886 = vunpack.c.h.b16 %v3783
  %v3887 = vunpack.c.l.b16 %v3784
  %v3888 = vunpack.c.h.b16 %v3784
  %v3889 = vunpack.c.l.b16 %v3785
  %v3890 = vunpack.c.h.b16 %v3785
  %v3891 = vunpack.c.l.b16 %v3786
  %v3892 = vunpack.c.h.b16 %v3786
  %v3893 = vunpack.c.l.b16 %v3787
  %v3894 = vunpack.c.h.b16 %v3787
  %v3895 = vunpack.c.l.b16 %v3788
  %v3896 = vunpack.c.h.b16 %v3788
  %v3897 = vunpack.c.l.b16 %v3789
  %v3898 = vunpack.c.h.b16 %v3789
  %v3899 = vunpack.c.l.b16 %v3790
  %v3900 = vunpack.c.h.b16 %v3790
  %v3901 = vunpack.c.l.b16 %v3791
  %v3902 = vunpack.c.h.b16 %v3791
  %v3903 = vpack.c.b16 %v3879, %v3877
  %v3904 = vpack.c.b16 %v3880, %v3878
  %v3905 = vpack.c.b16 %v3883, %v3881
  %v3906 = vpack.c.b16 %v3884, %v3882
  %v3907 = vpack.c.b16 %v3887, %v3885
  %v3908 = vpack.c.b16 %v3888, %v3886
  %v3909 = vpack.c.b16 %v3891, %v3889
  %v3910 = vpack.c.b16 %v3892, %v3890
  %v3911 = vpack.c.b16 %v3895, %v3893
  %v3912 = vpack.c.b16 %v3896, %v3894
  %v3913 = vpack.c.b16 %v3899, %v3897
  %v3914 = vpack.c.b16 %v3900, %v3898
  %v3915 = vpack.c.b16 %v3901, %v3901
  %v3916 = vpack.c.b16 %v3902, %v3902
  %v3930 = vsel %vm3705, %v3849, 0
  %v3933 = vsel %vm3705, %v3863, 0
  %v3936 = vsel %vm3712, %v3915, 0
  %v3939 = vsel %vm3712, %v3916, 0
  %3941 = vmatprep.subr.bf16.mxu0 %v3904
  %3942 = vmatpush1.bf16.msra.mxu0 %v3903
  %3943 = vmatprep.subr.bf16.mxu0 %v3906
  %3944 = vmatpush1.bf16.msra.mxu0 %v3905
  %3945 = vmatprep.subr.bf16.mxu0 %v3908
  %3946 = vmatpush1.bf16.msra.mxu0 %v3907
  %3947 = vmatprep.subr.bf16.mxu0 %v3910
  %3948 = vmatpush1.bf16.msra.mxu0 %v3909
  %3949 = vmatprep.subr.bf16.mxu0 %v3912
  %3950 = vmatpush1.bf16.msra.mxu0 %v3911
  %3951 = vmatprep.subr.bf16.mxu0 %v3914
  %3952 = vmatpush1.bf16.msra.mxu0 %v3913
  %3953 = vmatprep.subr.bf16.mxu0 %v3939
  %3954 = vmatpush1.bf16.msra.mxu0 %v3936
  %3955 = vmatprep.subr.bf16.mxu0 0
  %3956 = vmatpush1.bf16.msra.mxu0 0
  %3957 = vmatprep.subr.bf16.mxu0 0
  %3958 = vmatpush1.bf16.msra.mxu0 0
  %3959 = vmatprep.subr.bf16.mxu0 0
  %3960 = vmatpush1.bf16.msra.mxu0 0
  %3961 = vmatprep.subr.bf16.mxu0 0
  %3962 = vmatpush1.bf16.msra.mxu0 0
  %3963 = vmatprep.subr.bf16.mxu0 0
  %3964 = vmatpush1.bf16.msra.mxu0 0
  %3965 = vmatprep.subr.bf16.mxu0 0
  %3966 = vmatpush1.bf16.msra.mxu0 0
  %3967 = vmatprep.subr.bf16.mxu0 0
  %3968 = vmatpush1.bf16.msra.mxu0 0
  %3969 = vmatprep.subr.bf16.mxu0 0
  %3970 = vmatpush1.bf16.msra.mxu0 0
  %3971 = vmatprep.subr.bf16.mxu0 0
  %3972 = vmatpush1.bf16.msra.mxu0 0
  %3973 = vmatprep.mubr.bf16.mxu0 0
  %3974 = vmatmul.mubr.bf16.gmra.mrb[0].mxu0 %v3930
  %v3975 = vpop.f32.mrb[0].mxu0
  %v3976 = vadd.f32 0.0, %v3975
  %v3977 = vpop.f32.mrb[0].mxu0
  %v3978 = vadd.f32 0.0, %v3977
  %v3979 = vpop.f32.mrb[0].mxu0
  %v3980 = vadd.f32 0.0, %v3979
  %v3981 = vpop.f32.mrb[0].mxu0
  %v3982 = vadd.f32 0.0, %v3981
  %3983 = vmatprep.mubr.bf16.mxu0 0
  %3984 = vmatmul.mubr.bf16.gmra.mrb[0].mxu0 %v3933
  %v3985 = vpop.f32.mrb[0].mxu0
  %v3986 = vadd.f32 0.0, %v3985
  %v3987 = vpop.f32.mrb[0].mxu0
  %v3988 = vadd.f32 0.0, %v3987
  %v3989 = vpop.f32.mrb[0].mxu0
  %v3990 = vpop.f32.mrb[0].mxu0
  %3991 = vdwg.mxu0
  %v3992 = vadd.f32 %v3770, %v3976
  %v3993 = vadd.f32 %v3771, %v3978
  %v3994 = vadd.f32 %v3772, %v3980
  %v3995 = vadd.f32 %v3773, %v3982
  %v3996 = vadd.f32 %v3774, %v3986
  %v3997 = vadd.f32 %v3775, %v3988
  %v4004 = vcombine.low %v3992, %v3993
  %v4005 = vcombine.high %v3992, %v3993
  %v4007 = vunpack.c.l.s4 1966171168
  %v4008 = vunpack.c.0.s8 %v4007
  %v4009 = vlaneseq
  %v4010 = vshrl.u32 %v4009, 7
  %v4011 = vsub.s32 %v4008, %v4010
  %v4012 = vrot.slane %v4004, %v4011
  %v4014 = vunpack.c.l.s4 1966171168
  %v4015 = vunpack.c.0.s8 %v4014
  %v4016 = vlaneseq
  %v4017 = vshrl.u32 %v4016, 7
  %v4018 = vsub.s32 %v4015, %v4017
  %v4019 = vrot.slane %v4005, %v4018
  %v4020 = vcombine.high %v4012, %v4012
  %v4021 = vcombine.high %v4019, %v4019
  %v4023 = vunpack.c.l.s4 1966171168
  %v4024 = vunpack.c.0.s8 %v4023
  %v4025 = vlaneseq
  %v4026 = vshrl.u32 %v4025, 7
  %v4027 = vsub.s32 %v4024, %v4026
  %v4028 = vrot.slane %v4012, %v4027
  %v4030 = vunpack.c.l.s4 1966171168
  %v4031 = vunpack.c.0.s8 %v4030
  %v4032 = vlaneseq
  %v4033 = vshrl.u32 %v4032, 7
  %v4034 = vsub.s32 %v4031, %v4033
  %v4035 = vrot.slane %v4019, %v4034
  %v4037 = vunpack.c.l.s4 1966171168
  %v4038 = vunpack.c.0.s8 %v4037
  %v4039 = vlaneseq
  %v4040 = vshrl.u32 %v4039, 7
  %v4041 = vsub.s32 %v4038, %v4040
  %v4042 = vrot.slane %v4020, %v4041
  %v4044 = vunpack.c.l.s4 1966171168
  %v4045 = vunpack.c.0.s8 %v4044
  %v4046 = vlaneseq
  %v4047 = vshrl.u32 %v4046, 7
  %v4048 = vsub.s32 %v4045, %v4047
  %v4049 = vrot.slane %v4021, %v4048
  %v4050 = vcombine.high %v4028, %v4028
  %v4051 = vcombine.high %v4035, %v4035
  %v4052 = vcombine.high %v4042, %v4042
  %v4053 = vcombine.high %v4049, %v4049
  %v4054 = vcombine.low %v3994, %v3995
  %v4055 = vcombine.high %v3994, %v3995
  %v4057 = vunpack.c.l.s4 1966171168
  %v4058 = vunpack.c.0.s8 %v4057
  %v4059 = vlaneseq
  %v4060 = vshrl.u32 %v4059, 7
  %v4061 = vsub.s32 %v4058, %v4060
  %v4062 = vrot.slane %v4054, %v4061
  %v4064 = vunpack.c.l.s4 1966171168
  %v4065 = vunpack.c.0.s8 %v4064
  %v4066 = vlaneseq
  %v4067 = vshrl.u32 %v4066, 7
  %v4068 = vsub.s32 %v4065, %v4067
  %v4069 = vrot.slane %v4055, %v4068
  %v4070 = vcombine.high %v4062, %v4062
  %v4071 = vcombine.high %v4069, %v4069
  %v4073 = vunpack.c.l.s4 1966171168
  %v4074 = vunpack.c.0.s8 %v4073
  %v4075 = vlaneseq
  %v4076 = vshrl.u32 %v4075, 7
  %v4077 = vsub.s32 %v4074, %v4076
  %v4078 = vrot.slane %v4062, %v4077
  %v4080 = vunpack.c.l.s4 1966171168
  %v4081 = vunpack.c.0.s8 %v4080
  %v4082 = vlaneseq
  %v4083 = vshrl.u32 %v4082, 7
  %v4084 = vsub.s32 %v4081, %v4083
  %v4085 = vrot.slane %v4069, %v4084
  %v4087 = vunpack.c.l.s4 1966171168
  %v4088 = vunpack.c.0.s8 %v4087
  %v4089 = vlaneseq
  %v4090 = vshrl.u32 %v4089, 7
  %v4091 = vsub.s32 %v4088, %v4090
  %v4092 = vrot.slane %v4070, %v4091
  %v4094 = vunpack.c.l.s4 1966171168
  %v4095 = vunpack.c.0.s8 %v4094
  %v4096 = vlaneseq
  %v4097 = vshrl.u32 %v4096, 7
  %v4098 = vsub.s32 %v4095, %v4097
  %v4099 = vrot.slane %v4071, %v4098
  %v4100 = vcombine.high %v4078, %v4078
  %v4101 = vcombine.high %v4085, %v4085
  %v4102 = vcombine.high %v4092, %v4092
  %v4103 = vcombine.high %v4099, %v4099
  %v4104 = vcombine.low %v3996, %v3997
  %v4106 = vunpack.c.l.s4 1966171168
  %v4107 = vunpack.c.0.s8 %v4106
  %v4108 = vlaneseq
  %v4109 = vshrl.u32 %v4108, 7
  %v4110 = vsub.s32 %v4107, %v4109
  %v4111 = vrot.slane %v4104, %v4110
  %v4113 = vunpack.c.l.s4 1966171168
  %v4114 = vunpack.c.0.s8 %v4113
  %v4115 = vlaneseq
  %v4116 = vshrl.u32 %v4115, 7
  %v4117 = vsub.s32 %v4114, %v4116
  %v4118 = vrot.slane %v4111, %v4117
  %v4135 = vmax.f32 %v4028, 0.0
  %v4136 = vmax.f32 %v4042, 0.0
  %v4137 = vmax.f32 %v4050, 0.0
  %v4138 = vmax.f32 %v4052, 0.0
  %v4139 = vmax.f32 %v4035, 0.0
  %v4140 = vmax.f32 %v4049, 0.0
  %v4141 = vmax.f32 %v4051, 0.0
  %v4142 = vmax.f32 %v4053, 0.0
  %v4143 = vmax.f32 %v4092, 0.0
  %v4144 = vmax.f32 %v4100, 0.0
  %v4145 = vmax.f32 %v4102, 0.0
  %v4146 = vmax.f32 %v4085, 0.0
  %v4147 = vmax.f32 %v4099, 0.0
  %v4148 = vmax.f32 %v4101, 0.0
  %v4149 = vmax.f32 %v4103, 0.0
  %v4150 = vmax.f32 %v4118, 0.0
  %v4167 = vcombine.low %v4135, %v4136
  %v4169 = vunpack.c.l.s4 1966171168
  %v4170 = vunpack.c.0.s8 %v4169
  %v4171 = vlaneseq
  %v4172 = vshrl.u32 %v4171, 7
  %v4173 = vsub.s32 %v4170, %v4172
  %v4174 = vrot.slane %v4167, %v4173
  %v4175 = vcombine.high %v4174, %v4174
  %v4177 = vunpack.c.l.s4 1966171168
  %v4178 = vunpack.c.0.s8 %v4177
  %v4179 = vlaneseq
  %v4180 = vshrl.u32 %v4179, 7
  %v4181 = vsub.s32 %v4178, %v4180
  %v4182 = vrot.slane %v4174, %v4181
  %v4184 = vunpack.c.l.s4 1966171168
  %v4185 = vunpack.c.0.s8 %v4184
  %v4186 = vlaneseq
  %v4187 = vshrl.u32 %v4186, 7
  %v4188 = vsub.s32 %v4185, %v4187
  %v4189 = vrot.slane %v4175, %v4188
  %v4190 = vcombine.low %v4137, %v4138
  %v4192 = vunpack.c.l.s4 1966171168
  %v4193 = vunpack.c.0.s8 %v4192
  %v4194 = vlaneseq
  %v4195 = vshrl.u32 %v4194, 7
  %v4196 = vsub.s32 %v4193, %v4195
  %v4197 = vrot.slane %v4190, %v4196
  %v4198 = vcombine.high %v4197, %v4197
  %v4200 = vunpack.c.l.s4 1966171168
  %v4201 = vunpack.c.0.s8 %v4200
  %v4202 = vlaneseq
  %v4203 = vshrl.u32 %v4202, 7
  %v4204 = vsub.s32 %v4201, %v4203
  %v4205 = vrot.slane %v4197, %v4204
  %v4207 = vunpack.c.l.s4 1966171168
  %v4208 = vunpack.c.0.s8 %v4207
  %v4209 = vlaneseq
  %v4210 = vshrl.u32 %v4209, 7
  %v4211 = vsub.s32 %v4208, %v4210
  %v4212 = vrot.slane %v4198, %v4211
  %v4213 = vcombine.low %v4139, %v4140
  %v4215 = vunpack.c.l.s4 1966171168
  %v4216 = vunpack.c.0.s8 %v4215
  %v4217 = vlaneseq
  %v4218 = vshrl.u32 %v4217, 7
  %v4219 = vsub.s32 %v4216, %v4218
  %v4220 = vrot.slane %v4213, %v4219
  %v4221 = vcombine.high %v4220, %v4220
  %v4223 = vunpack.c.l.s4 1966171168
  %v4224 = vunpack.c.0.s8 %v4223
  %v4225 = vlaneseq
  %v4226 = vshrl.u32 %v4225, 7
  %v4227 = vsub.s32 %v4224, %v4226
  %v4228 = vrot.slane %v4220, %v4227
  %v4230 = vunpack.c.l.s4 1966171168
  %v4231 = vunpack.c.0.s8 %v4230
  %v4232 = vlaneseq
  %v4233 = vshrl.u32 %v4232, 7
  %v4234 = vsub.s32 %v4231, %v4233
  %v4235 = vrot.slane %v4221, %v4234
  %v4236 = vcombine.low %v4141, %v4142
  %v4238 = vunpack.c.l.s4 1966171168
  %v4239 = vunpack.c.0.s8 %v4238
  %v4240 = vlaneseq
  %v4241 = vshrl.u32 %v4240, 7
  %v4242 = vsub.s32 %v4239, %v4241
  %v4243 = vrot.slane %v4236, %v4242
  %v4244 = vcombine.high %v4243, %v4243
  %v4246 = vunpack.c.l.s4 1966171168
  %v4247 = vunpack.c.0.s8 %v4246
  %v4248 = vlaneseq
  %v4249 = vshrl.u32 %v4248, 7
  %v4250 = vsub.s32 %v4247, %v4249
  %v4251 = vrot.slane %v4243, %v4250
  %v4253 = vunpack.c.l.s4 1966171168
  %v4254 = vunpack.c.0.s8 %v4253
  %v4255 = vlaneseq
  %v4256 = vshrl.u32 %v4255, 7
  %v4257 = vsub.s32 %v4254, %v4256
  %v4258 = vrot.slane %v4244, %v4257
  %v4259 = vcombine.low %v4143, %v4144
  %v4261 = vunpack.c.l.s4 1966171168
  %v4262 = vunpack.c.0.s8 %v4261
  %v4263 = vlaneseq
  %v4264 = vshrl.u32 %v4263, 7
  %v4265 = vsub.s32 %v4262, %v4264
  %v4266 = vrot.slane %v4259, %v4265
  %v4267 = vcombine.high %v4266, %v4266
  %v4269 = vunpack.c.l.s4 1966171168
  %v4270 = vunpack.c.0.s8 %v4269
  %v4271 = vlaneseq
  %v4272 = vshrl.u32 %v4271, 7
  %v4273 = vsub.s32 %v4270, %v4272
  %v4274 = vrot.slane %v4266, %v4273
  %v4276 = vunpack.c.l.s4 1966171168
  %v4277 = vunpack.c.0.s8 %v4276
  %v4278 = vlaneseq
  %v4279 = vshrl.u32 %v4278, 7
  %v4280 = vsub.s32 %v4277, %v4279
  %v4281 = vrot.slane %v4267, %v4280
  %v4282 = vcombine.low %v4145, %v4146
  %v4284 = vunpack.c.l.s4 1966171168
  %v4285 = vunpack.c.0.s8 %v4284
  %v4286 = vlaneseq
  %v4287 = vshrl.u32 %v4286, 7
  %v4288 = vsub.s32 %v4285, %v4287
  %v4289 = vrot.slane %v4282, %v4288
  %v4290 = vcombine.high %v4289, %v4289
  %v4292 = vunpack.c.l.s4 1966171168
  %v4293 = vunpack.c.0.s8 %v4292
  %v4294 = vlaneseq
  %v4295 = vshrl.u32 %v4294, 7
  %v4296 = vsub.s32 %v4293, %v4295
  %v4297 = vrot.slane %v4289, %v4296
  %v4299 = vunpack.c.l.s4 1966171168
  %v4300 = vunpack.c.0.s8 %v4299
  %v4301 = vlaneseq
  %v4302 = vshrl.u32 %v4301, 7
  %v4303 = vsub.s32 %v4300, %v4302
  %v4304 = vrot.slane %v4290, %v4303
  %v4305 = vcombine.low %v4147, %v4148
  %v4307 = vunpack.c.l.s4 1966171168
  %v4308 = vunpack.c.0.s8 %v4307
  %v4309 = vlaneseq
  %v4310 = vshrl.u32 %v4309, 7
  %v4311 = vsub.s32 %v4308, %v4310
  %v4312 = vrot.slane %v4305, %v4311
  %v4313 = vcombine.high %v4312, %v4312
  %v4315 = vunpack.c.l.s4 1966171168
  %v4316 = vunpack.c.0.s8 %v4315
  %v4317 = vlaneseq
  %v4318 = vshrl.u32 %v4317, 7
  %v4319 = vsub.s32 %v4316, %v4318
  %v4320 = vrot.slane %v4312, %v4319
  %v4322 = vunpack.c.l.s4 1966171168
  %v4323 = vunpack.c.0.s8 %v4322
  %v4324 = vlaneseq
  %v4325 = vshrl.u32 %v4324, 7
  %v4326 = vsub.s32 %v4323, %v4325
  %v4327 = vrot.slane %v4313, %v4326
  %v4328 = vcombine.low %v4149, %v4150
  %v4330 = vunpack.c.l.s4 1966171168
  %v4331 = vunpack.c.0.s8 %v4330
  %v4332 = vlaneseq
  %v4333 = vshrl.u32 %v4332, 7
  %v4334 = vsub.s32 %v4331, %v4333
  %v4335 = vrot.slane %v4328, %v4334
  %v4336 = vcombine.high %v4335, %v4335
  %v4338 = vunpack.c.l.s4 1966171168
  %v4339 = vunpack.c.0.s8 %v4338
  %v4340 = vlaneseq
  %v4341 = vshrl.u32 %v4340, 7
  %v4342 = vsub.s32 %v4339, %v4341
  %v4343 = vrot.slane %v4335, %v4342
  %v4345 = vunpack.c.l.s4 1966171168
  %v4346 = vunpack.c.0.s8 %v4345
  %v4347 = vlaneseq
  %v4348 = vshrl.u32 %v4347, 7
  %v4349 = vsub.s32 %v4346, %v4348
  %v4350 = vrot.slane %v4336, %v4349
  %v4367 = vsel %vm3712, %v4182, -inf
  %v4368 = vrot.slane %v4367, 4
  %v4369 = vmax.f32 %v4367, %v4368
  %v4370 = vrot.slane %v4369, 2
  %v4371 = vmax.f32 %v4369, %v4370
  %v4372 = vrot.slane %v4371, 1
  %v4373 = vmax.f32 %v4371, %v4372
  %vm4374 = vcmask 582656
  %v4375 = vsel %vm4374, %v4189, -inf
  %v4376 = vrot.slane %v4375, 4
  %v4377 = vmax.f32 %v4375, %v4376
  %v4378 = vrot.slane %v4377, 2
  %v4379 = vmax.f32 %v4377, %v4378
  %v4380 = vrot.slane %v4379, 1
  %v4381 = vmax.f32 %v4379, %v4380
  %v4382 = vsel %vm3712, %v4205, -inf
  %v4383 = vrot.slane %v4382, 4
  %v4384 = vmax.f32 %v4382, %v4383
  %v4385 = vrot.slane %v4384, 2
  %v4386 = vmax.f32 %v4384, %v4385
  %v4387 = vrot.slane %v4386, 1
  %v4388 = vmax.f32 %v4386, %v4387
  %v4389 = vsel %vm4374, %v4212, -inf
  %v4390 = vrot.slane %v4389, 4
  %v4391 = vmax.f32 %v4389, %v4390
  %v4392 = vrot.slane %v4391, 2
  %v4393 = vmax.f32 %v4391, %v4392
  %v4394 = vrot.slane %v4393, 1
  %v4395 = vmax.f32 %v4393, %v4394
  %v4396 = vsel %vm3712, %v4228, -inf
  %v4397 = vrot.slane %v4396, 4
  %v4398 = vmax.f32 %v4396, %v4397
  %v4399 = vrot.slane %v4398, 2
  %v4400 = vmax.f32 %v4398, %v4399
  %v4401 = vrot.slane %v4400, 1
  %v4402 = vmax.f32 %v4400, %v4401
  %v4403 = vsel %vm4374, %v4235, -inf
  %v4404 = vrot.slane %v4403, 4
  %v4405 = vmax.f32 %v4403, %v4404
  %v4406 = vrot.slane %v4405, 2
  %v4407 = vmax.f32 %v4405, %v4406
  %v4408 = vrot.slane %v4407, 1
  %v4409 = vmax.f32 %v4407, %v4408
  %v4410 = vsel %vm3712, %v4251, -inf
  %v4411 = vrot.slane %v4410, 4
  %v4412 = vmax.f32 %v4410, %v4411
  %v4413 = vrot.slane %v4412, 2
  %v4414 = vmax.f32 %v4412, %v4413
  %v4415 = vrot.slane %v4414, 1
  %v4416 = vmax.f32 %v4414, %v4415
  %v4417 = vsel %vm4374, %v4258, -inf
  %v4418 = vrot.slane %v4417, 4
  %v4419 = vmax.f32 %v4417, %v4418
  %v4420 = vrot.slane %v4419, 2
  %v4421 = vmax.f32 %v4419, %v4420
  %v4422 = vrot.slane %v4421, 1
  %v4423 = vmax.f32 %v4421, %v4422
  %v4424 = vsel %vm3712, %v4274, -inf
  %v4425 = vrot.slane %v4424, 4
  %v4426 = vmax.f32 %v4424, %v4425
  %v4427 = vrot.slane %v4426, 2
  %v4428 = vmax.f32 %v4426, %v4427
  %v4429 = vrot.slane %v4428, 1
  %v4430 = vmax.f32 %v4428, %v4429
  %v4431 = vsel %vm4374, %v4281, -inf
  %v4432 = vrot.slane %v4431, 4
  %v4433 = vmax.f32 %v4431, %v4432
  %v4434 = vrot.slane %v4433, 2
  %v4435 = vmax.f32 %v4433, %v4434
  %v4436 = vrot.slane %v4435, 1
  %v4437 = vmax.f32 %v4435, %v4436
  %v4438 = vsel %vm3712, %v4297, -inf
  %v4439 = vrot.slane %v4438, 4
  %v4440 = vmax.f32 %v4438, %v4439
  %v4441 = vrot.slane %v4440, 2
  %v4442 = vmax.f32 %v4440, %v4441
  %v4443 = vrot.slane %v4442, 1
  %v4444 = vmax.f32 %v4442, %v4443
  %v4445 = vsel %vm4374, %v4304, -inf
  %v4446 = vrot.slane %v4445, 4
  %v4447 = vmax.f32 %v4445, %v4446
  %v4448 = vrot.slane %v4447, 2
  %v4449 = vmax.f32 %v4447, %v4448
  %v4450 = vrot.slane %v4449, 1
  %v4451 = vmax.f32 %v4449, %v4450
  %v4452 = vsel %vm3712, %v4320, -inf
  %v4453 = vrot.slane %v4452, 4
  %v4454 = vmax.f32 %v4452, %v4453
  %v4455 = vrot.slane %v4454, 2
  %v4456 = vmax.f32 %v4454, %v4455
  %v4457 = vrot.slane %v4456, 1
  %v4458 = vmax.f32 %v4456, %v4457
  %v4459 = vsel %vm4374, %v4327, -inf
  %v4460 = vrot.slane %v4459, 4
  %v4461 = vmax.f32 %v4459, %v4460
  %v4462 = vrot.slane %v4461, 2
  %v4463 = vmax.f32 %v4461, %v4462
  %v4464 = vrot.slane %v4463, 1
  %v4465 = vmax.f32 %v4463, %v4464
  %v4466 = vsel %vm3712, %v4343, -inf
  %v4467 = vrot.slane %v4466, 4
  %v4468 = vmax.f32 %v4466, %v4467
  %v4469 = vrot.slane %v4468, 2
  %v4470 = vmax.f32 %v4468, %v4469
  %v4471 = vrot.slane %v4470, 1
  %v4472 = vmax.f32 %v4470, %v4471
  %v4473 = vsel %vm4374, %v4350, -inf
  %v4474 = vrot.slane %v4473, 4
  %v4475 = vmax.f32 %v4473, %v4474
  %v4476 = vrot.slane %v4475, 2
  %v4477 = vmax.f32 %v4475, %v4476
  %v4478 = vrot.slane %v4477, 1
  %v4479 = vmax.f32 %v4477, %v4478
  %v4480 = vpack.c.bf16 %v4373, %v4373
  %v4481 = vpack.c.bf16 %v4381, %v4381
  %v4482 = vpack.c.bf16 %v4388, %v4388
  %v4483 = vpack.c.bf16 %v4395, %v4395
  %v4484 = vpack.c.bf16 %v4402, %v4402
  %v4485 = vpack.c.bf16 %v4409, %v4409
  %v4486 = vpack.c.bf16 %v4416, %v4416
  %v4487 = vpack.c.bf16 %v4423, %v4423
  %v4488 = vpack.c.bf16 %v4430, %v4430
  %v4489 = vpack.c.bf16 %v4437, %v4437
  %v4490 = vpack.c.bf16 %v4444, %v4444
  %v4491 = vpack.c.bf16 %v4451, %v4451
  %v4492 = vpack.c.bf16 %v4458, %v4458
  %v4493 = vpack.c.bf16 %v4465, %v4465
  %v4494 = vpack.c.bf16 %v4472, %v4472
  %v4495 = vpack.c.bf16 %v4479, %v4479
  %v4496 = vld [vmem:[%s8] sm:$0x3]
  %v4498 = vlaneseq
  %v4499 = vshrl.u32 %v4498, 7
  %v4500 = vsub.s32 0, %v4499
  %v4501 = vrot.slane %v4496, %v4500
  %v4502 = vlaneseq
  %v4503 = vshrl.u32 %v4502, 7
  %v4504 = vsub.s32 1, %v4503
  %v4505 = vrot.slane %v4496, %v4504
  %v4508 = vadd.f32 %v4501, 0.0
  %v4509 = vadd.f32 %v4505, 0.0
  %v4510 = vld [vmem:[%s7] sm:$0xff]
  %v4511 = vld [vmem:[%s7 + $0x8] sm:$0xff]
  %v4512 = vld [vmem:[%s7 + $0x10] sm:$0xff]
  %v4513 = vld [vmem:[%s7 + $0x18] sm:$0xff]
  %v4514 = vld [vmem:[%s7 + $0x20] sm:$0xff]
  %v4515 = vld [vmem:[%s7 + $0x28] sm:$0xff]
  %v4516 = vld [vmem:[%s7 + $0x30] sm:$0xff]
  %v4517 = vld [vmem:[%s7 + $0x38] sm:$0xff]
  %v4518 = vld [vmem:[%s7 + $0x40] sm:$0xff]
  %v4519 = vld [vmem:[%s7 + $0x48] sm:$0xff]
  %v4520 = vld [vmem:[%s7 + $0x50] sm:$0xff]
  %v4521 = vld [vmem:[%s7 + $0x58] sm:$0xff]
  %v4522 = vld [vmem:[%s7 + $0x60] sm:$0xff]
  %v4523 = vld [vmem:[%s7 + $0x68] sm:$0xff]
  %v4524 = vld [vmem:[%s7 + $0x70] sm:$0xff]
  %v4525 = vld [vmem:[%s7 + $0x78] sm:$0xff]
  %v4526 = vld [vmem:[%s7 + $0x80] sm:$0xff]
  %v4527 = vld [vmem:[%s7 + $0x88] sm:$0xff]
  %v4528 = vld [vmem:[%s7 + $0x90] sm:$0xff]
  %v4529 = vld [vmem:[%s7 + $0x98] sm:$0xff]
  %v4530 = vld [vmem:[%s7 + $0xa0] sm:$0xff]
  %v4531 = vld [vmem:[%s7 + $0xa8] sm:$0xff]
  %v4532 = vld [vmem:[%s7 + $0xb0] sm:$0xff]
  %v4533 = vld [vmem:[%s7 + $0xb8] sm:$0xff]
  %v4534 = vld [vmem:[%s7 + $0xc0] sm:$0xff]
  %v4539 = vunpack.c.l.b16 %v4480
  %v4540 = vunpack.c.l.b16 %v4481
  %v4541 = vunpack.c.l.b16 %v4488
  %v4542 = vunpack.c.l.b16 %v4489
  %v4543 = vsel %vm1998, %v4541, %v4539
  %v4544 = vsel %vm1998, %v4542, %v4540
  %v4545 = vpack.c.b16 %v4543, %v4543
  %v4546 = vpack.c.b16 %v4544, %v4544
  %v4573 = vunpack.c.l.b16 %v4510
  %v4574 = vunpack.c.h.b16 %v4510
  %v4575 = vunpack.c.l.b16 %v4511
  %v4576 = vunpack.c.h.b16 %v4511
  %v4577 = vunpack.c.l.b16 %v4512
  %v4578 = vunpack.c.h.b16 %v4512
  %v4579 = vunpack.c.l.b16 %v4513
  %v4580 = vunpack.c.h.b16 %v4513
  %v4581 = vunpack.c.l.b16 %v4514
  %v4582 = vunpack.c.h.b16 %v4514
  %v4583 = vunpack.c.l.b16 %v4515
  %v4584 = vunpack.c.h.b16 %v4515
  %v4585 = vunpack.c.l.b16 %v4516
  %v4586 = vunpack.c.h.b16 %v4516
  %v4587 = vunpack.c.l.b16 %v4517
  %v4588 = vunpack.c.h.b16 %v4517
  %v4589 = vunpack.c.l.b16 %v4518
  %v4590 = vunpack.c.h.b16 %v4518
  %v4591 = vunpack.c.l.b16 %v4519
  %v4592 = vunpack.c.h.b16 %v4519
  %v4593 = vunpack.c.l.b16 %v4520
  %v4594 = vunpack.c.h.b16 %v4520
  %v4595 = vunpack.c.l.b16 %v4521
  %v4596 = vunpack.c.h.b16 %v4521
  %v4597 = vunpack.c.l.b16 %v4522
  %v4598 = vunpack.c.h.b16 %v4522
  %v4599 = vunpack.c.l.b16 %v4523
  %v4600 = vunpack.c.h.b16 %v4523
  %v4601 = vunpack.c.l.b16 %v4524
  %v4602 = vunpack.c.h.b16 %v4524
  %v4603 = vunpack.c.l.b16 %v4525
  %v4604 = vunpack.c.h.b16 %v4525
  %v4605 = vunpack.c.l.b16 %v4526
  %v4606 = vunpack.c.h.b16 %v4526
  %v4607 = vunpack.c.l.b16 %v4527
  %v4608 = vunpack.c.h.b16 %v4527
  %v4609 = vunpack.c.l.b16 %v4528
  %v4610 = vunpack.c.h.b16 %v4528
  %v4611 = vunpack.c.l.b16 %v4529
  %v4612 = vunpack.c.h.b16 %v4529
  %v4613 = vunpack.c.l.b16 %v4530
  %v4614 = vunpack.c.h.b16 %v4530
  %v4615 = vunpack.c.l.b16 %v4531
  %v4616 = vunpack.c.h.b16 %v4531
  %v4617 = vunpack.c.l.b16 %v4532
  %v4618 = vunpack.c.h.b16 %v4532
  %v4619 = vunpack.c.l.b16 %v4533
  %v4620 = vunpack.c.h.b16 %v4533
  %v4621 = vunpack.c.l.b16 %v4534
  %v4622 = vunpack.c.h.b16 %v4534
  %v4623 = vpack.c.b16 %v4575, %v4573
  %v4624 = vpack.c.b16 %v4576, %v4574
  %v4625 = vpack.c.b16 %v4579, %v4577
  %v4626 = vpack.c.b16 %v4580, %v4578
  %v4627 = vpack.c.b16 %v4583, %v4581
  %v4628 = vpack.c.b16 %v4584, %v4582
  %v4629 = vpack.c.b16 %v4587, %v4585
  %v4630 = vpack.c.b16 %v4588, %v4586
  %v4631 = vpack.c.b16 %v4591, %v4589
  %v4632 = vpack.c.b16 %v4592, %v4590
  %v4633 = vpack.c.b16 %v4595, %v4593
  %v4634 = vpack.c.b16 %v4596, %v4594
  %v4635 = vpack.c.b16 %v4599, %v4597
  %v4636 = vpack.c.b16 %v4600, %v4598
  %v4637 = vpack.c.b16 %v4603, %v4601
  %v4638 = vpack.c.b16 %v4604, %v4602
  %v4639 = vpack.c.b16 %v4607, %v4605
  %v4640 = vpack.c.b16 %v4608, %v4606
  %v4641 = vpack.c.b16 %v4611, %v4609
  %v4642 = vpack.c.b16 %v4612, %v4610
  %v4643 = vpack.c.b16 %v4615, %v4613
  %v4644 = vpack.c.b16 %v4616, %v4614
  %v4645 = vpack.c.b16 %v4619, %v4617
  %v4646 = vpack.c.b16 %v4620, %v4618
  %v4647 = vpack.c.b16 %v4621, %v4621
  %v4648 = vpack.c.b16 %v4622, %v4622
  %vm4673 = vcmask 588800
  %v4675 = vsel %vm4673, %v4546, 0
  %vm4677 = vcmask 1043456
  %v4679 = vsel %vm4677, %v4647, 0
  %v4682 = vsel %vm4677, %v4648, 0
  %4684 = vmatprep.subr.bf16.mxu0 %v4624
  %4685 = vmatpush1.bf16.msra.mxu0 %v4623
  %4686 = vmatprep.subr.bf16.mxu0 %v4626
  %4687 = vmatpush1.bf16.msra.mxu0 %v4625
  %4688 = vmatprep.subr.bf16.mxu0 %v4628
  %4689 = vmatpush1.bf16.msra.mxu0 %v4627
  %4690 = vmatprep.subr.bf16.mxu0 %v4630
  %4691 = vmatpush1.bf16.msra.mxu0 %v4629
  %4692 = vmatprep.subr.bf16.mxu0 %v4632
  %4693 = vmatpush1.bf16.msra.mxu0 %v4631
  %4694 = vmatprep.subr.bf16.mxu0 %v4634
  %4695 = vmatpush1.bf16.msra.mxu0 %v4633
  %4696 = vmatprep.subr.bf16.mxu0 %v4636
  %4697 = vmatpush1.bf16.msra.mxu0 %v4635
  %4698 = vmatprep.subr.bf16.mxu0 %v4638
  %4699 = vmatpush1.bf16.msra.mxu0 %v4637
  %4700 = vmatprep.subr.bf16.mxu0 %v4640
  %4701 = vmatpush1.bf16.msra.mxu0 %v4639
  %4702 = vmatprep.subr.bf16.mxu0 %v4642
  %4703 = vmatpush1.bf16.msra.mxu0 %v4641
  %4704 = vmatprep.subr.bf16.mxu0 %v4644
  %4705 = vmatpush1.bf16.msra.mxu0 %v4643
  %4706 = vmatprep.subr.bf16.mxu0 %v4646
  %4707 = vmatpush1.bf16.msra.mxu0 %v4645
  %4708 = vmatprep.subr.bf16.mxu0 %v4682
  %4709 = vmatpush1.bf16.msra.mxu0 %v4679
  %4710 = vmatprep.subr.bf16.mxu0 0
  %4711 = vmatpush1.bf16.msra.mxu0 0
  %4712 = vmatprep.subr.bf16.mxu0 0
  %4713 = vmatpush1.bf16.msra.mxu0 0
  %4714 = vmatprep.subr.bf16.mxu0 0
  %4715 = vmatpush1.bf16.msra.mxu0 0
  %4716 = vmatprep.mubr.bf16.mxu0 %v4675
  %4717 = vmatmul.mubr.bf16.gmra.mrb[0].mxu0 %v4545
  %v4718 = vpop.f32.mrb[0].mxu0
  %v4719 = vadd.f32 0.0, %v4718
  %v4720 = vpop.f32.mrb[0].mxu0
  %v4721 = vadd.f32 0.0, %v4720
  %v4722 = vpop.f32.mrb[0].mxu0
  %v4723 = vpop.f32.mrb[0].mxu0
  %4724 = vdwg.mxu0
  %v4725 = vadd.f32 %v4508, %v4719
  %v4726 = vadd.f32 %v4509, %v4721
  %s4727 = scalar_lea.vmem %s7, 200
  %v4728 = vld [vmem:[%s4727] sm:$0xff]
  %v4729 = vld [vmem:[%s4727 + $0x8] sm:$0xff]
  %v4730 = vld [vmem:[%s4727 + $0x10] sm:$0xff]
  %v4731 = vld [vmem:[%s4727 + $0x18] sm:$0xff]
  %v4732 = vld [vmem:[%s4727 + $0x20] sm:$0xff]
  %v4733 = vld [vmem:[%s4727 + $0x28] sm:$0xff]
  %v4734 = vld [vmem:[%s4727 + $0x30] sm:$0xff]
  %v4735 = vld [vmem:[%s4727 + $0x38] sm:$0xff]
  %v4736 = vld [vmem:[%s4727 + $0x40] sm:$0xff]
  %v4737 = vld [vmem:[%s4727 + $0x48] sm:$0xff]
  %v4738 = vld [vmem:[%s4727 + $0x50] sm:$0xff]
  %v4739 = vld [vmem:[%s4727 + $0x58] sm:$0xff]
  %v4740 = vld [vmem:[%s4727 + $0x60] sm:$0xff]
  %v4741 = vld [vmem:[%s4727 + $0x68] sm:$0xff]
  %v4742 = vld [vmem:[%s4727 + $0x70] sm:$0xff]
  %v4743 = vld [vmem:[%s4727 + $0x78] sm:$0xff]
  %v4744 = vld [vmem:[%s4727 + $0x80] sm:$0xff]
  %v4745 = vld [vmem:[%s4727 + $0x88] sm:$0xff]
  %v4746 = vld [vmem:[%s4727 + $0x90] sm:$0xff]
  %v4747 = vld [vmem:[%s4727 + $0x98] sm:$0xff]
  %v4748 = vld [vmem:[%s4727 + $0xa0] sm:$0xff]
  %v4749 = vld [vmem:[%s4727 + $0xa8] sm:$0xff]
  %v4750 = vld [vmem:[%s4727 + $0xb0] sm:$0xff]
  %v4751 = vld [vmem:[%s4727 + $0xb8] sm:$0xff]
  %v4752 = vld [vmem:[%s4727 + $0xc0] sm:$0xff]
  %v4757 = vunpack.c.l.b16 %v4482
  %v4758 = vunpack.c.l.b16 %v4483
  %v4759 = vunpack.c.l.b16 %v4490
  %v4760 = vunpack.c.l.b16 %v4491
  %v4761 = vsel %vm1998, %v4759, %v4757
  %v4762 = vsel %vm1998, %v4760, %v4758
  %v4763 = vpack.c.b16 %v4761, %v4761
  %v4764 = vpack.c.b16 %v4762, %v4762
  %v4791 = vunpack.c.l.b16 %v4728
  %v4792 = vunpack.c.h.b16 %v4728
  %v4793 = vunpack.c.l.b16 %v4729
  %v4794 = vunpack.c.h.b16 %v4729
  %v4795 = vunpack.c.l.b16 %v4730
  %v4796 = vunpack.c.h.b16 %v4730
  %v4797 = vunpack.c.l.b16 %v4731
  %v4798 = vunpack.c.h.b16 %v4731
  %v4799 = vunpack.c.l.b16 %v4732
  %v4800 = vunpack.c.h.b16 %v4732
  %v4801 = vunpack.c.l.b16 %v4733
  %v4802 = vunpack.c.h.b16 %v4733
  %v4803 = vunpack.c.l.b16 %v4734
  %v4804 = vunpack.c.h.b16 %v4734
  %v4805 = vunpack.c.l.b16 %v4735
  %v4806 = vunpack.c.h.b16 %v4735
  %v4807 = vunpack.c.l.b16 %v4736
  %v4808 = vunpack.c.h.b16 %v4736
  %v4809 = vunpack.c.l.b16 %v4737
  %v4810 = vunpack.c.h.b16 %v4737
  %v4811 = vunpack.c.l.b16 %v4738
  %v4812 = vunpack.c.h.b16 %v4738
  %v4813 = vunpack.c.l.b16 %v4739
  %v4814 = vunpack.c.h.b16 %v4739
  %v4815 = vunpack.c.l.b16 %v4740
  %v4816 = vunpack.c.h.b16 %v4740
  %v4817 = vunpack.c.l.b16 %v4741
  %v4818 = vunpack.c.h.b16 %v4741
  %v4819 = vunpack.c.l.b16 %v4742
  %v4820 = vunpack.c.h.b16 %v4742
  %v4821 = vunpack.c.l.b16 %v4743
  %v4822 = vunpack.c.h.b16 %v4743
  %v4823 = vunpack.c.l.b16 %v4744
  %v4824 = vunpack.c.h.b16 %v4744
  %v4825 = vunpack.c.l.b16 %v4745
  %v4826 = vunpack.c.h.b16 %v4745
  %v4827 = vunpack.c.l.b16 %v4746
  %v4828 = vunpack.c.h.b16 %v4746
  %v4829 = vunpack.c.l.b16 %v4747
  %v4830 = vunpack.c.h.b16 %v4747
  %v4831 = vunpack.c.l.b16 %v4748
  %v4832 = vunpack.c.h.b16 %v4748
  %v4833 = vunpack.c.l.b16 %v4749
  %v4834 = vunpack.c.h.b16 %v4749
  %v4835 = vunpack.c.l.b16 %v4750
  %v4836 = vunpack.c.h.b16 %v4750
  %v4837 = vunpack.c.l.b16 %v4751
  %v4838 = vunpack.c.h.b16 %v4751
  %v4839 = vunpack.c.l.b16 %v4752
  %v4840 = vunpack.c.h.b16 %v4752
  %v4841 = vpack.c.b16 %v4793, %v4791
  %v4842 = vpack.c.b16 %v4794, %v4792
  %v4843 = vpack.c.b16 %v4797, %v4795
  %v4844 = vpack.c.b16 %v4798, %v4796
  %v4845 = vpack.c.b16 %v4801, %v4799
  %v4846 = vpack.c.b16 %v4802, %v4800
  %v4847 = vpack.c.b16 %v4805, %v4803
  %v4848 = vpack.c.b16 %v4806, %v4804
  %v4849 = vpack.c.b16 %v4809, %v4807
  %v4850 = vpack.c.b16 %v4810, %v4808
  %v4851 = vpack.c.b16 %v4813, %v4811
  %v4852 = vpack.c.b16 %v4814, %v4812
  %v4853 = vpack.c.b16 %v4817, %v4815
  %v4854 = vpack.c.b16 %v4818, %v4816
  %v4855 = vpack.c.b16 %v4821, %v4819
  %v4856 = vpack.c.b16 %v4822, %v4820
  %v4857 = vpack.c.b16 %v4825, %v4823
  %v4858 = vpack.c.b16 %v4826, %v4824
  %v4859 = vpack.c.b16 %v4829, %v4827
  %v4860 = vpack.c.b16 %v4830, %v4828
  %v4861 = vpack.c.b16 %v4833, %v4831
  %v4862 = vpack.c.b16 %v4834, %v4832
  %v4863 = vpack.c.b16 %v4837, %v4835
  %v4864 = vpack.c.b16 %v4838, %v4836
  %v4865 = vpack.c.b16 %v4839, %v4839
  %v4866 = vpack.c.b16 %v4840, %v4840
  %v4892 = vsel %vm4673, %v4764, 0
  %v4895 = vsel %vm4677, %v4865, 0
  %v4898 = vsel %vm4677, %v4866, 0
  %4900 = vmatprep.subr.bf16.mxu0 %v4842
  %4901 = vmatpush1.bf16.msra.mxu0 %v4841
  %4902 = vmatprep.subr.bf16.mxu0 %v4844
  %4903 = vmatpush1.bf16.msra.mxu0 %v4843
  %4904 = vmatprep.subr.bf16.mxu0 %v4846
  %4905 = vmatpush1.bf16.msra.mxu0 %v4845
  %4906 = vmatprep.subr.bf16.mxu0 %v4848
  %4907 = vmatpush1.bf16.msra.mxu0 %v4847
  %4908 = vmatprep.subr.bf16.mxu0 %v4850
  %4909 = vmatpush1.bf16.msra.mxu0 %v4849
  %4910 = vmatprep.subr.bf16.mxu0 %v4852
  %4911 = vmatpush1.bf16.msra.mxu0 %v4851
  %4912 = vmatprep.subr.bf16.mxu0 %v4854
  %4913 = vmatpush1.bf16.msra.mxu0 %v4853
  %4914 = vmatprep.subr.bf16.mxu0 %v4856
  %4915 = vmatpush1.bf16.msra.mxu0 %v4855
  %4916 = vmatprep.subr.bf16.mxu0 %v4858
  %4917 = vmatpush1.bf16.msra.mxu0 %v4857
  %4918 = vmatprep.subr.bf16.mxu0 %v4860
  %4919 = vmatpush1.bf16.msra.mxu0 %v4859
  %4920 = vmatprep.subr.bf16.mxu0 %v4862
  %4921 = vmatpush1.bf16.msra.mxu0 %v4861
  %4922 = vmatprep.subr.bf16.mxu0 %v4864
  %4923 = vmatpush1.bf16.msra.mxu0 %v4863
  %4924 = vmatprep.subr.bf16.mxu0 %v4898
  %4925 = vmatpush1.bf16.msra.mxu0 %v4895
  %4926 = vmatprep.subr.bf16.mxu0 0
  %4927 = vmatpush1.bf16.msra.mxu0 0
  %4928 = vmatprep.subr.bf16.mxu0 0
  %4929 = vmatpush1.bf16.msra.mxu0 0
  %4930 = vmatprep.subr.bf16.mxu0 0
  %4931 = vmatpush1.bf16.msra.mxu0 0
  %4932 = vmatprep.mubr.bf16.mxu0 %v4892
  %4933 = vmatmul.mubr.bf16.gmra.mrb[0].mxu0 %v4763
  %v4934 = vpop.f32.mrb[0].mxu0
  %v4935 = vadd.f32 0.0, %v4934
  %v4936 = vpop.f32.mrb[0].mxu0
  %v4937 = vadd.f32 0.0, %v4936
  %v4938 = vpop.f32.mrb[0].mxu0
  %v4939 = vpop.f32.mrb[0].mxu0
  %4940 = vdwg.mxu0
  %v4941 = vadd.f32 %v4725, %v4935
  %v4942 = vadd.f32 %v4726, %v4937
  %s4943 = scalar_lea.vmem %s7, 400
  %v4944 = vld [vmem:[%s4943] sm:$0xff]
  %v4945 = vld [vmem:[%s4943 + $0x8] sm:$0xff]
  %v4946 = vld [vmem:[%s4943 + $0x10] sm:$0xff]
  %v4947 = vld [vmem:[%s4943 + $0x18] sm:$0xff]
  %v4948 = vld [vmem:[%s4943 + $0x20] sm:$0xff]
  %v4949 = vld [vmem:[%s4943 + $0x28] sm:$0xff]
  %v4950 = vld [vmem:[%s4943 + $0x30] sm:$0xff]
  %v4951 = vld [vmem:[%s4943 + $0x38] sm:$0xff]
  %v4952 = vld [vmem:[%s4943 + $0x40] sm:$0xff]
  %v4953 = vld [vmem:[%s4943 + $0x48] sm:$0xff]
  %v4954 = vld [vmem:[%s4943 + $0x50] sm:$0xff]
  %v4955 = vld [vmem:[%s4943 + $0x58] sm:$0xff]
  %v4956 = vld [vmem:[%s4943 + $0x60] sm:$0xff]
  %v4957 = vld [vmem:[%s4943 + $0x68] sm:$0xff]
  %v4958 = vld [vmem:[%s4943 + $0x70] sm:$0xff]
  %v4959 = vld [vmem:[%s4943 + $0x78] sm:$0xff]
  %v4960 = vld [vmem:[%s4943 + $0x80] sm:$0xff]
  %v4961 = vld [vmem:[%s4943 + $0x88] sm:$0xff]
  %v4962 = vld [vmem:[%s4943 + $0x90] sm:$0xff]
  %v4963 = vld [vmem:[%s4943 + $0x98] sm:$0xff]
  %v4964 = vld [vmem:[%s4943 + $0xa0] sm:$0xff]
  %v4965 = vld [vmem:[%s4943 + $0xa8] sm:$0xff]
  %v4966 = vld [vmem:[%s4943 + $0xb0] sm:$0xff]
  %v4967 = vld [vmem:[%s4943 + $0xb8] sm:$0xff]
  %v4968 = vld [vmem:[%s4943 + $0xc0] sm:$0xff]
  %v4973 = vunpack.c.l.b16 %v4484
  %v4974 = vunpack.c.l.b16 %v4485
  %v4975 = vunpack.c.l.b16 %v4492
  %v4976 = vunpack.c.l.b16 %v4493
  %v4977 = vsel %vm1998, %v4975, %v4973
  %v4978 = vsel %vm1998, %v4976, %v4974
  %v4979 = vpack.c.b16 %v4977, %v4977
  %v4980 = vpack.c.b16 %v4978, %v4978
  %v5007 = vunpack.c.l.b16 %v4944
  %v5008 = vunpack.c.h.b16 %v4944
  %v5009 = vunpack.c.l.b16 %v4945
  %v5010 = vunpack.c.h.b16 %v4945
  %v5011 = vunpack.c.l.b16 %v4946
  %v5012 = vunpack.c.h.b16 %v4946
  %v5013 = vunpack.c.l.b16 %v4947
  %v5014 = vunpack.c.h.b16 %v4947
  %v5015 = vunpack.c.l.b16 %v4948
  %v5016 = vunpack.c.h.b16 %v4948
  %v5017 = vunpack.c.l.b16 %v4949
  %v5018 = vunpack.c.h.b16 %v4949
  %v5019 = vunpack.c.l.b16 %v4950
  %v5020 = vunpack.c.h.b16 %v4950
  %v5021 = vunpack.c.l.b16 %v4951
  %v5022 = vunpack.c.h.b16 %v4951
  %v5023 = vunpack.c.l.b16 %v4952
  %v5024 = vunpack.c.h.b16 %v4952
  %v5025 = vunpack.c.l.b16 %v4953
  %v5026 = vunpack.c.h.b16 %v4953
  %v5027 = vunpack.c.l.b16 %v4954
  %v5028 = vunpack.c.h.b16 %v4954
  %v5029 = vunpack.c.l.b16 %v4955
  %v5030 = vunpack.c.h.b16 %v4955
  %v5031 = vunpack.c.l.b16 %v4956
  %v5032 = vunpack.c.h.b16 %v4956
  %v5033 = vunpack.c.l.b16 %v4957
  %v5034 = vunpack.c.h.b16 %v4957
  %v5035 = vunpack.c.l.b16 %v4958
  %v5036 = vunpack.c.h.b16 %v4958
  %v5037 = vunpack.c.l.b16 %v4959
  %v5038 = vunpack.c.h.b16 %v4959
  %v5039 = vunpack.c.l.b16 %v4960
  %v5040 = vunpack.c.h.b16 %v4960
  %v5041 = vunpack.c.l.b16 %v4961
  %v5042 = vunpack.c.h.b16 %v4961
  %v5043 = vunpack.c.l.b16 %v4962
  %v5044 = vunpack.c.h.b16 %v4962
  %v5045 = vunpack.c.l.b16 %v4963
  %v5046 = vunpack.c.h.b16 %v4963
  %v5047 = vunpack.c.l.b16 %v4964
  %v5048 = vunpack.c.h.b16 %v4964
  %v5049 = vunpack.c.l.b16 %v4965
  %v5050 = vunpack.c.h.b16 %v4965
  %v5051 = vunpack.c.l.b16 %v4966
  %v5052 = vunpack.c.h.b16 %v4966
  %v5053 = vunpack.c.l.b16 %v4967
  %v5054 = vunpack.c.h.b16 %v4967
  %v5055 = vunpack.c.l.b16 %v4968
  %v5056 = vunpack.c.h.b16 %v4968
  %v5057 = vpack.c.b16 %v5009, %v5007
  %v5058 = vpack.c.b16 %v5010, %v5008
  %v5059 = vpack.c.b16 %v5013, %v5011
  %v5060 = vpack.c.b16 %v5014, %v5012
  %v5061 = vpack.c.b16 %v5017, %v5015
  %v5062 = vpack.c.b16 %v5018, %v5016
  %v5063 = vpack.c.b16 %v5021, %v5019
  %v5064 = vpack.c.b16 %v5022, %v5020
  %v5065 = vpack.c.b16 %v5025, %v5023
  %v5066 = vpack.c.b16 %v5026, %v5024
  %v5067 = vpack.c.b16 %v5029, %v5027
  %v5068 = vpack.c.b16 %v5030, %v5028
  %v5069 = vpack.c.b16 %v5033, %v5031
  %v5070 = vpack.c.b16 %v5034, %v5032
  %v5071 = vpack.c.b16 %v5037, %v5035
  %v5072 = vpack.c.b16 %v5038, %v5036
  %v5073 = vpack.c.b16 %v5041, %v5039
  %v5074 = vpack.c.b16 %v5042, %v5040
  %v5075 = vpack.c.b16 %v5045, %v5043
  %v5076 = vpack.c.b16 %v5046, %v5044
  %v5077 = vpack.c.b16 %v5049, %v5047
  %v5078 = vpack.c.b16 %v5050, %v5048
  %v5079 = vpack.c.b16 %v5053, %v5051
  %v5080 = vpack.c.b16 %v5054, %v5052
  %v5081 = vpack.c.b16 %v5055, %v5055
  %v5082 = vpack.c.b16 %v5056, %v5056
  %v5108 = vsel %vm4673, %v4980, 0
  %v5111 = vsel %vm4677, %v5081, 0
  %v5114 = vsel %vm4677, %v5082, 0
  %5116 = vmatprep.subr.bf16.mxu0 %v5058
  %5117 = vmatpush1.bf16.msra.mxu0 %v5057
  %5118 = vmatprep.subr.bf16.mxu0 %v5060
  %5119 = vmatpush1.bf16.msra.mxu0 %v5059
  %5120 = vmatprep.subr.bf16.mxu0 %v5062
  %5121 = vmatpush1.bf16.msra.mxu0 %v5061
  %5122 = vmatprep.subr.bf16.mxu0 %v5064
  %5123 = vmatpush1.bf16.msra.mxu0 %v5063
  %5124 = vmatprep.subr.bf16.mxu0 %v5066
  %5125 = vmatpush1.bf16.msra.mxu0 %v5065
  %5126 = vmatprep.subr.bf16.mxu0 %v5068
  %5127 = vmatpush1.bf16.msra.mxu0 %v5067
  %5128 = vmatprep.subr.bf16.mxu0 %v5070
  %5129 = vmatpush1.bf16.msra.mxu0 %v5069
  %5130 = vmatprep.subr.bf16.mxu0 %v5072
  %5131 = vmatpush1.bf16.msra.mxu0 %v5071
  %5132 = vmatprep.subr.bf16.mxu0 %v5074
  %5133 = vmatpush1.bf16.msra.mxu0 %v5073
  %5134 = vmatprep.subr.bf16.mxu0 %v5076
  %5135 = vmatpush1.bf16.msra.mxu0 %v5075
  %5136 = vmatprep.subr.bf16.mxu0 %v5078
  %5137 = vmatpush1.bf16.msra.mxu0 %v5077
  %5138 = vmatprep.subr.bf16.mxu0 %v5080
  %5139 = vmatpush1.bf16.msra.mxu0 %v5079
  %5140 = vmatprep.subr.bf16.mxu0 %v5114
  %5141 = vmatpush1.bf16.msra.mxu0 %v5111
  %5142 = vmatprep.subr.bf16.mxu0 0
  %5143 = vmatpush1.bf16.msra.mxu0 0
  %5144 = vmatprep.subr.bf16.mxu0 0
  %5145 = vmatpush1.bf16.msra.mxu0 0
  %5146 = vmatprep.subr.bf16.mxu0 0
  %5147 = vmatpush1.bf16.msra.mxu0 0
  %5148 = vmatprep.mubr.bf16.mxu0 %v5108
  %5149 = vmatmul.mubr.bf16.gmra.mrb[0].mxu0 %v4979
  %v5150 = vpop.f32.mrb[0].mxu0
  %v5151 = vadd.f32 0.0, %v5150
  %v5152 = vpop.f32.mrb[0].mxu0
  %v5153 = vadd.f32 0.0, %v5152
  %v5154 = vpop.f32.mrb[0].mxu0
  %v5155 = vpop.f32.mrb[0].mxu0
  %5156 = vdwg.mxu0
  %v5157 = vadd.f32 %v4941, %v5151
  %v5158 = vadd.f32 %v4942, %v5153
  %s5159 = scalar_lea.vmem %s7, 600
  %v5160 = vld [vmem:[%s5159] sm:$0xff]
  %v5161 = vld [vmem:[%s5159 + $0x8] sm:$0xff]
  %v5162 = vld [vmem:[%s5159 + $0x10] sm:$0xff]
  %v5163 = vld [vmem:[%s5159 + $0x18] sm:$0xff]
  %v5164 = vld [vmem:[%s5159 + $0x20] sm:$0xff]
  %v5165 = vld [vmem:[%s5159 + $0x28] sm:$0xff]
  %v5166 = vld [vmem:[%s5159 + $0x30] sm:$0xff]
  %v5167 = vld [vmem:[%s5159 + $0x38] sm:$0xff]
  %v5168 = vld [vmem:[%s5159 + $0x40] sm:$0xff]
  %v5169 = vld [vmem:[%s5159 + $0x48] sm:$0xff]
  %v5170 = vld [vmem:[%s5159 + $0x50] sm:$0xff]
  %v5171 = vld [vmem:[%s5159 + $0x58] sm:$0xff]
  %v5172 = vld [vmem:[%s5159 + $0x60] sm:$0xff]
  %v5173 = vld [vmem:[%s5159 + $0x68] sm:$0xff]
  %v5174 = vld [vmem:[%s5159 + $0x70] sm:$0xff]
  %v5175 = vld [vmem:[%s5159 + $0x78] sm:$0xff]
  %v5176 = vld [vmem:[%s5159 + $0x80] sm:$0xff]
  %v5177 = vld [vmem:[%s5159 + $0x88] sm:$0xff]
  %v5178 = vld [vmem:[%s5159 + $0x90] sm:$0xff]
  %v5179 = vld [vmem:[%s5159 + $0x98] sm:$0xff]
  %v5180 = vld [vmem:[%s5159 + $0xa0] sm:$0xff]
  %v5181 = vld [vmem:[%s5159 + $0xa8] sm:$0xff]
  %v5182 = vld [vmem:[%s5159 + $0xb0] sm:$0xff]
  %v5183 = vld [vmem:[%s5159 + $0xb8] sm:$0xff]
  %v5184 = vld [vmem:[%s5159 + $0xc0] sm:$0xff]
  %v5189 = vunpack.c.l.b16 %v4486
  %v5190 = vunpack.c.l.b16 %v4487
  %v5191 = vunpack.c.l.b16 %v4494
  %v5192 = vunpack.c.l.b16 %v4495
  %v5193 = vsel %vm1998, %v5191, %v5189
  %v5194 = vsel %vm1998, %v5192, %v5190
  %v5195 = vpack.c.b16 %v5193, %v5193
  %v5196 = vpack.c.b16 %v5194, %v5194
  %v5223 = vunpack.c.l.b16 %v5160
  %v5224 = vunpack.c.h.b16 %v5160
  %v5225 = vunpack.c.l.b16 %v5161
  %v5226 = vunpack.c.h.b16 %v5161
  %v5227 = vunpack.c.l.b16 %v5162
  %v5228 = vunpack.c.h.b16 %v5162
  %v5229 = vunpack.c.l.b16 %v5163
  %v5230 = vunpack.c.h.b16 %v5163
  %v5231 = vunpack.c.l.b16 %v5164
  %v5232 = vunpack.c.h.b16 %v5164
  %v5233 = vunpack.c.l.b16 %v5165
  %v5234 = vunpack.c.h.b16 %v5165
  %v5235 = vunpack.c.l.b16 %v5166
  %v5236 = vunpack.c.h.b16 %v5166
  %v5237 = vunpack.c.l.b16 %v5167
  %v5238 = vunpack.c.h.b16 %v5167
  %v5239 = vunpack.c.l.b16 %v5168
  %v5240 = vunpack.c.h.b16 %v5168
  %v5241 = vunpack.c.l.b16 %v5169
  %v5242 = vunpack.c.h.b16 %v5169
  %v5243 = vunpack.c.l.b16 %v5170
  %v5244 = vunpack.c.h.b16 %v5170
  %v5245 = vunpack.c.l.b16 %v5171
  %v5246 = vunpack.c.h.b16 %v5171
  %v5247 = vunpack.c.l.b16 %v5172
  %v5248 = vunpack.c.h.b16 %v5172
  %v5249 = vunpack.c.l.b16 %v5173
  %v5250 = vunpack.c.h.b16 %v5173
  %v5251 = vunpack.c.l.b16 %v5174
  %v5252 = vunpack.c.h.b16 %v5174
  %v5253 = vunpack.c.l.b16 %v5175
  %v5254 = vunpack.c.h.b16 %v5175
  %v5255 = vunpack.c.l.b16 %v5176
  %v5256 = vunpack.c.h.b16 %v5176
  %v5257 = vunpack.c.l.b16 %v5177
  %v5258 = vunpack.c.h.b16 %v5177
  %v5259 = vunpack.c.l.b16 %v5178
  %v5260 = vunpack.c.h.b16 %v5178
  %v5261 = vunpack.c.l.b16 %v5179
  %v5262 = vunpack.c.h.b16 %v5179
  %v5263 = vunpack.c.l.b16 %v5180
  %v5264 = vunpack.c.h.b16 %v5180
  %v5265 = vunpack.c.l.b16 %v5181
  %v5266 = vunpack.c.h.b16 %v5181
  %v5267 = vunpack.c.l.b16 %v5182
  %v5268 = vunpack.c.h.b16 %v5182
  %v5269 = vunpack.c.l.b16 %v5183
  %v5270 = vunpack.c.h.b16 %v5183
  %v5271 = vunpack.c.l.b16 %v5184
  %v5272 = vunpack.c.h.b16 %v5184
  %v5273 = vpack.c.b16 %v5225, %v5223
  %v5274 = vpack.c.b16 %v5226, %v5224
  %v5275 = vpack.c.b16 %v5229, %v5227
  %v5276 = vpack.c.b16 %v5230, %v5228
  %v5277 = vpack.c.b16 %v5233, %v5231
  %v5278 = vpack.c.b16 %v5234, %v5232
  %v5279 = vpack.c.b16 %v5237, %v5235
  %v5280 = vpack.c.b16 %v5238, %v5236
  %v5281 = vpack.c.b16 %v5241, %v5239
  %v5282 = vpack.c.b16 %v5242, %v5240
  %v5283 = vpack.c.b16 %v5245, %v5243
  %v5284 = vpack.c.b16 %v5246, %v5244
  %v5285 = vpack.c.b16 %v5249, %v5247
  %v5286 = vpack.c.b16 %v5250, %v5248
  %v5287 = vpack.c.b16 %v5253, %v5251
  %v5288 = vpack.c.b16 %v5254, %v5252
  %v5289 = vpack.c.b16 %v5257, %v5255
  %v5290 = vpack.c.b16 %v5258, %v5256
  %v5291 = vpack.c.b16 %v5261, %v5259
  %v5292 = vpack.c.b16 %v5262, %v5260
  %v5293 = vpack.c.b16 %v5265, %v5263
  %v5294 = vpack.c.b16 %v5266, %v5264
  %v5295 = vpack.c.b16 %v5269, %v5267
  %v5296 = vpack.c.b16 %v5270, %v5268
  %v5297 = vpack.c.b16 %v5271, %v5271
  %v5298 = vpack.c.b16 %v5272, %v5272
  %v5324 = vsel %vm4673, %v5196, 0
  %v5327 = vsel %vm4677, %v5297, 0
  %v5330 = vsel %vm4677, %v5298, 0
  %5332 = vmatprep.subr.bf16.mxu0 %v5274
  %5333 = vmatpush1.bf16.msra.mxu0 %v5273
  %5334 = vmatprep.subr.bf16.mxu0 %v5276
  %5335 = vmatpush1.bf16.msra.mxu0 %v5275
  %5336 = vmatprep.subr.bf16.mxu0 %v5278
  %5337 = vmatpush1.bf16.msra.mxu0 %v5277
  %5338 = vmatprep.subr.bf16.mxu0 %v5280
  %5339 = vmatpush1.bf16.msra.mxu0 %v5279
  %5340 = vmatprep.subr.bf16.mxu0 %v5282
  %5341 = vmatpush1.bf16.msra.mxu0 %v5281
  %5342 = vmatprep.subr.bf16.mxu0 %v5284
  %5343 = vmatpush1.bf16.msra.mxu0 %v5283
  %5344 = vmatprep.subr.bf16.mxu0 %v5286
  %5345 = vmatpush1.bf16.msra.mxu0 %v5285
  %5346 = vmatprep.subr.bf16.mxu0 %v5288
  %5347 = vmatpush1.bf16.msra.mxu0 %v5287
  %5348 = vmatprep.subr.bf16.mxu0 %v5290
  %5349 = vmatpush1.bf16.msra.mxu0 %v5289
  %5350 = vmatprep.subr.bf16.mxu0 %v5292
  %5351 = vmatpush1.bf16.msra.mxu0 %v5291
  %5352 = vmatprep.subr.bf16.mxu0 %v5294
  %5353 = vmatpush1.bf16.msra.mxu0 %v5293
  %5354 = vmatprep.subr.bf16.mxu0 %v5296
  %5355 = vmatpush1.bf16.msra.mxu0 %v5295
  %5356 = vmatprep.subr.bf16.mxu0 %v5330
  %5357 = vmatpush1.bf16.msra.mxu0 %v5327
  %5358 = vmatprep.subr.bf16.mxu0 0
  %5359 = vmatpush1.bf16.msra.mxu0 0
  %5360 = vmatprep.subr.bf16.mxu0 0
  %5361 = vmatpush1.bf16.msra.mxu0 0
  %5362 = vmatprep.subr.bf16.mxu0 0
  %5363 = vmatpush1.bf16.msra.mxu0 0
  %5364 = vmatprep.mubr.bf16.mxu0 %v5324
  %5365 = vmatmul.mubr.bf16.gmra.mrb[0].mxu0 %v5195
  %v5366 = vpop.f32.mrb[0].mxu0
  %v5367 = vadd.f32 0.0, %v5366
  %v5368 = vpop.f32.mrb[0].mxu0
  %v5369 = vadd.f32 0.0, %v5368
  %v5370 = vpop.f32.mrb[0].mxu0
  %v5371 = vpop.f32.mrb[0].mxu0
  %5372 = vdwg.mxu0
  %v5373 = vadd.f32 %v5157, %v5367
  %v5374 = vadd.f32 %v5158, %v5369
  %v5375 = vmax.f32 %v5373, 0.0
  %v5376 = vmax.f32 %v5374, 0.0
  %v5377 = vpack.c.bf16 %v5375, %v5375
  %v5378 = vpack.c.bf16 %v5376, %v5376
  %v5379 = vld [vmem:[%s9] sm:$0xf]
  %v5380 = vld [vmem:[%s9 + $0x4] sm:$0xf]
  %v5381 = vld [vmem:[%s9 + $0x8] sm:$0xf]
  %v5382 = vld [vmem:[%s9 + $0xc] sm:$0xf]
  %v5383 = vld [vmem:[%s9 + $0x10] sm:$0xf]
  %v5384 = vld [vmem:[%s9 + $0x14] sm:$0xf]
  %v5385 = vld [vmem:[%s9 + $0x18] sm:$0xf]
  %v5386 = vld [vmem:[%s9 + $0x1c] sm:$0xf]
  %v5387 = vld [vmem:[%s9 + $0x20] sm:$0xf]
  %v5388 = vld [vmem:[%s9 + $0x24] sm:$0xf]
  %v5389 = vld [vmem:[%s9 + $0x28] sm:$0xf]
  %v5390 = vld [vmem:[%s9 + $0x2c] sm:$0xf]
  %v5391 = vld [vmem:[%s9 + $0x30] sm:$0xf]
  %v5392 = vld [vmem:[%s9 + $0x34] sm:$0xf]
  %v5393 = vld [vmem:[%s9 + $0x38] sm:$0xf]
  %v5394 = vld [vmem:[%s9 + $0x3c] sm:$0xf]
  %v5395 = vld [vmem:[%s9 + $0x40] sm:$0xf]
  %v5396 = vld [vmem:[%s9 + $0x44] sm:$0xf]
  %v5397 = vld [vmem:[%s9 + $0x48] sm:$0xf]
  %v5398 = vld [vmem:[%s9 + $0x4c] sm:$0xf]
  %v5399 = vld [vmem:[%s9 + $0x50] sm:$0xf]
  %v5400 = vld [vmem:[%s9 + $0x54] sm:$0xf]
  %v5401 = vld [vmem:[%s9 + $0x58] sm:$0xf]
  %v5402 = vld [vmem:[%s9 + $0x5c] sm:$0xf]
  %v5403 = vld [vmem:[%s9 + $0x60] sm:$0xf]
  %v5404 = vld [vmem:[%s10] sm:$0x1]
  %v5406 = vlaneseq
  %v5407 = vshrl.u32 %v5406, 7
  %v5408 = vsub.s32 0, %v5407
  %v5409 = vrot.slane %v5404, %v5408
  %v5436 = vunpack.c.l.b16 %v5379
  %v5437 = vunpack.c.l.b16 %v5380
  %v5438 = vunpack.c.l.b16 %v5381
  %v5439 = vunpack.c.l.b16 %v5382
  %v5440 = vunpack.c.l.b16 %v5383
  %v5441 = vunpack.c.l.b16 %v5384
  %v5442 = vunpack.c.l.b16 %v5385
  %v5443 = vunpack.c.l.b16 %v5386
  %v5444 = vunpack.c.l.b16 %v5387
  %v5445 = vunpack.c.l.b16 %v5388
  %v5446 = vunpack.c.l.b16 %v5389
  %v5447 = vunpack.c.l.b16 %v5390
  %v5448 = vunpack.c.l.b16 %v5391
  %v5449 = vunpack.c.l.b16 %v5392
  %v5450 = vunpack.c.l.b16 %v5393
  %v5451 = vunpack.c.l.b16 %v5394
  %v5452 = vunpack.c.l.b16 %v5395
  %v5453 = vunpack.c.l.b16 %v5396
  %v5454 = vunpack.c.l.b16 %v5397
  %v5455 = vunpack.c.l.b16 %v5398
  %v5456 = vunpack.c.l.b16 %v5399
  %v5457 = vunpack.c.l.b16 %v5400
  %v5458 = vunpack.c.l.b16 %v5401
  %v5459 = vunpack.c.l.b16 %v5402
  %v5460 = vunpack.c.l.b16 %v5403
  %v5461 = vpack.c.b16 %v5437, %v5436
  %v5462 = vpack.c.b16 %v5439, %v5438
  %v5463 = vpack.c.b16 %v5441, %v5440
  %v5464 = vpack.c.b16 %v5443, %v5442
  %v5465 = vpack.c.b16 %v5445, %v5444
  %v5466 = vpack.c.b16 %v5447, %v5446
  %v5467 = vpack.c.b16 %v5449, %v5448
  %v5468 = vpack.c.b16 %v5451, %v5450
  %v5469 = vpack.c.b16 %v5453, %v5452
  %v5470 = vpack.c.b16 %v5455, %v5454
  %v5471 = vpack.c.b16 %v5457, %v5456
  %v5472 = vpack.c.b16 %v5459, %v5458
  %v5473 = vpack.c.b16 %v5460, %v5460
  %v5487 = vsel %vm4673, %v5378, 0
  %v5490 = vsel %vm4677, %v5473, 0
  %5492 = vmatprep.subr.bf16.mxu0 0
  %5493 = vmatpush1.bf16.msra.mxu0 %v5461
  %5494 = vmatprep.subr.bf16.mxu0 0
  %5495 = vmatpush1.bf16.msra.mxu0 %v5462
  %5496 = vmatprep.subr.bf16.mxu0 0
  %5497 = vmatpush1.bf16.msra.mxu0 %v5463
  %5498 = vmatprep.subr.bf16.mxu0 0
  %5499 = vmatpush1.bf16.msra.mxu0 %v5464
  %5500 = vmatprep.subr.bf16.mxu0 0
  %5501 = vmatpush1.bf16.msra.mxu0 %v5465
  %5502 = vmatprep.subr.bf16.mxu0 0
  %5503 = vmatpush1.bf16.msra.mxu0 %v5466
  %5504 = vmatprep.subr.bf16.mxu0 0
  %5505 = vmatpush1.bf16.msra.mxu0 %v5467
  %5506 = vmatprep.subr.bf16.mxu0 0
  %5507 = vmatpush1.bf16.msra.mxu0 %v5468
  %5508 = vmatprep.subr.bf16.mxu0 0
  %5509 = vmatpush1.bf16.msra.mxu0 %v5469
  %5510 = vmatprep.subr.bf16.mxu0 0
  %5511 = vmatpush1.bf16.msra.mxu0 %v5470
  %5512 = vmatprep.subr.bf16.mxu0 0
  %5513 = vmatpush1.bf16.msra.mxu0 %v5471
  %5514 = vmatprep.subr.bf16.mxu0 0
  %5515 = vmatpush1.bf16.msra.mxu0 %v5472
  %5516 = vmatprep.subr.bf16.mxu0 0
  %5517 = vmatpush1.bf16.msra.mxu0 %v5490
  %5518 = vmatprep.subr.bf16.mxu0 0
  %5519 = vmatpush1.bf16.msra.mxu0 0
  %5520 = vmatprep.subr.bf16.mxu0 0
  %5521 = vmatpush1.bf16.msra.mxu0 0
  %5522 = vmatprep.subr.bf16.mxu0 0
  %5523 = vmatpush1.bf16.msra.mxu0 0
  %5524 = vmatprep.mubr.bf16.mxu0 %v5487
  %5525 = vmatmul.mubr.bf16.gmra.mrb[0].mxu0 %v5377
  %v5526 = vpop.f32.mrb[0].mxu0
  %v5527 = vadd.f32 %v5409, %v5526
  %v5528 = vpop.f32.mrb[0].mxu0
  %v5529 = vpop.f32.mrb[0].mxu0
  %v5530 = vpop.f32.mrb[0].mxu0
  %5531 = vdwg.mxu0
  %5532 = vst [vmem:[%s11] sm:$0x3] %v5527
  // Predicated region
  $region46: #{cnn_forward.1} parent=0 // pred_check
    _
  $region47: #{cnn_forward.1} parent=0 // pred_check_branch
    %5534 = sbr.rel (0) target = $region49
  $region48: #{cnn_forward.1} parent=0 // pred_region
    _
  $region49: #{cnn_forward.1} parent=0 // pred_fallthru
    _
  // Predicated region
  $region50: #{cnn_forward.1} parent=0 // pred_check
    _
  $region51: #{cnn_forward.1} parent=0 // pred_check_branch
    %5536 = sbr.rel (0) target = $region53
  $region52: #{cnn_forward.1} parent=0 // pred_region
    _
  $region53: #{cnn_forward.1} parent=0 // pred_fallthru
    _

</llo_original>
